<compile_context>
chip_gen: v7x
topology: tpu7x:2x2x1
jax: 0.10.0
libtpu: 0.0.40
codegen_flags: <defaults>
</compile_context>

<pallas_src>
import jax
import jax.numpy as jnp
from jax.experimental import pallas as pl
from jax.experimental.pallas import tpu as pltpu


# ---------------------------------------------------------------------------
# Fused MLP kernel: eager per-layer weight DMA + chained matmul/bias/ReLU
# ---------------------------------------------------------------------------
def _fused_mlp_kernel(x_ref, *refs):
    # refs = (w1_hbm, b1, w2_hbm, b2, ..., wL_hbm, bL,   # inputs
    #         o_ref,                                      # output
    #         w1_vmem, ..., wL_vmem, sems)                # scratch
    n_layers = (len(refs) - 2) // 3
    wb_refs = refs[: 2 * n_layers]
    o_ref = refs[2 * n_layers]
    w_vmem = refs[2 * n_layers + 1 : 2 * n_layers + 1 + n_layers]
    sems = refs[-1]

    # Issue ALL weight HBM->VMEM DMAs up front: layer i+1's weight copy
    # overlaps with layer i's MXU matmul.
    copies = []
    for i in range(n_layers):
        cp = pltpu.make_async_copy(wb_refs[2 * i], w_vmem[i], sems.at[i])
        cp.start()
        copies.append(cp)

    h = x_ref[...]  # already bf16 (cast in wrapper)
    for i in range(n_layers):
        copies[i].wait()  # block only on THIS layer's weight
        # MXU matmul with f32 accumulation; bias add (f32) broadcasts over rows.
        r = jnp.dot(h, w_vmem[i][...], preferred_element_type=jnp.float32)
        r = r + wb_refs[2 * i + 1][...]
        if i < n_layers - 1:
            h = jnp.maximum(r, 0.0).astype(jnp.bfloat16)
        else:
            o_ref[...] = r.astype(o_ref.dtype)


def mlp_forward(x, params):
    """x:(M, D_in) f32; params: list of (W_t:(in,out) bf16, b:(1,out) f32)."""
    M = x.shape[0]
    N_out = params[-1][0].shape[1]

    flat_inputs = [x.astype(jnp.bfloat16)]  # halve x DMA; MXU-native dtype
    in_specs = [pl.BlockSpec(memory_space=pltpu.MemorySpace.VMEM)]
    weight_scratch = []
    for w_t, b in params:
        flat_inputs.append(w_t)
        in_specs.append(pl.BlockSpec(memory_space=pl.ANY))  # weight stays in HBM
        flat_inputs.append(b)
        in_specs.append(pl.BlockSpec(memory_space=pltpu.MemorySpace.VMEM))
        weight_scratch.append(pltpu.VMEM(w_t.shape, w_t.dtype))

    scratch_shapes = weight_scratch + [pltpu.SemaphoreType.DMA((len(params),))]

    # Footprint (weights + activations + output) is ~5 MiB; give explicit
    # scoped-VMEM headroom so v5e's 16 MiB default is never a surprise.
    return pl.pallas_call(
        _fused_mlp_kernel,
        out_shape=jax.ShapeDtypeStruct((M, N_out), jnp.float32),
        in_specs=in_specs,
        out_specs=pl.BlockSpec(memory_space=pltpu.MemorySpace.VMEM),
        scratch_shapes=scratch_shapes,
        compiler_params=pltpu.CompilerParams(vmem_limit_bytes=32 * 1024 * 1024),
    )(*flat_inputs)


# ---------------------------------------------------------------------------
# Parameter init (deterministic), matching torch.nn.Linear's U(-1/sqrt(in), .)
# ---------------------------------------------------------------------------
def init_mlp_params(key, input_dim, output_dim, lane=128):
    """Returns list of (W_t:(in, out_padded) bf16, b:(1, out_padded) f32)."""
    dims = [input_dim, 1536, 1024, 256, 128, output_dim]
    params = []
    for li in range(len(dims) - 1):
        fan_in, fan_out = dims[li], dims[li + 1]
        fan_out_p = ((fan_out + lane - 1) // lane) * lane  # pad to lane multiple
        key, kw, kb = jax.random.split(key, 3)
        scale = 1.0 / jnp.sqrt(jnp.float32(fan_in))
        w_t = jax.random.uniform(
            kw, (fan_in, fan_out), jnp.float32, minval=-scale, maxval=scale
        )
        b = jax.random.uniform(
            kb, (fan_out,), jnp.float32, minval=-scale, maxval=scale
        )
        if fan_out_p != fan_out:
            # Padded weight columns AND padded bias entries are zero, so the
            # padded output columns are exactly zero and can be sliced away.
            w_t = jnp.pad(w_t, ((0, 0), (0, fan_out_p - fan_out)))
            b = jnp.pad(b, (0, fan_out_p - fan_out))
        params.append((w_t.astype(jnp.bfloat16), b.reshape(1, fan_out_p)))
    return params


# ---------------------------------------------------------------------------
# Pure-JAX reference with the same bf16-input / f32-accumulate numerics
# ---------------------------------------------------------------------------
def reference_forward(x, params, output_dim):
    h = x.astype(jnp.bfloat16)
    for idx, (w_t, b) in enumerate(params):
        r = jnp.dot(h, w_t, preferred_element_type=jnp.float32) + b
        if idx != len(params) - 1:
            h = jnp.maximum(r, 0.0).astype(jnp.bfloat16)
        else:
            h = r
    return h[:, :output_dim]


if __name__ == "__main__":
    key = jax.random.PRNGKey(0)
    batch, input_dim, output_dim = 8, 256, 10
    # NOTE: at M=8 the kernel is weight-DMA bound; for throughput use, batch
    # M >= 128 (v5e) / 256 (v6e/v7x) per call — the kernel body is M-agnostic.

    kx, kp = jax.random.split(key)
    x = jax.random.normal(kx, (batch, input_dim), jnp.float32)
    params = init_mlp_params(kp, input_dim, output_dim)

    y_padded = mlp_forward(x, params)
    y = y_padded[:, :output_dim]  # drop zero-padded output columns
    y = jax.block_until_ready(y)

    # Sanity check against a plain-JAX reference using identical numerics.
    y_ref = reference_forward(x, params, output_dim)
    assert y.shape == (batch, output_dim)
    assert jnp.allclose(y, y_ref, atol=2e-3, rtol=2e-3), (
        float(jnp.max(jnp.abs(y - y_ref)))
    )

    print("KERNEL_OK")
</pallas_src>

<mosaic_0001>
module attributes {stable_mosaic.version = 11 : i64} {
  func.func @_fused_mlp_kernel(%arg0: memref<8x256xbf16, #tpu.memory_space<vmem>>, %arg1: memref<256x1536xbf16, #tpu.memory_space<any>>, %arg2: memref<1x1536xf32, #tpu.memory_space<vmem>>, %arg3: memref<1536x1024xbf16, #tpu.memory_space<any>>, %arg4: memref<1x1024xf32, #tpu.memory_space<vmem>>, %arg5: memref<1024x256xbf16, #tpu.memory_space<any>>, %arg6: memref<1x256xf32, #tpu.memory_space<vmem>>, %arg7: memref<256x128xbf16, #tpu.memory_space<any>>, %arg8: memref<1x128xf32, #tpu.memory_space<vmem>>, %arg9: memref<128x128xbf16, #tpu.memory_space<any>>, %arg10: memref<1x128xf32, #tpu.memory_space<vmem>>, %arg11: memref<8x128xf32, #tpu.memory_space<vmem>>, %arg12: memref<256x1536xbf16, #tpu.memory_space<vmem>>, %arg13: memref<1536x1024xbf16, #tpu.memory_space<vmem>>, %arg14: memref<1024x256xbf16, #tpu.memory_space<vmem>>, %arg15: memref<256x128xbf16, #tpu.memory_space<vmem>>, %arg16: memref<128x128xbf16, #tpu.memory_space<vmem>>, %arg17: memref<5x!tpu.dma_semaphore, #tpu.memory_space<semaphore_mem>>) attributes {dimension_semantics = [], scalar_prefetch = 0 : i64, scratch_operands = 6 : i64, tpu.core_type = #tpu.core_type<tc>} {
    %c0_i32 = arith.constant 0 : i32
    %0 = tpu.memref_slice %arg17[%c0_i32] : memref<5x!tpu.dma_semaphore, #tpu.memory_space<semaphore_mem>> -> memref<1x!tpu.dma_semaphore, #tpu.memory_space<semaphore_mem>>
    %1 = tpu.memref_squeeze %0 : memref<1x!tpu.dma_semaphore, #tpu.memory_space<semaphore_mem>> -> memref<!tpu.dma_semaphore, #tpu.memory_space<semaphore_mem>>
    tpu.enqueue_dma source(%arg1 : memref<256x1536xbf16, #tpu.memory_space<any>>) target(%arg12 : memref<256x1536xbf16, #tpu.memory_space<vmem>>) target_semaphore(%1 : memref<!tpu.dma_semaphore, #tpu.memory_space<semaphore_mem>>)
    %c1_i32 = arith.constant 1 : i32
    %2 = tpu.memref_slice %arg17[%c1_i32] : memref<5x!tpu.dma_semaphore, #tpu.memory_space<semaphore_mem>> -> memref<1x!tpu.dma_semaphore, #tpu.memory_space<semaphore_mem>>
    %3 = tpu.memref_squeeze %2 : memref<1x!tpu.dma_semaphore, #tpu.memory_space<semaphore_mem>> -> memref<!tpu.dma_semaphore, #tpu.memory_space<semaphore_mem>>
    tpu.enqueue_dma source(%arg3 : memref<1536x1024xbf16, #tpu.memory_space<any>>) target(%arg13 : memref<1536x1024xbf16, #tpu.memory_space<vmem>>) target_semaphore(%3 : memref<!tpu.dma_semaphore, #tpu.memory_space<semaphore_mem>>)
    %c2_i32 = arith.constant 2 : i32
    %4 = tpu.memref_slice %arg17[%c2_i32] : memref<5x!tpu.dma_semaphore, #tpu.memory_space<semaphore_mem>> -> memref<1x!tpu.dma_semaphore, #tpu.memory_space<semaphore_mem>>
    %5 = tpu.memref_squeeze %4 : memref<1x!tpu.dma_semaphore, #tpu.memory_space<semaphore_mem>> -> memref<!tpu.dma_semaphore, #tpu.memory_space<semaphore_mem>>
    tpu.enqueue_dma source(%arg5 : memref<1024x256xbf16, #tpu.memory_space<any>>) target(%arg14 : memref<1024x256xbf16, #tpu.memory_space<vmem>>) target_semaphore(%5 : memref<!tpu.dma_semaphore, #tpu.memory_space<semaphore_mem>>)
    %c3_i32 = arith.constant 3 : i32
    %6 = tpu.memref_slice %arg17[%c3_i32] : memref<5x!tpu.dma_semaphore, #tpu.memory_space<semaphore_mem>> -> memref<1x!tpu.dma_semaphore, #tpu.memory_space<semaphore_mem>>
    %7 = tpu.memref_squeeze %6 : memref<1x!tpu.dma_semaphore, #tpu.memory_space<semaphore_mem>> -> memref<!tpu.dma_semaphore, #tpu.memory_space<semaphore_mem>>
    tpu.enqueue_dma source(%arg7 : memref<256x128xbf16, #tpu.memory_space<any>>) target(%arg15 : memref<256x128xbf16, #tpu.memory_space<vmem>>) target_semaphore(%7 : memref<!tpu.dma_semaphore, #tpu.memory_space<semaphore_mem>>)
    %c4_i32 = arith.constant 4 : i32
    %8 = tpu.memref_slice %arg17[%c4_i32] : memref<5x!tpu.dma_semaphore, #tpu.memory_space<semaphore_mem>> -> memref<1x!tpu.dma_semaphore, #tpu.memory_space<semaphore_mem>>
    %9 = tpu.memref_squeeze %8 : memref<1x!tpu.dma_semaphore, #tpu.memory_space<semaphore_mem>> -> memref<!tpu.dma_semaphore, #tpu.memory_space<semaphore_mem>>
    tpu.enqueue_dma source(%arg9 : memref<128x128xbf16, #tpu.memory_space<any>>) target(%arg16 : memref<128x128xbf16, #tpu.memory_space<vmem>>) target_semaphore(%9 : memref<!tpu.dma_semaphore, #tpu.memory_space<semaphore_mem>>)
    %c0 = arith.constant 0 : index
    %c0_0 = arith.constant 0 : index
    %10 = vector.load %arg0[%c0, %c0_0] : memref<8x256xbf16, #tpu.memory_space<vmem>>, vector<8x256xbf16>
    %c0_i32_1 = arith.constant 0 : i32
    %11 = tpu.memref_slice %arg17[%c0_i32_1] : memref<5x!tpu.dma_semaphore, #tpu.memory_space<semaphore_mem>> -> memref<1x!tpu.dma_semaphore, #tpu.memory_space<semaphore_mem>>
    %12 = tpu.memref_squeeze %11 : memref<1x!tpu.dma_semaphore, #tpu.memory_space<semaphore_mem>> -> memref<!tpu.dma_semaphore, #tpu.memory_space<semaphore_mem>>
    tpu.wait_dma2 semaphore(%12 : memref<!tpu.dma_semaphore, #tpu.memory_space<semaphore_mem>>) src(%arg1 : memref<256x1536xbf16, #tpu.memory_space<any>>) dst(%arg12 : memref<256x1536xbf16, #tpu.memory_space<vmem>>)
    %c0_2 = arith.constant 0 : index
    %c0_3 = arith.constant 0 : index
    %13 = vector.load %arg12[%c0_2, %c0_3] : memref<256x1536xbf16, #tpu.memory_space<vmem>>, vector<256x1536xbf16>
    %cst = arith.constant dense<0.000000e+00> : vector<8x1536xf32>
    %14 = tpu.matmul %10, %13, %cst {dimension_numbers = #tpu.dot_dimension_numbers<[1], [0], [0], [1], [0, 0, 1, 1], [], []>} : vector<8x256xbf16>, vector<256x1536xbf16>, vector<8x1536xf32> -> vector<8x1536xf32>
    %c0_4 = arith.constant 0 : index
    %c0_5 = arith.constant 0 : index
    %15 = vector.load %arg2[%c0_4, %c0_5] : memref<1x1536xf32, #tpu.memory_space<vmem>>, vector<1x1536xf32>
    %16 = vector.broadcast %15 : vector<1x1536xf32> to vector<8x1536xf32>
    %17 = arith.addf %14, %16 : vector<8x1536xf32>
    %cst_6 = arith.constant 0.000000e+00 : f32
    %18 = vector.broadcast %cst_6 : f32 to vector<8x1536xf32>
    %19 = arith.maximumf %17, %18 : vector<8x1536xf32>
    %20 = arith.truncf %19 : vector<8x1536xf32> to vector<8x1536xbf16>
    %c1_i32_7 = arith.constant 1 : i32
    %21 = tpu.memref_slice %arg17[%c1_i32_7] : memref<5x!tpu.dma_semaphore, #tpu.memory_space<semaphore_mem>> -> memref<1x!tpu.dma_semaphore, #tpu.memory_space<semaphore_mem>>
    %22 = tpu.memref_squeeze %21 : memref<1x!tpu.dma_semaphore, #tpu.memory_space<semaphore_mem>> -> memref<!tpu.dma_semaphore, #tpu.memory_space<semaphore_mem>>
    tpu.wait_dma2 semaphore(%22 : memref<!tpu.dma_semaphore, #tpu.memory_space<semaphore_mem>>) src(%arg3 : memref<1536x1024xbf16, #tpu.memory_space<any>>) dst(%arg13 : memref<1536x1024xbf16, #tpu.memory_space<vmem>>)
    %c0_8 = arith.constant 0 : index
    %c0_9 = arith.constant 0 : index
    %23 = vector.load %arg13[%c0_8, %c0_9] : memref<1536x1024xbf16, #tpu.memory_space<vmem>>, vector<1536x1024xbf16>
    %cst_10 = arith.constant dense<0.000000e+00> : vector<8x1024xf32>
    %24 = tpu.matmul %20, %23, %cst_10 {dimension_numbers = #tpu.dot_dimension_numbers<[1], [0], [0], [1], [0, 0, 1, 1], [], []>} : vector<8x1536xbf16>, vector<1536x1024xbf16>, vector<8x1024xf32> -> vector<8x1024xf32>
    %c0_11 = arith.constant 0 : index
    %c0_12 = arith.constant 0 : index
    %25 = vector.load %arg4[%c0_11, %c0_12] : memref<1x1024xf32, #tpu.memory_space<vmem>>, vector<1x1024xf32>
    %26 = vector.broadcast %25 : vector<1x1024xf32> to vector<8x1024xf32>
    %27 = arith.addf %24, %26 : vector<8x1024xf32>
    %cst_13 = arith.constant 0.000000e+00 : f32
    %28 = vector.broadcast %cst_13 : f32 to vector<8x1024xf32>
    %29 = arith.maximumf %27, %28 : vector<8x1024xf32>
    %30 = arith.truncf %29 : vector<8x1024xf32> to vector<8x1024xbf16>
    %c2_i32_14 = arith.constant 2 : i32
    %31 = tpu.memref_slice %arg17[%c2_i32_14] : memref<5x!tpu.dma_semaphore, #tpu.memory_space<semaphore_mem>> -> memref<1x!tpu.dma_semaphore, #tpu.memory_space<semaphore_mem>>
    %32 = tpu.memref_squeeze %31 : memref<1x!tpu.dma_semaphore, #tpu.memory_space<semaphore_mem>> -> memref<!tpu.dma_semaphore, #tpu.memory_space<semaphore_mem>>
    tpu.wait_dma2 semaphore(%32 : memref<!tpu.dma_semaphore, #tpu.memory_space<semaphore_mem>>) src(%arg5 : memref<1024x256xbf16, #tpu.memory_space<any>>) dst(%arg14 : memref<1024x256xbf16, #tpu.memory_space<vmem>>)
    %c0_15 = arith.constant 0 : index
    %c0_16 = arith.constant 0 : index
    %33 = vector.load %arg14[%c0_15, %c0_16] : memref<1024x256xbf16, #tpu.memory_space<vmem>>, vector<1024x256xbf16>
    %cst_17 = arith.constant dense<0.000000e+00> : vector<8x256xf32>
    %34 = tpu.matmul %30, %33, %cst_17 {dimension_numbers = #tpu.dot_dimension_numbers<[1], [0], [0], [1], [0, 0, 1, 1], [], []>} : vector<8x1024xbf16>, vector<1024x256xbf16>, vector<8x256xf32> -> vector<8x256xf32>
    %c0_18 = arith.constant 0 : index
    %c0_19 = arith.constant 0 : index
    %35 = vector.load %arg6[%c0_18, %c0_19] : memref<1x256xf32, #tpu.memory_space<vmem>>, vector<1x256xf32>
    %36 = vector.broadcast %35 : vector<1x256xf32> to vector<8x256xf32>
    %37 = arith.addf %34, %36 : vector<8x256xf32>
    %cst_20 = arith.constant 0.000000e+00 : f32
    %38 = vector.broadcast %cst_20 : f32 to vector<8x256xf32>
    %39 = arith.maximumf %37, %38 : vector<8x256xf32>
    %40 = arith.truncf %39 : vector<8x256xf32> to vector<8x256xbf16>
    %c3_i32_21 = arith.constant 3 : i32
    %41 = tpu.memref_slice %arg17[%c3_i32_21] : memref<5x!tpu.dma_semaphore, #tpu.memory_space<semaphore_mem>> -> memref<1x!tpu.dma_semaphore, #tpu.memory_space<semaphore_mem>>
    %42 = tpu.memref_squeeze %41 : memref<1x!tpu.dma_semaphore, #tpu.memory_space<semaphore_mem>> -> memref<!tpu.dma_semaphore, #tpu.memory_space<semaphore_mem>>
    tpu.wait_dma2 semaphore(%42 : memref<!tpu.dma_semaphore, #tpu.memory_space<semaphore_mem>>) src(%arg7 : memref<256x128xbf16, #tpu.memory_space<any>>) dst(%arg15 : memref<256x128xbf16, #tpu.memory_space<vmem>>)
    %c0_22 = arith.constant 0 : index
    %c0_23 = arith.constant 0 : index
    %43 = vector.load %arg15[%c0_22, %c0_23] : memref<256x128xbf16, #tpu.memory_space<vmem>>, vector<256x128xbf16>
    %cst_24 = arith.constant dense<0.000000e+00> : vector<8x128xf32>
    %44 = tpu.matmul %40, %43, %cst_24 {dimension_numbers = #tpu.dot_dimension_numbers<[1], [0], [0], [1], [0, 0, 1, 1], [], []>} : vector<8x256xbf16>, vector<256x128xbf16>, vector<8x128xf32> -> vector<8x128xf32>
    %c0_25 = arith.constant 0 : index
    %c0_26 = arith.constant 0 : index
    %45 = vector.load %arg8[%c0_25, %c0_26] : memref<1x128xf32, #tpu.memory_space<vmem>>, vector<1x128xf32>
    %46 = vector.broadcast %45 : vector<1x128xf32> to vector<8x128xf32>
    %47 = arith.addf %44, %46 : vector<8x128xf32>
    %cst_27 = arith.constant 0.000000e+00 : f32
    %48 = vector.broadcast %cst_27 : f32 to vector<8x128xf32>
    %49 = arith.maximumf %47, %48 : vector<8x128xf32>
    %50 = arith.truncf %49 : vector<8x128xf32> to vector<8x128xbf16>
    %c4_i32_28 = arith.constant 4 : i32
    %51 = tpu.memref_slice %arg17[%c4_i32_28] : memref<5x!tpu.dma_semaphore, #tpu.memory_space<semaphore_mem>> -> memref<1x!tpu.dma_semaphore, #tpu.memory_space<semaphore_mem>>
    %52 = tpu.memref_squeeze %51 : memref<1x!tpu.dma_semaphore, #tpu.memory_space<semaphore_mem>> -> memref<!tpu.dma_semaphore, #tpu.memory_space<semaphore_mem>>
    tpu.wait_dma2 semaphore(%52 : memref<!tpu.dma_semaphore, #tpu.memory_space<semaphore_mem>>) src(%arg9 : memref<128x128xbf16, #tpu.memory_space<any>>) dst(%arg16 : memref<128x128xbf16, #tpu.memory_space<vmem>>)
    %c0_29 = arith.constant 0 : index
    %c0_30 = arith.constant 0 : index
    %53 = vector.load %arg16[%c0_29, %c0_30] : memref<128x128xbf16, #tpu.memory_space<vmem>>, vector<128x128xbf16>
    %cst_31 = arith.constant dense<0.000000e+00> : vector<8x128xf32>
    %54 = tpu.matmul %50, %53, %cst_31 {dimension_numbers = #tpu.dot_dimension_numbers<[1], [0], [0], [1], [0, 0, 1, 1], [], []>} : vector<8x128xbf16>, vector<128x128xbf16>, vector<8x128xf32> -> vector<8x128xf32>
    %c0_32 = arith.constant 0 : index
    %c0_33 = arith.constant 0 : index
    %55 = vector.load %arg10[%c0_32, %c0_33] : memref<1x128xf32, #tpu.memory_space<vmem>>, vector<1x128xf32>
    %56 = vector.broadcast %55 : vector<1x128xf32> to vector<8x128xf32>
    %57 = arith.addf %54, %56 : vector<8x128xf32>
    %c0_34 = arith.constant 0 : index
    %c0_35 = arith.constant 0 : index
    %58 = vector.load %arg11[%c0_34, %c0_35] : memref<8x128xf32, #tpu.memory_space<vmem>>, vector<8x128xf32>
    tpu.vector_store %arg11[%c0_34, %c0_35], %57 {strides = array<i32>} : memref<8x128xf32, #tpu.memory_space<vmem>>, vector<8x128xf32>,
    return
  }
}

</mosaic_0001>

<llo_original>
// kernel: tpu_custom_call.1
$region0: #{tpu_custom_call.1}
  #allocation0 [shape = 'u32[]', space=smem, size = 0x4, offset = 0x4, fixed_abs, tag = 'smem constant byte address 0x4 - core index']
  #allocation1 [shape = 'u32[144,128]{1,0:T(1,128)}', space=vmem, size = 0x12000, scoped, tag = 'internal scratch']
  #allocation2 [shape = 'bf16[256,1536]{1,0:T(16,128)(2,1)}', space=vmem, size = 0xc0000, scoped, tag = 'scratch operand']
  #allocation3 [shape = 'bf16[1536,1024]{1,0:T(16,128)(2,1)}', space=vmem, size = 0x300000, scoped, tag = 'scratch operand']
  #allocation4 [shape = 'bf16[1024,256]{1,0:T(16,128)(2,1)}', space=vmem, size = 0x80000, scoped, tag = 'scratch operand']
  #allocation5 [shape = 'bf16[256,128]{1,0:T(16,128)(2,1)}', space=vmem, size = 0x10000, scoped, tag = 'scratch operand']
  #allocation6 [shape = 'bf16[128,128]{1,0:T(16,128)(2,1)}', space=vmem, size = 0x8000, scoped, tag = 'scratch operand']
  #allocation7 [shape = 's32[5]{0}', space=sflag, size = 0x14, scoped, tag = 'scratch operand']
  #allocation20 [shape = 's32[]', space=sflag, size = 0x4, offset = 0, fixed_abs, tag = 'sflag constant byte address 0x0 - dummy sync flag']
  #allocation22 [shape = 's32[]', space=sflag, size = 0x4, offset = 0, fixed_abs, tag = 'sflag constant byte address 0x0 - dummy sync flag']
  #allocation24 [shape = 's32[]', space=sflag, size = 0x4, offset = 0, fixed_abs, tag = 'sflag constant byte address 0x0 - dummy sync flag']
  #allocation26 [shape = 's32[]', space=sflag, size = 0x4, offset = 0, fixed_abs, tag = 'sflag constant byte address 0x0 - dummy sync flag']
  #allocation27 [shape = 's32[]', space=sflag, size = 0x4, offset = 0, fixed_abs, tag = 'sflag constant byte address 0x0 - dummy sync flag']
  #allocation28 [shape = 'u32[]', space=smem, size = 0x4, offset = 0x44, fixed_abs, tag = 'smem constant byte address 0x44 - assertion arg 0']
  #allocation29 [shape = 'u32[]', space=smem, size = 0x4, offset = 0x48, fixed_abs, tag = 'smem constant byte address 0x48 - assertion arg 1']
  #allocation30 [shape = 's32[]', space=sflag, size = 0x4, offset = 0, fixed_abs, tag = 'sflag constant byte address 0x0 - dummy sync flag']
  #allocation31 [shape = 's32[]', space=sflag, size = 0x4, offset = 0, fixed_abs, tag = 'sflag constant byte address 0x0 - dummy sync flag']
  %s0 = inlined_call_operand.hbm [shape: bf16[8,256], index: 0, kind: input, shape index: {}]
  %s1 = inlined_call_operand.hbm [shape: bf16[256,1536], index: 1, kind: input, shape index: {}]
  %s2 = inlined_call_operand.hbm [shape: f32[1,1536], index: 2, kind: input, shape index: {}]
  %s3 = inlined_call_operand.hbm [shape: bf16[1536,1024], index: 3, kind: input, shape index: {}]
  %s4 = inlined_call_operand.hbm [shape: f32[1,1024], index: 4, kind: input, shape index: {}]
  %s5 = inlined_call_operand.hbm [shape: bf16[1024,256], index: 5, kind: input, shape index: {}]
  %s6 = inlined_call_operand.hbm [shape: f32[1,256], index: 6, kind: input, shape index: {}]
  %s7 = inlined_call_operand.hbm [shape: bf16[256,128], index: 7, kind: input, shape index: {}]
  %s8 = inlined_call_operand.hbm [shape: f32[1,128], index: 8, kind: input, shape index: {}]
  %s9 = inlined_call_operand.hbm [shape: bf16[128,128], index: 9, kind: input, shape index: {}]
  %s10 = inlined_call_operand.hbm [shape: f32[1,128], index: 10, kind: input, shape index: {}]
  %s11 = inlined_call_operand.hbm [shape: f32[8,128], index: 11, kind: output, shape index: {}]
  %s12 = sld [smem:[#allocation0]]
  $region66: #{tpu_custom_call.1} parent=0
    _
  %s14 = ssub.s32 1, %s12
  %s15 = scalar_select 0, %s14, %s12
  $region1: #{tpu_custom_call.1} parent=0
    #allocation8 [shape = 'u8[4096]{0}', space=vmem, size = 0x1000, scoped, tag = 'input window, operand 0, single buffered']
    #allocation9 [shape = 's32[1]{0}', space=sflag, size = 0x4, scoped, tag = 'scoped memory for tpu_custom_call.1']
    #allocation10 [shape = 's32[1]{0}', space=sflag, size = 0x4, scoped, tag = 'scoped memory for tpu_custom_call.1']
    #allocation11 [shape = 'u8[6144]{0}', space=vmem, size = 0x1800, scoped, tag = 'input window, operand 2, single buffered']
    #allocation12 [shape = 's32[1]{0}', space=sflag, size = 0x4, scoped, tag = 'scoped memory for tpu_custom_call.1']
    #allocation13 [shape = 'u8[4096]{0}', space=vmem, size = 0x1000, scoped, tag = 'input window, operand 4, single buffered']
    #allocation14 [shape = 'u8[1024]{0}', space=vmem, size = 0x400, scoped, tag = 'input window, operand 6, single buffered']
    #allocation15 [shape = 's32[1]{0}', space=sflag, size = 0x4, scoped, tag = 'scoped memory for tpu_custom_call.1']
    #allocation16 [shape = 'u8[512]{0}', space=vmem, size = 0x400, scoped, tag = 'input window, operand 8, single buffered']
    #allocation17 [shape = 'u8[512]{0}', space=vmem, size = 0x400, scoped, tag = 'input window, operand 10, single buffered']
    #allocation18 [shape = 's32[1]{0}', space=sflag, size = 0x4, scoped, tag = 'scoped memory for tpu_custom_call.1']
    #allocation19 [shape = 'u8[4096]{0}', space=vmem, size = 0x1000, scoped, tag = 'output window, operand 0, single buffered']
    #allocation21 [shape = 'u32[9]{0}', space=smem, size = 0x24, scoped, tag = 'DMA stride descriptor']
    #allocation23 [shape = 'u32[9]{0}', space=smem, size = 0x24, scoped, tag = 'DMA stride descriptor']
    #allocation25 [shape = 'u32[9]{0}', space=smem, size = 0x24, scoped, tag = 'DMA stride descriptor']
    %16 = vsyncpa [#allocation9], 0
    %17 = vsyncpa [#allocation12], 0
    %18 = vsyncpa [#allocation15], 0
    %19 = vsyncpa [#allocation18], 0
    %20 = vsyncpa [#allocation10], 0
    // Predicated region
    $region2: #{tpu_custom_call.1} parent=1 // pred_check
      _
    $region3: #{tpu_custom_call.1} parent=1 // pred_check_branch
      %22 = sbr.rel (0) target = $region5
    $region4: #{tpu_custom_call.1} parent=1 // pred_region
      %s24 = ssub.s32 128, 128
      %25 = vsyncadd [#allocation9], %s24
      %s27 = sshll.u32 [#allocation8], 4
      %s28 = int_to_ptr.vmem [resolvable:$true] %s27
      %30 = dma.hbm_to_vmem [thread:$0]  %s0, 128, %s28, [#allocation9]
    $region5: #{tpu_custom_call.1} parent=1 // pred_fallthru
      _
    // Predicated region
    $region6: #{tpu_custom_call.1} parent=1 // pred_check
      _
    $region7: #{tpu_custom_call.1} parent=1 // pred_check_branch
      %32 = sbr.rel (0) target = $region9
    $region8: #{tpu_custom_call.1} parent=1 // pred_region
      %s34 = ssub.s32 192, 192
      %35 = vsyncadd [#allocation12], %s34
      %s37 = sshll.u32 [#allocation11], 4
      %s38 = int_to_ptr.vmem [resolvable:$true] %s37
      %40 = dma.hbm_to_vmem [thread:$0]  %s2, 192, %s38, [#allocation12]
    $region9: #{tpu_custom_call.1} parent=1 // pred_fallthru
      _
    // Predicated region
    $region10: #{tpu_custom_call.1} parent=1 // pred_check
      _
    $region11: #{tpu_custom_call.1} parent=1 // pred_check_branch
      %42 = sbr.rel (0) target = $region13
    $region12: #{tpu_custom_call.1} parent=1 // pred_region
      %s44 = ssub.s32 128, 128
      %45 = vsyncadd [#allocation12], %s44
      %s47 = sshll.u32 [#allocation13], 4
      %s48 = int_to_ptr.vmem [resolvable:$true] %s47
      %50 = dma.hbm_to_vmem [thread:$0]  %s4, 128, %s48, [#allocation12]
    $region13: #{tpu_custom_call.1} parent=1 // pred_fallthru
      _
    // Predicated region
    $region14: #{tpu_custom_call.1} parent=1 // pred_check
      _
    $region15: #{tpu_custom_call.1} parent=1 // pred_check_branch
      %52 = sbr.rel (0) target = $region17
    $region16: #{tpu_custom_call.1} parent=1 // pred_region
      %s54 = ssub.s32 32, 32
      %55 = vsyncadd [#allocation15], %s54
      %s57 = sshll.u32 [#allocation14], 4
      %s58 = int_to_ptr.vmem [resolvable:$true] %s57
      %60 = dma.hbm_to_vmem [thread:$0]  %s6, 32, %s58, [#allocation15]
    $region17: #{tpu_custom_call.1} parent=1 // pred_fallthru
      _
    // Predicated region
    $region18: #{tpu_custom_call.1} parent=1 // pred_check
      _
    $region19: #{tpu_custom_call.1} parent=1 // pred_check_branch
      %62 = sbr.rel (0) target = $region21
    $region20: #{tpu_custom_call.1} parent=1 // pred_region
      %s64 = ssub.s32 16, 16
      %65 = vsyncadd [#allocation15], %s64
      %s67 = sshll.u32 [#allocation16], 4
      %s68 = int_to_ptr.vmem [resolvable:$true] %s67
      %70 = dma.hbm_to_vmem [thread:$0]  %s8, 16, %s68, [#allocation15]
    $region21: #{tpu_custom_call.1} parent=1 // pred_fallthru
      _
    // Predicated region
    $region22: #{tpu_custom_call.1} parent=1 // pred_check
      _
    $region23: #{tpu_custom_call.1} parent=1 // pred_check_branch
      %72 = sbr.rel (0) target = $region25
    $region24: #{tpu_custom_call.1} parent=1 // pred_region
      %s74 = ssub.s32 16, 16
      %75 = vsyncadd [#allocation18], %s74
      %s77 = sshll.u32 [#allocation17], 4
      %s78 = int_to_ptr.vmem [resolvable:$true] %s77
      %80 = dma.hbm_to_vmem [thread:$0]  %s10, 16, %s78, [#allocation18]
    $region25: #{tpu_custom_call.1} parent=1 // pred_fallthru
      _
    // Predicated region
    $region26: #{tpu_custom_call.1} parent=1 // pred_check
      _
    $region27: #{tpu_custom_call.1} parent=1 // pred_check_branch
      %82 = sbr.rel (0) target = $region29
    $region28: #{tpu_custom_call.1} parent=1 // pred_region
      %83 = dma.done [#allocation9], 128
    $region29: #{tpu_custom_call.1} parent=1 // pred_fallthru
      _
    // Predicated region
    $region30: #{tpu_custom_call.1} parent=1 // pred_check
      _
    $region31: #{tpu_custom_call.1} parent=1 // pred_check_branch
      %85 = sbr.rel (0) target = $region33
    $region32: #{tpu_custom_call.1} parent=1 // pred_region
      %86 = dma.done [#allocation12], 192
    $region33: #{tpu_custom_call.1} parent=1 // pred_fallthru
      _
    // Predicated region
    $region34: #{tpu_custom_call.1} parent=1 // pred_check
      _
    $region35: #{tpu_custom_call.1} parent=1 // pred_check_branch
      %88 = sbr.rel (0) target = $region37
    $region36: #{tpu_custom_call.1} parent=1 // pred_region
      %89 = dma.done [#allocation12], 128
    $region37: #{tpu_custom_call.1} parent=1 // pred_fallthru
      _
    // Predicated region
    $region38: #{tpu_custom_call.1} parent=1 // pred_check
      _
    $region39: #{tpu_custom_call.1} parent=1 // pred_check_branch
      %91 = sbr.rel (0) target = $region41
    $region40: #{tpu_custom_call.1} parent=1 // pred_region
      %92 = dma.done [#allocation15], 32
    $region41: #{tpu_custom_call.1} parent=1 // pred_fallthru
      _
    // Predicated region
    $region42: #{tpu_custom_call.1} parent=1 // pred_check
      _
    $region43: #{tpu_custom_call.1} parent=1 // pred_check_branch
      %94 = sbr.rel (0) target = $region45
    $region44: #{tpu_custom_call.1} parent=1 // pred_region
      %95 = dma.done [#allocation15], 16
    $region45: #{tpu_custom_call.1} parent=1 // pred_fallthru
      _
    // Predicated region
    $region46: #{tpu_custom_call.1} parent=1 // pred_check
      _
    $region47: #{tpu_custom_call.1} parent=1 // pred_check_branch
      %97 = sbr.rel (0) target = $region49
    $region48: #{tpu_custom_call.1} parent=1 // pred_region
      %98 = dma.done [#allocation18], 16
    $region49: #{tpu_custom_call.1} parent=1 // pred_fallthru
      _
    %s101 = sshll.u32 1, 14
    %s102 = sxor.u32 4294967295, %s101
    %s104 = sld [smem:[#allocation0]]
    %s105 = sadd.s32 2, %s104
    %s107 = sshll.u32 7, 26
    %s108 = sxor.u32 4294967295, %s107
    %s109 = sand.u32 0, %s108
    %s110 = sshll.u32 %s105, 26
    %s111 = sor.u32 %s109, %s110
    %s112 = sshll.u32 [#allocation2], 4
    %s113 = int_to_ptr.vmem [resolvable:$true] %s112
    %116 = sst [smem:[#allocation21]] 1536
    %s117 = scalar_lea.smem [#allocation21], 1
    %118 = sst [smem:[%s117]] 1536
    %s119 = scalar_lea.smem [#allocation21], 2
    %120 = sst [smem:[%s119]] 12
    %s121 = scalar_lea.smem [#allocation21], 3
    %122 = sst [smem:[%s121]] 64
    %s123 = scalar_lea.smem [#allocation21], 4
    %124 = sst [smem:[%s123]] 128
    %s125 = scalar_lea.smem [#allocation21], 5
    %126 = sst [smem:[%s125]] 2
    %s127 = scalar_lea.smem [#allocation21], 6
    %128 = sst [smem:[%s127]] 768
    %s129 = scalar_lea.smem [#allocation21], 7
    %130 = sst [smem:[%s129]] 64
    %s131 = scalar_lea.smem [#allocation21], 8
    %132 = sst [smem:[%s131]] 4
    %134 = dma.general %s1, 24576, %s113, [#allocation7], [#allocation20], [#allocation21], %s111, 0
    %s135 = scalar_lea.sflag [#allocation7], 1
    %s137 = sshll.u32 1, 14
    %s138 = sxor.u32 4294967295, %s137
    %s140 = sadd.s32 2, %s104
    %s142 = sshll.u32 7, 26
    %s143 = sxor.u32 4294967295, %s142
    %s144 = sand.u32 0, %s143
    %s145 = sshll.u32 %s140, 26
    %s146 = sor.u32 %s144, %s145
    %s147 = sshll.u32 [#allocation3], 4
    %s148 = int_to_ptr.vmem [resolvable:$true] %s147
    %151 = sst [smem:[#allocation23]] 1024
    %s152 = scalar_lea.smem [#allocation23], 1
    %153 = sst [smem:[%s152]] 1024
    %s154 = scalar_lea.smem [#allocation23], 2
    %155 = sst [smem:[%s154]] 8
    %s156 = scalar_lea.smem [#allocation23], 3
    %157 = sst [smem:[%s156]] 64
    %s158 = scalar_lea.smem [#allocation23], 4
    %159 = sst [smem:[%s158]] 128
    %s160 = scalar_lea.smem [#allocation23], 5
    %161 = sst [smem:[%s160]] 2
    %s162 = scalar_lea.smem [#allocation23], 6
    %163 = sst [smem:[%s162]] 512
    %s164 = scalar_lea.smem [#allocation23], 7
    %165 = sst [smem:[%s164]] 64
    %s166 = scalar_lea.smem [#allocation23], 8
    %167 = sst [smem:[%s166]] 4
    %169 = dma.general %s3, 98304, %s148, %s135, [#allocation22], [#allocation23], %s146, 0
    %s170 = scalar_lea.sflag [#allocation7], 2
    %s172 = sshll.u32 1, 14
    %s173 = sxor.u32 4294967295, %s172
    %s175 = sadd.s32 2, %s104
    %s177 = sshll.u32 7, 26
    %s178 = sxor.u32 4294967295, %s177
    %s179 = sand.u32 0, %s178
    %s180 = sshll.u32 %s175, 26
    %s181 = sor.u32 %s179, %s180
    %s182 = sshll.u32 [#allocation4], 4
    %s183 = int_to_ptr.vmem [resolvable:$true] %s182
    %186 = sst [smem:[#allocation25]] 256
    %s187 = scalar_lea.smem [#allocation25], 1
    %188 = sst [smem:[%s187]] 256
    %s189 = scalar_lea.smem [#allocation25], 2
    %190 = sst [smem:[%s189]] 2
    %s191 = scalar_lea.smem [#allocation25], 3
    %192 = sst [smem:[%s191]] 64
    %s193 = scalar_lea.smem [#allocation25], 4
    %194 = sst [smem:[%s193]] 128
    %s195 = scalar_lea.smem [#allocation25], 5
    %196 = sst [smem:[%s195]] 2
    %s197 = scalar_lea.smem [#allocation25], 6
    %198 = sst [smem:[%s197]] 128
    %s199 = scalar_lea.smem [#allocation25], 7
    %200 = sst [smem:[%s199]] 64
    %s201 = scalar_lea.smem [#allocation25], 8
    %202 = sst [smem:[%s201]] 4
    %204 = dma.general %s5, 16384, %s183, %s170, [#allocation24], [#allocation25], %s181, 0
    %s205 = scalar_lea.sflag [#allocation7], 3
    // Predicated region
    $region50: #{tpu_custom_call.1} parent=1 // pred_check
      _
    $region51: #{tpu_custom_call.1} parent=1 // pred_check_branch
      %207 = sbr.rel target = $region53
    $region52: #{tpu_custom_call.1} parent=1 // pred_region
      %208 = sst [smem:[#allocation28]] [#allocation27]
      %209 = sst [smem:[#allocation29]] [#allocation26]
    $region53: #{tpu_custom_call.1} parent=1 // pred_fallthru
      _
    %211 = shalt.err (0)
    %s213 = sshll.u32 [#allocation5], 4
    %s214 = int_to_ptr.vmem [resolvable:$true] %s213
    %216 = dma.hbm_to_vmem [thread:$0]  %s7, 2048, %s214, %s205
    %s217 = scalar_lea.sflag [#allocation7], 4
    // Predicated region
    $region54: #{tpu_custom_call.1} parent=1 // pred_check
      _
    $region55: #{tpu_custom_call.1} parent=1 // pred_check_branch
      %219 = sbr.rel target = $region57
    $region56: #{tpu_custom_call.1} parent=1 // pred_region
      %220 = sst [smem:[#allocation28]] [#allocation31]
      %221 = sst [smem:[#allocation29]] [#allocation30]
    $region57: #{tpu_custom_call.1} parent=1 // pred_fallthru
      _
    %223 = shalt.err (0)
    %s225 = sshll.u32 [#allocation6], 4
    %s226 = int_to_ptr.vmem [resolvable:$true] %s225
    %228 = dma.hbm_to_vmem [thread:$0]  %s9, 1024, %s226, %s217
    %v229 = vld [vmem:[#allocation8] sm:$0xff]
    %s230 = smul.u32 4, 32
    %s231 = smul.u32 %s230, 12
    %s232 = sshll.u32 %s231, 4
    %233 = dma.done [#allocation7], %s232
    %v234 = vld [vmem:[#allocation2] sm:$0xff]
    %v235 = vld [vmem:[#allocation2 + $0x8] sm:$0xff]
    %v236 = vld [vmem:[#allocation2 + $0x10] sm:$0xff]
    %v237 = vld [vmem:[#allocation2 + $0x18] sm:$0xff]
    %v238 = vld [vmem:[#allocation2 + $0x20] sm:$0xff]
    %v239 = vld [vmem:[#allocation2 + $0x28] sm:$0xff]
    %v240 = vld [vmem:[#allocation2 + $0x30] sm:$0xff]
    %v241 = vld [vmem:[#allocation2 + $0x38] sm:$0xff]
    %v242 = vld [vmem:[#allocation2 + $0x40] sm:$0xff]
    %v243 = vld [vmem:[#allocation2 + $0x48] sm:$0xff]
    %v244 = vld [vmem:[#allocation2 + $0x50] sm:$0xff]
    %v245 = vld [vmem:[#allocation2 + $0x58] sm:$0xff]
    %v246 = vld [vmem:[#allocation2 + $0x60] sm:$0xff]
    %v247 = vld [vmem:[#allocation2 + $0x68] sm:$0xff]
    %v248 = vld [vmem:[#allocation2 + $0x70] sm:$0xff]
    %v249 = vld [vmem:[#allocation2 + $0x78] sm:$0xff]
    %v250 = vld [vmem:[#allocation2 + $0x80] sm:$0xff]
    %v251 = vld [vmem:[#allocation2 + $0x88] sm:$0xff]
    %v252 = vld [vmem:[#allocation2 + $0x90] sm:$0xff]
    %v253 = vld [vmem:[#allocation2 + $0x98] sm:$0xff]
    %v254 = vld [vmem:[#allocation2 + $0xa0] sm:$0xff]
    %v255 = vld [vmem:[#allocation2 + $0xa8] sm:$0xff]
    %v256 = vld [vmem:[#allocation2 + $0xb0] sm:$0xff]
    %v257 = vld [vmem:[#allocation2 + $0xb8] sm:$0xff]
    %v258 = vld [vmem:[#allocation2 + $0xc0] sm:$0xff]
    %v259 = vld [vmem:[#allocation2 + $0xc8] sm:$0xff]
    %v260 = vld [vmem:[#allocation2 + $0xd0] sm:$0xff]
    %v261 = vld [vmem:[#allocation2 + $0xd8] sm:$0xff]
    %v262 = vld [vmem:[#allocation2 + $0xe0] sm:$0xff]
    %v263 = vld [vmem:[#allocation2 + $0xe8] sm:$0xff]
    %v264 = vld [vmem:[#allocation2 + $0xf0] sm:$0xff]
    %v265 = vld [vmem:[#allocation2 + $0xf8] sm:$0xff]
    %v266 = vld [vmem:[#allocation2 + $0x100] sm:$0xff]
    %v267 = vld [vmem:[#allocation2 + $0x108] sm:$0xff]
    %v268 = vld [vmem:[#allocation2 + $0x110] sm:$0xff]
    %v269 = vld [vmem:[#allocation2 + $0x118] sm:$0xff]
    %v270 = vld [vmem:[#allocation2 + $0x120] sm:$0xff]
    %v271 = vld [vmem:[#allocation2 + $0x128] sm:$0xff]
    %v272 = vld [vmem:[#allocation2 + $0x130] sm:$0xff]
    %v273 = vld [vmem:[#allocation2 + $0x138] sm:$0xff]
    %v274 = vld [vmem:[#allocation2 + $0x140] sm:$0xff]
    %v275 = vld [vmem:[#allocation2 + $0x148] sm:$0xff]
    %v276 = vld [vmem:[#allocation2 + $0x150] sm:$0xff]
    %v277 = vld [vmem:[#allocation2 + $0x158] sm:$0xff]
    %v278 = vld [vmem:[#allocation2 + $0x160] sm:$0xff]
    %v279 = vld [vmem:[#allocation2 + $0x168] sm:$0xff]
    %v280 = vld [vmem:[#allocation2 + $0x170] sm:$0xff]
    %v281 = vld [vmem:[#allocation2 + $0x178] sm:$0xff]
    %v282 = vld [vmem:[#allocation2 + $0x180] sm:$0xff]
    %v283 = vld [vmem:[#allocation2 + $0x188] sm:$0xff]
    %v284 = vld [vmem:[#allocation2 + $0x190] sm:$0xff]
    %v285 = vld [vmem:[#allocation2 + $0x198] sm:$0xff]
    %v286 = vld [vmem:[#allocation2 + $0x1a0] sm:$0xff]
    %v287 = vld [vmem:[#allocation2 + $0x1a8] sm:$0xff]
    %v288 = vld [vmem:[#allocation2 + $0x1b0] sm:$0xff]
    %v289 = vld [vmem:[#allocation2 + $0x1b8] sm:$0xff]
    %v290 = vld [vmem:[#allocation2 + $0x1c0] sm:$0xff]
    %v291 = vld [vmem:[#allocation2 + $0x1c8] sm:$0xff]
    %v292 = vld [vmem:[#allocation2 + $0x1d0] sm:$0xff]
    %v293 = vld [vmem:[#allocation2 + $0x1d8] sm:$0xff]
    %v294 = vld [vmem:[#allocation2 + $0x1e0] sm:$0xff]
    %v295 = vld [vmem:[#allocation2 + $0x1e8] sm:$0xff]
    %v296 = vld [vmem:[#allocation2 + $0x1f0] sm:$0xff]
    %v297 = vld [vmem:[#allocation2 + $0x1f8] sm:$0xff]
    %v298 = vld [vmem:[#allocation2 + $0x200] sm:$0xff]
    %v299 = vld [vmem:[#allocation2 + $0x208] sm:$0xff]
    %v300 = vld [vmem:[#allocation2 + $0x210] sm:$0xff]
    %v301 = vld [vmem:[#allocation2 + $0x218] sm:$0xff]
    %v302 = vld [vmem:[#allocation2 + $0x220] sm:$0xff]
    %v303 = vld [vmem:[#allocation2 + $0x228] sm:$0xff]
    %v304 = vld [vmem:[#allocation2 + $0x230] sm:$0xff]
    %v305 = vld [vmem:[#allocation2 + $0x238] sm:$0xff]
    %v306 = vld [vmem:[#allocation2 + $0x240] sm:$0xff]
    %v307 = vld [vmem:[#allocation2 + $0x248] sm:$0xff]
    %v308 = vld [vmem:[#allocation2 + $0x250] sm:$0xff]
    %v309 = vld [vmem:[#allocation2 + $0x258] sm:$0xff]
    %v310 = vld [vmem:[#allocation2 + $0x260] sm:$0xff]
    %v311 = vld [vmem:[#allocation2 + $0x268] sm:$0xff]
    %v312 = vld [vmem:[#allocation2 + $0x270] sm:$0xff]
    %v313 = vld [vmem:[#allocation2 + $0x278] sm:$0xff]
    %v314 = vld [vmem:[#allocation2 + $0x280] sm:$0xff]
    %v315 = vld [vmem:[#allocation2 + $0x288] sm:$0xff]
    %v316 = vld [vmem:[#allocation2 + $0x290] sm:$0xff]
    %v317 = vld [vmem:[#allocation2 + $0x298] sm:$0xff]
    %v318 = vld [vmem:[#allocation2 + $0x2a0] sm:$0xff]
    %v319 = vld [vmem:[#allocation2 + $0x2a8] sm:$0xff]
    %v320 = vld [vmem:[#allocation2 + $0x2b0] sm:$0xff]
    %v321 = vld [vmem:[#allocation2 + $0x2b8] sm:$0xff]
    %v322 = vld [vmem:[#allocation2 + $0x2c0] sm:$0xff]
    %v323 = vld [vmem:[#allocation2 + $0x2c8] sm:$0xff]
    %v324 = vld [vmem:[#allocation2 + $0x2d0] sm:$0xff]
    %v325 = vld [vmem:[#allocation2 + $0x2d8] sm:$0xff]
    %v326 = vld [vmem:[#allocation2 + $0x2e0] sm:$0xff]
    %v327 = vld [vmem:[#allocation2 + $0x2e8] sm:$0xff]
    %v328 = vld [vmem:[#allocation2 + $0x2f0] sm:$0xff]
    %v329 = vld [vmem:[#allocation2 + $0x2f8] sm:$0xff]
    %v330 = vld [vmem:[#allocation2 + $0x300] sm:$0xff]
    %v331 = vld [vmem:[#allocation2 + $0x308] sm:$0xff]
    %v332 = vld [vmem:[#allocation2 + $0x310] sm:$0xff]
    %v333 = vld [vmem:[#allocation2 + $0x318] sm:$0xff]
    %v334 = vld [vmem:[#allocation2 + $0x320] sm:$0xff]
    %v335 = vld [vmem:[#allocation2 + $0x328] sm:$0xff]
    %v336 = vld [vmem:[#allocation2 + $0x330] sm:$0xff]
    %v337 = vld [vmem:[#allocation2 + $0x338] sm:$0xff]
    %v338 = vld [vmem:[#allocation2 + $0x340] sm:$0xff]
    %v339 = vld [vmem:[#allocation2 + $0x348] sm:$0xff]
    %v340 = vld [vmem:[#allocation2 + $0x350] sm:$0xff]
    %v341 = vld [vmem:[#allocation2 + $0x358] sm:$0xff]
    %v342 = vld [vmem:[#allocation2 + $0x360] sm:$0xff]
    %v343 = vld [vmem:[#allocation2 + $0x368] sm:$0xff]
    %v344 = vld [vmem:[#allocation2 + $0x370] sm:$0xff]
    %v345 = vld [vmem:[#allocation2 + $0x378] sm:$0xff]
    %v346 = vld [vmem:[#allocation2 + $0x380] sm:$0xff]
    %v347 = vld [vmem:[#allocation2 + $0x388] sm:$0xff]
    %v348 = vld [vmem:[#allocation2 + $0x390] sm:$0xff]
    %v349 = vld [vmem:[#allocation2 + $0x398] sm:$0xff]
    %v350 = vld [vmem:[#allocation2 + $0x3a0] sm:$0xff]
    %v351 = vld [vmem:[#allocation2 + $0x3a8] sm:$0xff]
    %v352 = vld [vmem:[#allocation2 + $0x3b0] sm:$0xff]
    %v353 = vld [vmem:[#allocation2 + $0x3b8] sm:$0xff]
    %v354 = vld [vmem:[#allocation2 + $0x3c0] sm:$0xff]
    %v355 = vld [vmem:[#allocation2 + $0x3c8] sm:$0xff]
    %v356 = vld [vmem:[#allocation2 + $0x3d0] sm:$0xff]
    %v357 = vld [vmem:[#allocation2 + $0x3d8] sm:$0xff]
    %v358 = vld [vmem:[#allocation2 + $0x3e0] sm:$0xff]
    %v359 = vld [vmem:[#allocation2 + $0x3e8] sm:$0xff]
    %v360 = vld [vmem:[#allocation2 + $0x3f0] sm:$0xff]
    %v361 = vld [vmem:[#allocation2 + $0x3f8] sm:$0xff]
    %v362 = vld [vmem:[#allocation2 + $0x400] sm:$0xff]
    %v363 = vld [vmem:[#allocation2 + $0x408] sm:$0xff]
    %v364 = vld [vmem:[#allocation2 + $0x410] sm:$0xff]
    %v365 = vld [vmem:[#allocation2 + $0x418] sm:$0xff]
    %v366 = vld [vmem:[#allocation2 + $0x420] sm:$0xff]
    %v367 = vld [vmem:[#allocation2 + $0x428] sm:$0xff]
    %v368 = vld [vmem:[#allocation2 + $0x430] sm:$0xff]
    %v369 = vld [vmem:[#allocation2 + $0x438] sm:$0xff]
    %v370 = vld [vmem:[#allocation2 + $0x440] sm:$0xff]
    %v371 = vld [vmem:[#allocation2 + $0x448] sm:$0xff]
    %v372 = vld [vmem:[#allocation2 + $0x450] sm:$0xff]
    %v373 = vld [vmem:[#allocation2 + $0x458] sm:$0xff]
    %v374 = vld [vmem:[#allocation2 + $0x460] sm:$0xff]
    %v375 = vld [vmem:[#allocation2 + $0x468] sm:$0xff]
    %v376 = vld [vmem:[#allocation2 + $0x470] sm:$0xff]
    %v377 = vld [vmem:[#allocation2 + $0x478] sm:$0xff]
    %v378 = vld [vmem:[#allocation2 + $0x480] sm:$0xff]
    %v379 = vld [vmem:[#allocation2 + $0x488] sm:$0xff]
    %v380 = vld [vmem:[#allocation2 + $0x490] sm:$0xff]
    %v381 = vld [vmem:[#allocation2 + $0x498] sm:$0xff]
    %v382 = vld [vmem:[#allocation2 + $0x4a0] sm:$0xff]
    %v383 = vld [vmem:[#allocation2 + $0x4a8] sm:$0xff]
    %v384 = vld [vmem:[#allocation2 + $0x4b0] sm:$0xff]
    %v385 = vld [vmem:[#allocation2 + $0x4b8] sm:$0xff]
    %v386 = vld [vmem:[#allocation2 + $0x4c0] sm:$0xff]
    %v387 = vld [vmem:[#allocation2 + $0x4c8] sm:$0xff]
    %v388 = vld [vmem:[#allocation2 + $0x4d0] sm:$0xff]
    %v389 = vld [vmem:[#allocation2 + $0x4d8] sm:$0xff]
    %v390 = vld [vmem:[#allocation2 + $0x4e0] sm:$0xff]
    %v391 = vld [vmem:[#allocation2 + $0x4e8] sm:$0xff]
    %v392 = vld [vmem:[#allocation2 + $0x4f0] sm:$0xff]
    %v393 = vld [vmem:[#allocation2 + $0x4f8] sm:$0xff]
    %v394 = vld [vmem:[#allocation2 + $0x500] sm:$0xff]
    %v395 = vld [vmem:[#allocation2 + $0x508] sm:$0xff]
    %v396 = vld [vmem:[#allocation2 + $0x510] sm:$0xff]
    %v397 = vld [vmem:[#allocation2 + $0x518] sm:$0xff]
    %v398 = vld [vmem:[#allocation2 + $0x520] sm:$0xff]
    %v399 = vld [vmem:[#allocation2 + $0x528] sm:$0xff]
    %v400 = vld [vmem:[#allocation2 + $0x530] sm:$0xff]
    %v401 = vld [vmem:[#allocation2 + $0x538] sm:$0xff]
    %v402 = vld [vmem:[#allocation2 + $0x540] sm:$0xff]
    %v403 = vld [vmem:[#allocation2 + $0x548] sm:$0xff]
    %v404 = vld [vmem:[#allocation2 + $0x550] sm:$0xff]
    %v405 = vld [vmem:[#allocation2 + $0x558] sm:$0xff]
    %v406 = vld [vmem:[#allocation2 + $0x560] sm:$0xff]
    %v407 = vld [vmem:[#allocation2 + $0x568] sm:$0xff]
    %v408 = vld [vmem:[#allocation2 + $0x570] sm:$0xff]
    %v409 = vld [vmem:[#allocation2 + $0x578] sm:$0xff]
    %v410 = vld [vmem:[#allocation2 + $0x580] sm:$0xff]
    %v411 = vld [vmem:[#allocation2 + $0x588] sm:$0xff]
    %v412 = vld [vmem:[#allocation2 + $0x590] sm:$0xff]
    %v413 = vld [vmem:[#allocation2 + $0x598] sm:$0xff]
    %v414 = vld [vmem:[#allocation2 + $0x5a0] sm:$0xff]
    %v415 = vld [vmem:[#allocation2 + $0x5a8] sm:$0xff]
    %v416 = vld [vmem:[#allocation2 + $0x5b0] sm:$0xff]
    %v417 = vld [vmem:[#allocation2 + $0x5b8] sm:$0xff]
    %v418 = vld [vmem:[#allocation2 + $0x5c0] sm:$0xff]
    %v419 = vld [vmem:[#allocation2 + $0x5c8] sm:$0xff]
    %v420 = vld [vmem:[#allocation2 + $0x5d0] sm:$0xff]
    %v421 = vld [vmem:[#allocation2 + $0x5d8] sm:$0xff]
    %v422 = vld [vmem:[#allocation2 + $0x5e0] sm:$0xff]
    %v423 = vld [vmem:[#allocation2 + $0x5e8] sm:$0xff]
    %v424 = vld [vmem:[#allocation2 + $0x5f0] sm:$0xff]
    %v425 = vld [vmem:[#allocation2 + $0x5f8] sm:$0xff]
    %v426 = vld [vmem:[#allocation11] sm:$0xff]
    %v427 = vld [vmem:[#allocation11 + $0x8] sm:$0xf]
    %v430 = vlaneseq
    %v431 = vshrl.u32 %v430, 7
    %v432 = vsub.s32 0, %v431
    %v433 = vrot.slane %v426, %v432
    %v434 = vlaneseq
    %v435 = vshrl.u32 %v434, 7
    %v436 = vsub.s32 1, %v435
    %v437 = vrot.slane %v426, %v436
    %v438 = vlaneseq
    %v439 = vshrl.u32 %v438, 7
    %v440 = vsub.s32 2, %v439
    %v441 = vrot.slane %v426, %v440
    %v442 = vlaneseq
    %v443 = vshrl.u32 %v442, 7
    %v444 = vsub.s32 3, %v443
    %v445 = vrot.slane %v426, %v444
    %v446 = vlaneseq
    %v447 = vshrl.u32 %v446, 7
    %v448 = vsub.s32 4, %v447
    %v449 = vrot.slane %v426, %v448
    %v450 = vlaneseq
    %v451 = vshrl.u32 %v450, 7
    %v452 = vsub.s32 5, %v451
    %v453 = vrot.slane %v426, %v452
    %v454 = vlaneseq
    %v455 = vshrl.u32 %v454, 7
    %v456 = vsub.s32 6, %v455
    %v457 = vrot.slane %v426, %v456
    %v458 = vlaneseq
    %v459 = vshrl.u32 %v458, 7
    %v460 = vsub.s32 7, %v459
    %v461 = vrot.slane %v426, %v460
    %v462 = vlaneseq
    %v463 = vshrl.u32 %v462, 7
    %v464 = vsub.s32 0, %v463
    %v465 = vrot.slane %v427, %v464
    %v466 = vlaneseq
    %v467 = vshrl.u32 %v466, 7
    %v468 = vsub.s32 1, %v467
    %v469 = vrot.slane %v427, %v468
    %v470 = vlaneseq
    %v471 = vshrl.u32 %v470, 7
    %v472 = vsub.s32 2, %v471
    %v473 = vrot.slane %v427, %v472
    %v474 = vlaneseq
    %v475 = vshrl.u32 %v474, 7
    %v476 = vsub.s32 3, %v475
    %v477 = vrot.slane %v427, %v476
    %v491 = vunpack.c.l.b16 %v229
    %v492 = vunpack.c.h.b16 %v229
    %v493 = vpack.c.b16 %v491, %v491
    %v494 = vpack.c.b16 %v492, %v492
    %497 = vmatprep.subr.bf16.mxu0 %v235
    %498 = vmatpush1.bf16.msra.mxu0 %v234
    %499 = vmatprep.subr.bf16.mxu0 %v247
    %500 = vmatpush1.bf16.msra.mxu0 %v246
    %501 = vmatprep.subr.bf16.mxu0 %v259
    %502 = vmatpush1.bf16.msra.mxu0 %v258
    %503 = vmatprep.subr.bf16.mxu0 %v271
    %504 = vmatpush1.bf16.msra.mxu0 %v270
    %505 = vmatprep.subr.bf16.mxu0 %v283
    %506 = vmatpush1.bf16.msra.mxu0 %v282
    %507 = vmatprep.subr.bf16.mxu0 %v295
    %508 = vmatpush1.bf16.msra.mxu0 %v294
    %509 = vmatprep.subr.bf16.mxu0 %v307
    %510 = vmatpush1.bf16.msra.mxu0 %v306
    %511 = vmatprep.subr.bf16.mxu0 %v319
    %512 = vmatpush1.bf16.msra.mxu0 %v318
    %513 = vmatprep.subr.bf16.mxu0 %v331
    %514 = vmatpush1.bf16.msra.mxu0 %v330
    %515 = vmatprep.subr.bf16.mxu0 %v343
    %516 = vmatpush1.bf16.msra.mxu0 %v342
    %517 = vmatprep.subr.bf16.mxu0 %v355
    %518 = vmatpush1.bf16.msra.mxu0 %v354
    %519 = vmatprep.subr.bf16.mxu0 %v367
    %520 = vmatpush1.bf16.msra.mxu0 %v366
    %521 = vmatprep.subr.bf16.mxu0 %v379
    %522 = vmatpush1.bf16.msra.mxu0 %v378
    %523 = vmatprep.subr.bf16.mxu0 %v391
    %524 = vmatpush1.bf16.msra.mxu0 %v390
    %525 = vmatprep.subr.bf16.mxu0 %v403
    %526 = vmatpush1.bf16.msra.mxu0 %v402
    %527 = vmatprep.subr.bf16.mxu0 %v415
    %528 = vmatpush1.bf16.msra.mxu0 %v414
    %529 = vmatprep.mubr.bf16.mxu0 %v494
    %530 = vmatmul.mubr.bf16.gmra.mrb[0].mxu0 %v493
    %v531 = vpop.f32.mrb[0].mxu0
    %v532 = vadd.f32 %v433, %v531
    %v533 = vpop.f32.mrb[0].mxu0
    %v534 = vadd.f32 %v437, %v533
    %v535 = vpop.f32.mrb[0].mxu0
    %v536 = vpop.f32.mrb[0].mxu0
    %537 = vdwg.mxu0
    %538 = vmatprep.subr.bf16.mxu0 %v237
    %539 = vmatpush1.bf16.msra.mxu0 %v236
    %540 = vmatprep.subr.bf16.mxu0 %v249
    %541 = vmatpush1.bf16.msra.mxu0 %v248
    %542 = vmatprep.subr.bf16.mxu0 %v261
    %543 = vmatpush1.bf16.msra.mxu0 %v260
    %544 = vmatprep.subr.bf16.mxu0 %v273
    %545 = vmatpush1.bf16.msra.mxu0 %v272
    %546 = vmatprep.subr.bf16.mxu0 %v285
    %547 = vmatpush1.bf16.msra.mxu0 %v284
    %548 = vmatprep.subr.bf16.mxu0 %v297
    %549 = vmatpush1.bf16.msra.mxu0 %v296
    %550 = vmatprep.subr.bf16.mxu0 %v309
    %551 = vmatpush1.bf16.msra.mxu0 %v308
    %552 = vmatprep.subr.bf16.mxu0 %v321
    %553 = vmatpush1.bf16.msra.mxu0 %v320
    %554 = vmatprep.subr.bf16.mxu0 %v333
    %555 = vmatpush1.bf16.msra.mxu0 %v332
    %556 = vmatprep.subr.bf16.mxu0 %v345
    %557 = vmatpush1.bf16.msra.mxu0 %v344
    %558 = vmatprep.subr.bf16.mxu0 %v357
    %559 = vmatpush1.bf16.msra.mxu0 %v356
    %560 = vmatprep.subr.bf16.mxu0 %v369
    %561 = vmatpush1.bf16.msra.mxu0 %v368
    %562 = vmatprep.subr.bf16.mxu0 %v381
    %563 = vmatpush1.bf16.msra.mxu0 %v380
    %564 = vmatprep.subr.bf16.mxu0 %v393
    %565 = vmatpush1.bf16.msra.mxu0 %v392
    %566 = vmatprep.subr.bf16.mxu0 %v405
    %567 = vmatpush1.bf16.msra.mxu0 %v404
    %568 = vmatprep.subr.bf16.mxu0 %v417
    %569 = vmatpush1.bf16.msra.mxu0 %v416
    %570 = vmatprep.mubr.bf16.mxu0 %v494
    %571 = vmatmul.mubr.bf16.gmra.mrb[0].mxu0 %v493
    %v572 = vpop.f32.mrb[0].mxu0
    %v573 = vadd.f32 %v441, %v572
    %v574 = vpop.f32.mrb[0].mxu0
    %v575 = vadd.f32 %v445, %v574
    %v576 = vpop.f32.mrb[0].mxu0
    %v577 = vpop.f32.mrb[0].mxu0
    %578 = vdwg.mxu0
    %579 = vmatprep.subr.bf16.mxu0 %v239
    %580 = vmatpush1.bf16.msra.mxu0 %v238
    %581 = vmatprep.subr.bf16.mxu0 %v251
    %582 = vmatpush1.bf16.msra.mxu0 %v250
    %583 = vmatprep.subr.bf16.mxu0 %v263
    %584 = vmatpush1.bf16.msra.mxu0 %v262
    %585 = vmatprep.subr.bf16.mxu0 %v275
    %586 = vmatpush1.bf16.msra.mxu0 %v274
    %587 = vmatprep.subr.bf16.mxu0 %v287
    %588 = vmatpush1.bf16.msra.mxu0 %v286
    %589 = vmatprep.subr.bf16.mxu0 %v299
    %590 = vmatpush1.bf16.msra.mxu0 %v298
    %591 = vmatprep.subr.bf16.mxu0 %v311
    %592 = vmatpush1.bf16.msra.mxu0 %v310
    %593 = vmatprep.subr.bf16.mxu0 %v323
    %594 = vmatpush1.bf16.msra.mxu0 %v322
    %595 = vmatprep.subr.bf16.mxu0 %v335
    %596 = vmatpush1.bf16.msra.mxu0 %v334
    %597 = vmatprep.subr.bf16.mxu0 %v347
    %598 = vmatpush1.bf16.msra.mxu0 %v346
    %599 = vmatprep.subr.bf16.mxu0 %v359
    %600 = vmatpush1.bf16.msra.mxu0 %v358
    %601 = vmatprep.subr.bf16.mxu0 %v371
    %602 = vmatpush1.bf16.msra.mxu0 %v370
    %603 = vmatprep.subr.bf16.mxu0 %v383
    %604 = vmatpush1.bf16.msra.mxu0 %v382
    %605 = vmatprep.subr.bf16.mxu0 %v395
    %606 = vmatpush1.bf16.msra.mxu0 %v394
    %607 = vmatprep.subr.bf16.mxu0 %v407
    %608 = vmatpush1.bf16.msra.mxu0 %v406
    %609 = vmatprep.subr.bf16.mxu0 %v419
    %610 = vmatpush1.bf16.msra.mxu0 %v418
    %611 = vmatprep.mubr.bf16.mxu0 %v494
    %612 = vmatmul.mubr.bf16.gmra.mrb[0].mxu0 %v493
    %v613 = vpop.f32.mrb[0].mxu0
    %v614 = vadd.f32 %v449, %v613
    %v615 = vpop.f32.mrb[0].mxu0
    %v616 = vadd.f32 %v453, %v615
    %v617 = vpop.f32.mrb[0].mxu0
    %v618 = vpop.f32.mrb[0].mxu0
    %619 = vdwg.mxu0
    %620 = vmatprep.subr.bf16.mxu0 %v241
    %621 = vmatpush1.bf16.msra.mxu0 %v240
    %622 = vmatprep.subr.bf16.mxu0 %v253
    %623 = vmatpush1.bf16.msra.mxu0 %v252
    %624 = vmatprep.subr.bf16.mxu0 %v265
    %625 = vmatpush1.bf16.msra.mxu0 %v264
    %626 = vmatprep.subr.bf16.mxu0 %v277
    %627 = vmatpush1.bf16.msra.mxu0 %v276
    %628 = vmatprep.subr.bf16.mxu0 %v289
    %629 = vmatpush1.bf16.msra.mxu0 %v288
    %630 = vmatprep.subr.bf16.mxu0 %v301
    %631 = vmatpush1.bf16.msra.mxu0 %v300
    %632 = vmatprep.subr.bf16.mxu0 %v313
    %633 = vmatpush1.bf16.msra.mxu0 %v312
    %634 = vmatprep.subr.bf16.mxu0 %v325
    %635 = vmatpush1.bf16.msra.mxu0 %v324
    %636 = vmatprep.subr.bf16.mxu0 %v337
    %637 = vmatpush1.bf16.msra.mxu0 %v336
    %638 = vmatprep.subr.bf16.mxu0 %v349
    %639 = vmatpush1.bf16.msra.mxu0 %v348
    %640 = vmatprep.subr.bf16.mxu0 %v361
    %641 = vmatpush1.bf16.msra.mxu0 %v360
    %642 = vmatprep.subr.bf16.mxu0 %v373
    %643 = vmatpush1.bf16.msra.mxu0 %v372
    %644 = vmatprep.subr.bf16.mxu0 %v385
    %645 = vmatpush1.bf16.msra.mxu0 %v384
    %646 = vmatprep.subr.bf16.mxu0 %v397
    %647 = vmatpush1.bf16.msra.mxu0 %v396
    %648 = vmatprep.subr.bf16.mxu0 %v409
    %649 = vmatpush1.bf16.msra.mxu0 %v408
    %650 = vmatprep.subr.bf16.mxu0 %v421
    %651 = vmatpush1.bf16.msra.mxu0 %v420
    %652 = vmatprep.mubr.bf16.mxu0 %v494
    %653 = vmatmul.mubr.bf16.gmra.mrb[0].mxu0 %v493
    %v654 = vpop.f32.mrb[0].mxu0
    %v655 = vadd.f32 %v457, %v654
    %v656 = vpop.f32.mrb[0].mxu0
    %v657 = vadd.f32 %v461, %v656
    %v658 = vpop.f32.mrb[0].mxu0
    %v659 = vpop.f32.mrb[0].mxu0
    %660 = vdwg.mxu0
    %661 = vmatprep.subr.bf16.mxu0 %v243
    %662 = vmatpush1.bf16.msra.mxu0 %v242
    %663 = vmatprep.subr.bf16.mxu0 %v255
    %664 = vmatpush1.bf16.msra.mxu0 %v254
    %665 = vmatprep.subr.bf16.mxu0 %v267
    %666 = vmatpush1.bf16.msra.mxu0 %v266
    %667 = vmatprep.subr.bf16.mxu0 %v279
    %668 = vmatpush1.bf16.msra.mxu0 %v278
    %669 = vmatprep.subr.bf16.mxu0 %v291
    %670 = vmatpush1.bf16.msra.mxu0 %v290
    %671 = vmatprep.subr.bf16.mxu0 %v303
    %672 = vmatpush1.bf16.msra.mxu0 %v302
    %673 = vmatprep.subr.bf16.mxu0 %v315
    %674 = vmatpush1.bf16.msra.mxu0 %v314
    %675 = vmatprep.subr.bf16.mxu0 %v327
    %676 = vmatpush1.bf16.msra.mxu0 %v326
    %677 = vmatprep.subr.bf16.mxu0 %v339
    %678 = vmatpush1.bf16.msra.mxu0 %v338
    %679 = vmatprep.subr.bf16.mxu0 %v351
    %680 = vmatpush1.bf16.msra.mxu0 %v350
    %681 = vmatprep.subr.bf16.mxu0 %v363
    %682 = vmatpush1.bf16.msra.mxu0 %v362
    %683 = vmatprep.subr.bf16.mxu0 %v375
    %684 = vmatpush1.bf16.msra.mxu0 %v374
    %685 = vmatprep.subr.bf16.mxu0 %v387
    %686 = vmatpush1.bf16.msra.mxu0 %v386
    %687 = vmatprep.subr.bf16.mxu0 %v399
    %688 = vmatpush1.bf16.msra.mxu0 %v398
    %689 = vmatprep.subr.bf16.mxu0 %v411
    %690 = vmatpush1.bf16.msra.mxu0 %v410
    %691 = vmatprep.subr.bf16.mxu0 %v423
    %692 = vmatpush1.bf16.msra.mxu0 %v422
    %693 = vmatprep.mubr.bf16.mxu0 %v494
    %694 = vmatmul.mubr.bf16.gmra.mrb[0].mxu0 %v493
    %v695 = vpop.f32.mrb[0].mxu0
    %v696 = vadd.f32 %v465, %v695
    %v697 = vpop.f32.mrb[0].mxu0
    %v698 = vadd.f32 %v469, %v697
    %v699 = vpop.f32.mrb[0].mxu0
    %v700 = vpop.f32.mrb[0].mxu0
    %701 = vdwg.mxu0
    %702 = vmatprep.subr.bf16.mxu0 %v245
    %703 = vmatpush1.bf16.msra.mxu0 %v244
    %704 = vmatprep.subr.bf16.mxu0 %v257
    %705 = vmatpush1.bf16.msra.mxu0 %v256
    %706 = vmatprep.subr.bf16.mxu0 %v269
    %707 = vmatpush1.bf16.msra.mxu0 %v268
    %708 = vmatprep.subr.bf16.mxu0 %v281
    %709 = vmatpush1.bf16.msra.mxu0 %v280
    %710 = vmatprep.subr.bf16.mxu0 %v293
    %711 = vmatpush1.bf16.msra.mxu0 %v292
    %712 = vmatprep.subr.bf16.mxu0 %v305
    %713 = vmatpush1.bf16.msra.mxu0 %v304
    %714 = vmatprep.subr.bf16.mxu0 %v317
    %715 = vmatpush1.bf16.msra.mxu0 %v316
    %716 = vmatprep.subr.bf16.mxu0 %v329
    %717 = vmatpush1.bf16.msra.mxu0 %v328
    %718 = vmatprep.subr.bf16.mxu0 %v341
    %719 = vmatpush1.bf16.msra.mxu0 %v340
    %720 = vmatprep.subr.bf16.mxu0 %v353
    %721 = vmatpush1.bf16.msra.mxu0 %v352
    %722 = vmatprep.subr.bf16.mxu0 %v365
    %723 = vmatpush1.bf16.msra.mxu0 %v364
    %724 = vmatprep.subr.bf16.mxu0 %v377
    %725 = vmatpush1.bf16.msra.mxu0 %v376
    %726 = vmatprep.subr.bf16.mxu0 %v389
    %727 = vmatpush1.bf16.msra.mxu0 %v388
    %728 = vmatprep.subr.bf16.mxu0 %v401
    %729 = vmatpush1.bf16.msra.mxu0 %v400
    %730 = vmatprep.subr.bf16.mxu0 %v413
    %731 = vmatpush1.bf16.msra.mxu0 %v412
    %732 = vmatprep.subr.bf16.mxu0 %v425
    %733 = vmatpush1.bf16.msra.mxu0 %v424
    %734 = vmatprep.mubr.bf16.mxu0 %v494
    %735 = vmatmul.mubr.bf16.gmra.mrb[0].mxu0 %v493
    %v736 = vpop.f32.mrb[0].mxu0
    %v737 = vadd.f32 %v473, %v736
    %v738 = vpop.f32.mrb[0].mxu0
    %v739 = vadd.f32 %v477, %v738
    %v740 = vpop.f32.mrb[0].mxu0
    %v741 = vpop.f32.mrb[0].mxu0
    %742 = vdwg.mxu0
    %v743 = vmax.f32 %v532, 0.0
    %v744 = vmax.f32 %v534, 0.0
    %v745 = vmax.f32 %v573, 0.0
    %v746 = vmax.f32 %v575, 0.0
    %v747 = vmax.f32 %v614, 0.0
    %v748 = vmax.f32 %v616, 0.0
    %v749 = vmax.f32 %v655, 0.0
    %v750 = vmax.f32 %v657, 0.0
    %v751 = vmax.f32 %v696, 0.0
    %v752 = vmax.f32 %v698, 0.0
    %v753 = vmax.f32 %v737, 0.0
    %v754 = vmax.f32 %v739, 0.0
    %v755 = vpack.c.bf16 %v743, %v743
    %v756 = vpack.c.bf16 %v744, %v744
    %v757 = vpack.c.bf16 %v745, %v745
    %v758 = vpack.c.bf16 %v746, %v746
    %v759 = vpack.c.bf16 %v747, %v747
    %v760 = vpack.c.bf16 %v748, %v748
    %v761 = vpack.c.bf16 %v749, %v749
    %v762 = vpack.c.bf16 %v750, %v750
    %v763 = vpack.c.bf16 %v751, %v751
    %v764 = vpack.c.bf16 %v752, %v752
    %v765 = vpack.c.bf16 %v753, %v753
    %v766 = vpack.c.bf16 %v754, %v754
    %s767 = smul.u32 4, 192
    %s768 = smul.u32 %s767, 8
    %s769 = sshll.u32 %s768, 4
    %770 = dma.done %s135, %s769
    %v771 = vld [vmem:[#allocation3] sm:$0xff]
    %v772 = vld [vmem:[#allocation3 + $0x8] sm:$0xff]
    %v773 = vld [vmem:[#allocation3 + $0x10] sm:$0xff]
    %v774 = vld [vmem:[#allocation3 + $0x18] sm:$0xff]
    %v775 = vld [vmem:[#allocation3 + $0x20] sm:$0xff]
    %v776 = vld [vmem:[#allocation3 + $0x28] sm:$0xff]
    %v777 = vld [vmem:[#allocation3 + $0x30] sm:$0xff]
    %v778 = vld [vmem:[#allocation3 + $0x38] sm:$0xff]
    %v779 = vld [vmem:[#allocation3 + $0x40] sm:$0xff]
    %v780 = vld [vmem:[#allocation3 + $0x48] sm:$0xff]
    %v781 = vld [vmem:[#allocation3 + $0x50] sm:$0xff]
    %v782 = vld [vmem:[#allocation3 + $0x58] sm:$0xff]
    %v783 = vld [vmem:[#allocation3 + $0x60] sm:$0xff]
    %v784 = vld [vmem:[#allocation3 + $0x68] sm:$0xff]
    %v785 = vld [vmem:[#allocation3 + $0x70] sm:$0xff]
    %v786 = vld [vmem:[#allocation3 + $0x78] sm:$0xff]
    %v787 = vld [vmem:[#allocation3 + $0x80] sm:$0xff]
    %v788 = vld [vmem:[#allocation3 + $0x88] sm:$0xff]
    %v789 = vld [vmem:[#allocation3 + $0x90] sm:$0xff]
    %v790 = vld [vmem:[#allocation3 + $0x98] sm:$0xff]
    %v791 = vld [vmem:[#allocation3 + $0xa0] sm:$0xff]
    %v792 = vld [vmem:[#allocation3 + $0xa8] sm:$0xff]
    %v793 = vld [vmem:[#allocation3 + $0xb0] sm:$0xff]
    %v794 = vld [vmem:[#allocation3 + $0xb8] sm:$0xff]
    %v795 = vld [vmem:[#allocation3 + $0xc0] sm:$0xff]
    %v796 = vld [vmem:[#allocation3 + $0xc8] sm:$0xff]
    %v797 = vld [vmem:[#allocation3 + $0xd0] sm:$0xff]
    %v798 = vld [vmem:[#allocation3 + $0xd8] sm:$0xff]
    %v799 = vld [vmem:[#allocation3 + $0xe0] sm:$0xff]
    %v800 = vld [vmem:[#allocation3 + $0xe8] sm:$0xff]
    %v801 = vld [vmem:[#allocation3 + $0xf0] sm:$0xff]
    %v802 = vld [vmem:[#allocation3 + $0xf8] sm:$0xff]
    %v803 = vld [vmem:[#allocation3 + $0x100] sm:$0xff]
    %v804 = vld [vmem:[#allocation3 + $0x108] sm:$0xff]
    %v805 = vld [vmem:[#allocation3 + $0x110] sm:$0xff]
    %v806 = vld [vmem:[#allocation3 + $0x118] sm:$0xff]
    %v807 = vld [vmem:[#allocation3 + $0x120] sm:$0xff]
    %v808 = vld [vmem:[#allocation3 + $0x128] sm:$0xff]
    %v809 = vld [vmem:[#allocation3 + $0x130] sm:$0xff]
    %v810 = vld [vmem:[#allocation3 + $0x138] sm:$0xff]
    %v811 = vld [vmem:[#allocation3 + $0x140] sm:$0xff]
    %v812 = vld [vmem:[#allocation3 + $0x148] sm:$0xff]
    %v813 = vld [vmem:[#allocation3 + $0x150] sm:$0xff]
    %v814 = vld [vmem:[#allocation3 + $0x158] sm:$0xff]
    %v815 = vld [vmem:[#allocation3 + $0x160] sm:$0xff]
    %v816 = vld [vmem:[#allocation3 + $0x168] sm:$0xff]
    %v817 = vld [vmem:[#allocation3 + $0x170] sm:$0xff]
    %v818 = vld [vmem:[#allocation3 + $0x178] sm:$0xff]
    %v819 = vld [vmem:[#allocation3 + $0x180] sm:$0xff]
    %v820 = vld [vmem:[#allocation3 + $0x188] sm:$0xff]
    %v821 = vld [vmem:[#allocation3 + $0x190] sm:$0xff]
    %v822 = vld [vmem:[#allocation3 + $0x198] sm:$0xff]
    %v823 = vld [vmem:[#allocation3 + $0x1a0] sm:$0xff]
    %v824 = vld [vmem:[#allocation3 + $0x1a8] sm:$0xff]
    %v825 = vld [vmem:[#allocation3 + $0x1b0] sm:$0xff]
    %v826 = vld [vmem:[#allocation3 + $0x1b8] sm:$0xff]
    %v827 = vld [vmem:[#allocation3 + $0x1c0] sm:$0xff]
    %v828 = vld [vmem:[#allocation3 + $0x1c8] sm:$0xff]
    %v829 = vld [vmem:[#allocation3 + $0x1d0] sm:$0xff]
    %v830 = vld [vmem:[#allocation3 + $0x1d8] sm:$0xff]
    %v831 = vld [vmem:[#allocation3 + $0x1e0] sm:$0xff]
    %v832 = vld [vmem:[#allocation3 + $0x1e8] sm:$0xff]
    %v833 = vld [vmem:[#allocation3 + $0x1f0] sm:$0xff]
    %v834 = vld [vmem:[#allocation3 + $0x1f8] sm:$0xff]
    %v835 = vld [vmem:[#allocation3 + $0x200] sm:$0xff]
    %v836 = vld [vmem:[#allocation3 + $0x208] sm:$0xff]
    %v837 = vld [vmem:[#allocation3 + $0x210] sm:$0xff]
    %v838 = vld [vmem:[#allocation3 + $0x218] sm:$0xff]
    %v839 = vld [vmem:[#allocation3 + $0x220] sm:$0xff]
    %v840 = vld [vmem:[#allocation3 + $0x228] sm:$0xff]
    %v841 = vld [vmem:[#allocation3 + $0x230] sm:$0xff]
    %v842 = vld [vmem:[#allocation3 + $0x238] sm:$0xff]
    %v843 = vld [vmem:[#allocation3 + $0x240] sm:$0xff]
    %v844 = vld [vmem:[#allocation3 + $0x248] sm:$0xff]
    %v845 = vld [vmem:[#allocation3 + $0x250] sm:$0xff]
    %v846 = vld [vmem:[#allocation3 + $0x258] sm:$0xff]
    %v847 = vld [vmem:[#allocation3 + $0x260] sm:$0xff]
    %v848 = vld [vmem:[#allocation3 + $0x268] sm:$0xff]
    %v849 = vld [vmem:[#allocation3 + $0x270] sm:$0xff]
    %v850 = vld [vmem:[#allocation3 + $0x278] sm:$0xff]
    %v851 = vld [vmem:[#allocation3 + $0x280] sm:$0xff]
    %v852 = vld [vmem:[#allocation3 + $0x288] sm:$0xff]
    %v853 = vld [vmem:[#allocation3 + $0x290] sm:$0xff]
    %v854 = vld [vmem:[#allocation3 + $0x298] sm:$0xff]
    %v855 = vld [vmem:[#allocation3 + $0x2a0] sm:$0xff]
    %v856 = vld [vmem:[#allocation3 + $0x2a8] sm:$0xff]
    %v857 = vld [vmem:[#allocation3 + $0x2b0] sm:$0xff]
    %v858 = vld [vmem:[#allocation3 + $0x2b8] sm:$0xff]
    %v859 = vld [vmem:[#allocation3 + $0x2c0] sm:$0xff]
    %v860 = vld [vmem:[#allocation3 + $0x2c8] sm:$0xff]
    %v861 = vld [vmem:[#allocation3 + $0x2d0] sm:$0xff]
    %v862 = vld [vmem:[#allocation3 + $0x2d8] sm:$0xff]
    %v863 = vld [vmem:[#allocation3 + $0x2e0] sm:$0xff]
    %v864 = vld [vmem:[#allocation3 + $0x2e8] sm:$0xff]
    %v865 = vld [vmem:[#allocation3 + $0x2f0] sm:$0xff]
    %v866 = vld [vmem:[#allocation3 + $0x2f8] sm:$0xff]
    %v867 = vld [vmem:[#allocation3 + $0x300] sm:$0xff]
    %v868 = vld [vmem:[#allocation3 + $0x308] sm:$0xff]
    %v869 = vld [vmem:[#allocation3 + $0x310] sm:$0xff]
    %v870 = vld [vmem:[#allocation3 + $0x318] sm:$0xff]
    %v871 = vld [vmem:[#allocation3 + $0x320] sm:$0xff]
    %v872 = vld [vmem:[#allocation3 + $0x328] sm:$0xff]
    %v873 = vld [vmem:[#allocation3 + $0x330] sm:$0xff]
    %v874 = vld [vmem:[#allocation3 + $0x338] sm:$0xff]
    %v875 = vld [vmem:[#allocation3 + $0x340] sm:$0xff]
    %v876 = vld [vmem:[#allocation3 + $0x348] sm:$0xff]
    %v877 = vld [vmem:[#allocation3 + $0x350] sm:$0xff]
    %v878 = vld [vmem:[#allocation3 + $0x358] sm:$0xff]
    %v879 = vld [vmem:[#allocation3 + $0x360] sm:$0xff]
    %v880 = vld [vmem:[#allocation3 + $0x368] sm:$0xff]
    %v881 = vld [vmem:[#allocation3 + $0x370] sm:$0xff]
    %v882 = vld [vmem:[#allocation3 + $0x378] sm:$0xff]
    %v883 = vld [vmem:[#allocation3 + $0x380] sm:$0xff]
    %v884 = vld [vmem:[#allocation3 + $0x388] sm:$0xff]
    %v885 = vld [vmem:[#allocation3 + $0x390] sm:$0xff]
    %v886 = vld [vmem:[#allocation3 + $0x398] sm:$0xff]
    %v887 = vld [vmem:[#allocation3 + $0x3a0] sm:$0xff]
    %v888 = vld [vmem:[#allocation3 + $0x3a8] sm:$0xff]
    %v889 = vld [vmem:[#allocation3 + $0x3b0] sm:$0xff]
    %v890 = vld [vmem:[#allocation3 + $0x3b8] sm:$0xff]
    %v891 = vld [vmem:[#allocation3 + $0x3c0] sm:$0xff]
    %v892 = vld [vmem:[#allocation3 + $0x3c8] sm:$0xff]
    %v893 = vld [vmem:[#allocation3 + $0x3d0] sm:$0xff]
    %v894 = vld [vmem:[#allocation3 + $0x3d8] sm:$0xff]
    %v895 = vld [vmem:[#allocation3 + $0x3e0] sm:$0xff]
    %v896 = vld [vmem:[#allocation3 + $0x3e8] sm:$0xff]
    %v897 = vld [vmem:[#allocation3 + $0x3f0] sm:$0xff]
    %v898 = vld [vmem:[#allocation3 + $0x3f8] sm:$0xff]
    %v899 = vld [vmem:[#allocation3 + $0x400] sm:$0xff]
    %v900 = vld [vmem:[#allocation3 + $0x408] sm:$0xff]
    %v901 = vld [vmem:[#allocation3 + $0x410] sm:$0xff]
    %v902 = vld [vmem:[#allocation3 + $0x418] sm:$0xff]
    %v903 = vld [vmem:[#allocation3 + $0x420] sm:$0xff]
    %v904 = vld [vmem:[#allocation3 + $0x428] sm:$0xff]
    %v905 = vld [vmem:[#allocation3 + $0x430] sm:$0xff]
    %v906 = vld [vmem:[#allocation3 + $0x438] sm:$0xff]
    %v907 = vld [vmem:[#allocation3 + $0x440] sm:$0xff]
    %v908 = vld [vmem:[#allocation3 + $0x448] sm:$0xff]
    %v909 = vld [vmem:[#allocation3 + $0x450] sm:$0xff]
    %v910 = vld [vmem:[#allocation3 + $0x458] sm:$0xff]
    %v911 = vld [vmem:[#allocation3 + $0x460] sm:$0xff]
    %v912 = vld [vmem:[#allocation3 + $0x468] sm:$0xff]
    %v913 = vld [vmem:[#allocation3 + $0x470] sm:$0xff]
    %v914 = vld [vmem:[#allocation3 + $0x478] sm:$0xff]
    %v915 = vld [vmem:[#allocation3 + $0x480] sm:$0xff]
    %v916 = vld [vmem:[#allocation3 + $0x488] sm:$0xff]
    %v917 = vld [vmem:[#allocation3 + $0x490] sm:$0xff]
    %v918 = vld [vmem:[#allocation3 + $0x498] sm:$0xff]
    %v919 = vld [vmem:[#allocation3 + $0x4a0] sm:$0xff]
    %v920 = vld [vmem:[#allocation3 + $0x4a8] sm:$0xff]
    %v921 = vld [vmem:[#allocation3 + $0x4b0] sm:$0xff]
    %v922 = vld [vmem:[#allocation3 + $0x4b8] sm:$0xff]
    %v923 = vld [vmem:[#allocation3 + $0x4c0] sm:$0xff]
    %v924 = vld [vmem:[#allocation3 + $0x4c8] sm:$0xff]
    %v925 = vld [vmem:[#allocation3 + $0x4d0] sm:$0xff]
    %v926 = vld [vmem:[#allocation3 + $0x4d8] sm:$0xff]
    %v927 = vld [vmem:[#allocation3 + $0x4e0] sm:$0xff]
    %v928 = vld [vmem:[#allocation3 + $0x4e8] sm:$0xff]
    %v929 = vld [vmem:[#allocation3 + $0x4f0] sm:$0xff]
    %v930 = vld [vmem:[#allocation3 + $0x4f8] sm:$0xff]
    %v931 = vld [vmem:[#allocation3 + $0x500] sm:$0xff]
    %v932 = vld [vmem:[#allocation3 + $0x508] sm:$0xff]
    %v933 = vld [vmem:[#allocation3 + $0x510] sm:$0xff]
    %v934 = vld [vmem:[#allocation3 + $0x518] sm:$0xff]
    %v935 = vld [vmem:[#allocation3 + $0x520] sm:$0xff]
    %v936 = vld [vmem:[#allocation3 + $0x528] sm:$0xff]
    %v937 = vld [vmem:[#allocation3 + $0x530] sm:$0xff]
    %v938 = vld [vmem:[#allocation3 + $0x538] sm:$0xff]
    %v939 = vld [vmem:[#allocation3 + $0x540] sm:$0xff]
    %v940 = vld [vmem:[#allocation3 + $0x548] sm:$0xff]
    %v941 = vld [vmem:[#allocation3 + $0x550] sm:$0xff]
    %v942 = vld [vmem:[#allocation3 + $0x558] sm:$0xff]
    %v943 = vld [vmem:[#allocation3 + $0x560] sm:$0xff]
    %v944 = vld [vmem:[#allocation3 + $0x568] sm:$0xff]
    %v945 = vld [vmem:[#allocation3 + $0x570] sm:$0xff]
    %v946 = vld [vmem:[#allocation3 + $0x578] sm:$0xff]
    %v947 = vld [vmem:[#allocation3 + $0x580] sm:$0xff]
    %v948 = vld [vmem:[#allocation3 + $0x588] sm:$0xff]
    %v949 = vld [vmem:[#allocation3 + $0x590] sm:$0xff]
    %v950 = vld [vmem:[#allocation3 + $0x598] sm:$0xff]
    %v951 = vld [vmem:[#allocation3 + $0x5a0] sm:$0xff]
    %v952 = vld [vmem:[#allocation3 + $0x5a8] sm:$0xff]
    %v953 = vld [vmem:[#allocation3 + $0x5b0] sm:$0xff]
    %v954 = vld [vmem:[#allocation3 + $0x5b8] sm:$0xff]
    %v955 = vld [vmem:[#allocation3 + $0x5c0] sm:$0xff]
    %v956 = vld [vmem:[#allocation3 + $0x5c8] sm:$0xff]
    %v957 = vld [vmem:[#allocation3 + $0x5d0] sm:$0xff]
    %v958 = vld [vmem:[#allocation3 + $0x5d8] sm:$0xff]
    %v959 = vld [vmem:[#allocation3 + $0x5e0] sm:$0xff]
    %v960 = vld [vmem:[#allocation3 + $0x5e8] sm:$0xff]
    %v961 = vld [vmem:[#allocation3 + $0x5f0] sm:$0xff]
    %v962 = vld [vmem:[#allocation3 + $0x5f8] sm:$0xff]
    %v963 = vld [vmem:[#allocation3 + $0x600] sm:$0xff]
    %v964 = vld [vmem:[#allocation3 + $0x608] sm:$0xff]
    %v965 = vld [vmem:[#allocation3 + $0x610] sm:$0xff]
    %v966 = vld [vmem:[#allocation3 + $0x618] sm:$0xff]
    %v967 = vld [vmem:[#allocation3 + $0x620] sm:$0xff]
    %v968 = vld [vmem:[#allocation3 + $0x628] sm:$0xff]
    %v969 = vld [vmem:[#allocation3 + $0x630] sm:$0xff]
    %v970 = vld [vmem:[#allocation3 + $0x638] sm:$0xff]
    %v971 = vld [vmem:[#allocation3 + $0x640] sm:$0xff]
    %v972 = vld [vmem:[#allocation3 + $0x648] sm:$0xff]
    %v973 = vld [vmem:[#allocation3 + $0x650] sm:$0xff]
    %v974 = vld [vmem:[#allocation3 + $0x658] sm:$0xff]
    %v975 = vld [vmem:[#allocation3 + $0x660] sm:$0xff]
    %v976 = vld [vmem:[#allocation3 + $0x668] sm:$0xff]
    %v977 = vld [vmem:[#allocation3 + $0x670] sm:$0xff]
    %v978 = vld [vmem:[#allocation3 + $0x678] sm:$0xff]
    %v979 = vld [vmem:[#allocation3 + $0x680] sm:$0xff]
    %v980 = vld [vmem:[#allocation3 + $0x688] sm:$0xff]
    %v981 = vld [vmem:[#allocation3 + $0x690] sm:$0xff]
    %v982 = vld [vmem:[#allocation3 + $0x698] sm:$0xff]
    %v983 = vld [vmem:[#allocation3 + $0x6a0] sm:$0xff]
    %v984 = vld [vmem:[#allocation3 + $0x6a8] sm:$0xff]
    %v985 = vld [vmem:[#allocation3 + $0x6b0] sm:$0xff]
    %v986 = vld [vmem:[#allocation3 + $0x6b8] sm:$0xff]
    %v987 = vld [vmem:[#allocation3 + $0x6c0] sm:$0xff]
    %v988 = vld [vmem:[#allocation3 + $0x6c8] sm:$0xff]
    %v989 = vld [vmem:[#allocation3 + $0x6d0] sm:$0xff]
    %v990 = vld [vmem:[#allocation3 + $0x6d8] sm:$0xff]
    %v991 = vld [vmem:[#allocation3 + $0x6e0] sm:$0xff]
    %v992 = vld [vmem:[#allocation3 + $0x6e8] sm:$0xff]
    %v993 = vld [vmem:[#allocation3 + $0x6f0] sm:$0xff]
    %v994 = vld [vmem:[#allocation3 + $0x6f8] sm:$0xff]
    %v995 = vld [vmem:[#allocation3 + $0x700] sm:$0xff]
    %v996 = vld [vmem:[#allocation3 + $0x708] sm:$0xff]
    %v997 = vld [vmem:[#allocation3 + $0x710] sm:$0xff]
    %v998 = vld [vmem:[#allocation3 + $0x718] sm:$0xff]
    %v999 = vld [vmem:[#allocation3 + $0x720] sm:$0xff]
    %v1000 = vld [vmem:[#allocation3 + $0x728] sm:$0xff]
    %v1001 = vld [vmem:[#allocation3 + $0x730] sm:$0xff]
    %v1002 = vld [vmem:[#allocation3 + $0x738] sm:$0xff]
    %v1003 = vld [vmem:[#allocation3 + $0x740] sm:$0xff]
    %v1004 = vld [vmem:[#allocation3 + $0x748] sm:$0xff]
    %v1005 = vld [vmem:[#allocation3 + $0x750] sm:$0xff]
    %v1006 = vld [vmem:[#allocation3 + $0x758] sm:$0xff]
    %v1007 = vld [vmem:[#allocation3 + $0x760] sm:$0xff]
    %v1008 = vld [vmem:[#allocation3 + $0x768] sm:$0xff]
    %v1009 = vld [vmem:[#allocation3 + $0x770] sm:$0xff]
    %v1010 = vld [vmem:[#allocation3 + $0x778] sm:$0xff]
    %v1011 = vld [vmem:[#allocation3 + $0x780] sm:$0xff]
    %v1012 = vld [vmem:[#allocation3 + $0x788] sm:$0xff]
    %v1013 = vld [vmem:[#allocation3 + $0x790] sm:$0xff]
    %v1014 = vld [vmem:[#allocation3 + $0x798] sm:$0xff]
    %v1015 = vld [vmem:[#allocation3 + $0x7a0] sm:$0xff]
    %v1016 = vld [vmem:[#allocation3 + $0x7a8] sm:$0xff]
    %v1017 = vld [vmem:[#allocation3 + $0x7b0] sm:$0xff]
    %v1018 = vld [vmem:[#allocation3 + $0x7b8] sm:$0xff]
    %v1019 = vld [vmem:[#allocation3 + $0x7c0] sm:$0xff]
    %v1020 = vld [vmem:[#allocation3 + $0x7c8] sm:$0xff]
    %v1021 = vld [vmem:[#allocation3 + $0x7d0] sm:$0xff]
    %v1022 = vld [vmem:[#allocation3 + $0x7d8] sm:$0xff]
    %v1023 = vld [vmem:[#allocation3 + $0x7e0] sm:$0xff]
    %v1024 = vld [vmem:[#allocation3 + $0x7e8] sm:$0xff]
    %v1025 = vld [vmem:[#allocation3 + $0x7f0] sm:$0xff]
    %v1026 = vld [vmem:[#allocation3 + $0x7f8] sm:$0xff]
    %v1027 = vld [vmem:[#allocation3 + $0x800] sm:$0xff]
    %v1028 = vld [vmem:[#allocation3 + $0x808] sm:$0xff]
    %v1029 = vld [vmem:[#allocation3 + $0x810] sm:$0xff]
    %v1030 = vld [vmem:[#allocation3 + $0x818] sm:$0xff]
    %v1031 = vld [vmem:[#allocation3 + $0x820] sm:$0xff]
    %v1032 = vld [vmem:[#allocation3 + $0x828] sm:$0xff]
    %v1033 = vld [vmem:[#allocation3 + $0x830] sm:$0xff]
    %v1034 = vld [vmem:[#allocation3 + $0x838] sm:$0xff]
    %v1035 = vld [vmem:[#allocation3 + $0x840] sm:$0xff]
    %v1036 = vld [vmem:[#allocation3 + $0x848] sm:$0xff]
    %v1037 = vld [vmem:[#allocation3 + $0x850] sm:$0xff]
    %v1038 = vld [vmem:[#allocation3 + $0x858] sm:$0xff]
    %v1039 = vld [vmem:[#allocation3 + $0x860] sm:$0xff]
    %v1040 = vld [vmem:[#allocation3 + $0x868] sm:$0xff]
    %v1041 = vld [vmem:[#allocation3 + $0x870] sm:$0xff]
    %v1042 = vld [vmem:[#allocation3 + $0x878] sm:$0xff]
    %v1043 = vld [vmem:[#allocation3 + $0x880] sm:$0xff]
    %v1044 = vld [vmem:[#allocation3 + $0x888] sm:$0xff]
    %v1045 = vld [vmem:[#allocation3 + $0x890] sm:$0xff]
    %v1046 = vld [vmem:[#allocation3 + $0x898] sm:$0xff]
    %v1047 = vld [vmem:[#allocation3 + $0x8a0] sm:$0xff]
    %v1048 = vld [vmem:[#allocation3 + $0x8a8] sm:$0xff]
    %v1049 = vld [vmem:[#allocation3 + $0x8b0] sm:$0xff]
    %v1050 = vld [vmem:[#allocation3 + $0x8b8] sm:$0xff]
    %v1051 = vld [vmem:[#allocation3 + $0x8c0] sm:$0xff]
    %v1052 = vld [vmem:[#allocation3 + $0x8c8] sm:$0xff]
    %v1053 = vld [vmem:[#allocation3 + $0x8d0] sm:$0xff]
    %v1054 = vld [vmem:[#allocation3 + $0x8d8] sm:$0xff]
    %v1055 = vld [vmem:[#allocation3 + $0x8e0] sm:$0xff]
    %v1056 = vld [vmem:[#allocation3 + $0x8e8] sm:$0xff]
    %v1057 = vld [vmem:[#allocation3 + $0x8f0] sm:$0xff]
    %v1058 = vld [vmem:[#allocation3 + $0x8f8] sm:$0xff]
    %v1059 = vld [vmem:[#allocation3 + $0x900] sm:$0xff]
    %v1060 = vld [vmem:[#allocation3 + $0x908] sm:$0xff]
    %v1061 = vld [vmem:[#allocation3 + $0x910] sm:$0xff]
    %v1062 = vld [vmem:[#allocation3 + $0x918] sm:$0xff]
    %v1063 = vld [vmem:[#allocation3 + $0x920] sm:$0xff]
    %v1064 = vld [vmem:[#allocation3 + $0x928] sm:$0xff]
    %v1065 = vld [vmem:[#allocation3 + $0x930] sm:$0xff]
    %v1066 = vld [vmem:[#allocation3 + $0x938] sm:$0xff]
    %v1067 = vld [vmem:[#allocation3 + $0x940] sm:$0xff]
    %v1068 = vld [vmem:[#allocation3 + $0x948] sm:$0xff]
    %v1069 = vld [vmem:[#allocation3 + $0x950] sm:$0xff]
    %v1070 = vld [vmem:[#allocation3 + $0x958] sm:$0xff]
    %v1071 = vld [vmem:[#allocation3 + $0x960] sm:$0xff]
    %v1072 = vld [vmem:[#allocation3 + $0x968] sm:$0xff]
    %v1073 = vld [vmem:[#allocation3 + $0x970] sm:$0xff]
    %v1074 = vld [vmem:[#allocation3 + $0x978] sm:$0xff]
    %v1075 = vld [vmem:[#allocation3 + $0x980] sm:$0xff]
    %v1076 = vld [vmem:[#allocation3 + $0x988] sm:$0xff]
    %v1077 = vld [vmem:[#allocation3 + $0x990] sm:$0xff]
    %v1078 = vld [vmem:[#allocation3 + $0x998] sm:$0xff]
    %v1079 = vld [vmem:[#allocation3 + $0x9a0] sm:$0xff]
    %v1080 = vld [vmem:[#allocation3 + $0x9a8] sm:$0xff]
    %v1081 = vld [vmem:[#allocation3 + $0x9b0] sm:$0xff]
    %v1082 = vld [vmem:[#allocation3 + $0x9b8] sm:$0xff]
    %v1083 = vld [vmem:[#allocation3 + $0x9c0] sm:$0xff]
    %v1084 = vld [vmem:[#allocation3 + $0x9c8] sm:$0xff]
    %v1085 = vld [vmem:[#allocation3 + $0x9d0] sm:$0xff]
    %v1086 = vld [vmem:[#allocation3 + $0x9d8] sm:$0xff]
    %v1087 = vld [vmem:[#allocation3 + $0x9e0] sm:$0xff]
    %v1088 = vld [vmem:[#allocation3 + $0x9e8] sm:$0xff]
    %v1089 = vld [vmem:[#allocation3 + $0x9f0] sm:$0xff]
    %v1090 = vld [vmem:[#allocation3 + $0x9f8] sm:$0xff]
    %v1091 = vld [vmem:[#allocation3 + $0xa00] sm:$0xff]
    %v1092 = vld [vmem:[#allocation3 + $0xa08] sm:$0xff]
    %v1093 = vld [vmem:[#allocation3 + $0xa10] sm:$0xff]
    %v1094 = vld [vmem:[#allocation3 + $0xa18] sm:$0xff]
    %v1095 = vld [vmem:[#allocation3 + $0xa20] sm:$0xff]
    %v1096 = vld [vmem:[#allocation3 + $0xa28] sm:$0xff]
    %v1097 = vld [vmem:[#allocation3 + $0xa30] sm:$0xff]
    %v1098 = vld [vmem:[#allocation3 + $0xa38] sm:$0xff]
    %v1099 = vld [vmem:[#allocation3 + $0xa40] sm:$0xff]
    %v1100 = vld [vmem:[#allocation3 + $0xa48] sm:$0xff]
    %v1101 = vld [vmem:[#allocation3 + $0xa50] sm:$0xff]
    %v1102 = vld [vmem:[#allocation3 + $0xa58] sm:$0xff]
    %v1103 = vld [vmem:[#allocation3 + $0xa60] sm:$0xff]
    %v1104 = vld [vmem:[#allocation3 + $0xa68] sm:$0xff]
    %v1105 = vld [vmem:[#allocation3 + $0xa70] sm:$0xff]
    %v1106 = vld [vmem:[#allocation3 + $0xa78] sm:$0xff]
    %v1107 = vld [vmem:[#allocation3 + $0xa80] sm:$0xff]
    %v1108 = vld [vmem:[#allocation3 + $0xa88] sm:$0xff]
    %v1109 = vld [vmem:[#allocation3 + $0xa90] sm:$0xff]
    %v1110 = vld [vmem:[#allocation3 + $0xa98] sm:$0xff]
    %v1111 = vld [vmem:[#allocation3 + $0xaa0] sm:$0xff]
    %v1112 = vld [vmem:[#allocation3 + $0xaa8] sm:$0xff]
    %v1113 = vld [vmem:[#allocation3 + $0xab0] sm:$0xff]
    %v1114 = vld [vmem:[#allocation3 + $0xab8] sm:$0xff]
    %v1115 = vld [vmem:[#allocation3 + $0xac0] sm:$0xff]
    %v1116 = vld [vmem:[#allocation3 + $0xac8] sm:$0xff]
    %v1117 = vld [vmem:[#allocation3 + $0xad0] sm:$0xff]
    %v1118 = vld [vmem:[#allocation3 + $0xad8] sm:$0xff]
    %v1119 = vld [vmem:[#allocation3 + $0xae0] sm:$0xff]
    %v1120 = vld [vmem:[#allocation3 + $0xae8] sm:$0xff]
    %v1121 = vld [vmem:[#allocation3 + $0xaf0] sm:$0xff]
    %v1122 = vld [vmem:[#allocation3 + $0xaf8] sm:$0xff]
    %v1123 = vld [vmem:[#allocation3 + $0xb00] sm:$0xff]
    %v1124 = vld [vmem:[#allocation3 + $0xb08] sm:$0xff]
    %v1125 = vld [vmem:[#allocation3 + $0xb10] sm:$0xff]
    %v1126 = vld [vmem:[#allocation3 + $0xb18] sm:$0xff]
    %v1127 = vld [vmem:[#allocation3 + $0xb20] sm:$0xff]
    %v1128 = vld [vmem:[#allocation3 + $0xb28] sm:$0xff]
    %v1129 = vld [vmem:[#allocation3 + $0xb30] sm:$0xff]
    %v1130 = vld [vmem:[#allocation3 + $0xb38] sm:$0xff]
    %v1131 = vld [vmem:[#allocation3 + $0xb40] sm:$0xff]
    %v1132 = vld [vmem:[#allocation3 + $0xb48] sm:$0xff]
    %v1133 = vld [vmem:[#allocation3 + $0xb50] sm:$0xff]
    %v1134 = vld [vmem:[#allocation3 + $0xb58] sm:$0xff]
    %v1135 = vld [vmem:[#allocation3 + $0xb60] sm:$0xff]
    %v1136 = vld [vmem:[#allocation3 + $0xb68] sm:$0xff]
    %v1137 = vld [vmem:[#allocation3 + $0xb70] sm:$0xff]
    %v1138 = vld [vmem:[#allocation3 + $0xb78] sm:$0xff]
    %v1139 = vld [vmem:[#allocation3 + $0xb80] sm:$0xff]
    %v1140 = vld [vmem:[#allocation3 + $0xb88] sm:$0xff]
    %v1141 = vld [vmem:[#allocation3 + $0xb90] sm:$0xff]
    %v1142 = vld [vmem:[#allocation3 + $0xb98] sm:$0xff]
    %v1143 = vld [vmem:[#allocation3 + $0xba0] sm:$0xff]
    %v1144 = vld [vmem:[#allocation3 + $0xba8] sm:$0xff]
    %v1145 = vld [vmem:[#allocation3 + $0xbb0] sm:$0xff]
    %v1146 = vld [vmem:[#allocation3 + $0xbb8] sm:$0xff]
    %v1147 = vld [vmem:[#allocation3 + $0xbc0] sm:$0xff]
    %v1148 = vld [vmem:[#allocation3 + $0xbc8] sm:$0xff]
    %v1149 = vld [vmem:[#allocation3 + $0xbd0] sm:$0xff]
    %v1150 = vld [vmem:[#allocation3 + $0xbd8] sm:$0xff]
    %v1151 = vld [vmem:[#allocation3 + $0xbe0] sm:$0xff]
    %v1152 = vld [vmem:[#allocation3 + $0xbe8] sm:$0xff]
    %v1153 = vld [vmem:[#allocation3 + $0xbf0] sm:$0xff]
    %v1154 = vld [vmem:[#allocation3 + $0xbf8] sm:$0xff]
    %v1155 = vld [vmem:[#allocation3 + $0xc00] sm:$0xff]
    %v1156 = vld [vmem:[#allocation3 + $0xc08] sm:$0xff]
    %v1157 = vld [vmem:[#allocation3 + $0xc10] sm:$0xff]
    %v1158 = vld [vmem:[#allocation3 + $0xc18] sm:$0xff]
    %v1159 = vld [vmem:[#allocation3 + $0xc20] sm:$0xff]
    %v1160 = vld [vmem:[#allocation3 + $0xc28] sm:$0xff]
    %v1161 = vld [vmem:[#allocation3 + $0xc30] sm:$0xff]
    %v1162 = vld [vmem:[#allocation3 + $0xc38] sm:$0xff]
    %v1163 = vld [vmem:[#allocation3 + $0xc40] sm:$0xff]
    %v1164 = vld [vmem:[#allocation3 + $0xc48] sm:$0xff]
    %v1165 = vld [vmem:[#allocation3 + $0xc50] sm:$0xff]
    %v1166 = vld [vmem:[#allocation3 + $0xc58] sm:$0xff]
    %v1167 = vld [vmem:[#allocation3 + $0xc60] sm:$0xff]
    %v1168 = vld [vmem:[#allocation3 + $0xc68] sm:$0xff]
    %v1169 = vld [vmem:[#allocation3 + $0xc70] sm:$0xff]
    %v1170 = vld [vmem:[#allocation3 + $0xc78] sm:$0xff]
    %v1171 = vld [vmem:[#allocation3 + $0xc80] sm:$0xff]
    %v1172 = vld [vmem:[#allocation3 + $0xc88] sm:$0xff]
    %v1173 = vld [vmem:[#allocation3 + $0xc90] sm:$0xff]
    %v1174 = vld [vmem:[#allocation3 + $0xc98] sm:$0xff]
    %v1175 = vld [vmem:[#allocation3 + $0xca0] sm:$0xff]
    %v1176 = vld [vmem:[#allocation3 + $0xca8] sm:$0xff]
    %v1177 = vld [vmem:[#allocation3 + $0xcb0] sm:$0xff]
    %v1178 = vld [vmem:[#allocation3 + $0xcb8] sm:$0xff]
    %v1179 = vld [vmem:[#allocation3 + $0xcc0] sm:$0xff]
    %v1180 = vld [vmem:[#allocation3 + $0xcc8] sm:$0xff]
    %v1181 = vld [vmem:[#allocation3 + $0xcd0] sm:$0xff]
    %v1182 = vld [vmem:[#allocation3 + $0xcd8] sm:$0xff]
    %v1183 = vld [vmem:[#allocation3 + $0xce0] sm:$0xff]
    %v1184 = vld [vmem:[#allocation3 + $0xce8] sm:$0xff]
    %v1185 = vld [vmem:[#allocation3 + $0xcf0] sm:$0xff]
    %v1186 = vld [vmem:[#allocation3 + $0xcf8] sm:$0xff]
    %v1187 = vld [vmem:[#allocation3 + $0xd00] sm:$0xff]
    %v1188 = vld [vmem:[#allocation3 + $0xd08] sm:$0xff]
    %v1189 = vld [vmem:[#allocation3 + $0xd10] sm:$0xff]
    %v1190 = vld [vmem:[#allocation3 + $0xd18] sm:$0xff]
    %v1191 = vld [vmem:[#allocation3 + $0xd20] sm:$0xff]
    %v1192 = vld [vmem:[#allocation3 + $0xd28] sm:$0xff]
    %v1193 = vld [vmem:[#allocation3 + $0xd30] sm:$0xff]
    %v1194 = vld [vmem:[#allocation3 + $0xd38] sm:$0xff]
    %v1195 = vld [vmem:[#allocation3 + $0xd40] sm:$0xff]
    %v1196 = vld [vmem:[#allocation3 + $0xd48] sm:$0xff]
    %v1197 = vld [vmem:[#allocation3 + $0xd50] sm:$0xff]
    %v1198 = vld [vmem:[#allocation3 + $0xd58] sm:$0xff]
    %v1199 = vld [vmem:[#allocation3 + $0xd60] sm:$0xff]
    %v1200 = vld [vmem:[#allocation3 + $0xd68] sm:$0xff]
    %v1201 = vld [vmem:[#allocation3 + $0xd70] sm:$0xff]
    %v1202 = vld [vmem:[#allocation3 + $0xd78] sm:$0xff]
    %v1203 = vld [vmem:[#allocation3 + $0xd80] sm:$0xff]
    %v1204 = vld [vmem:[#allocation3 + $0xd88] sm:$0xff]
    %v1205 = vld [vmem:[#allocation3 + $0xd90] sm:$0xff]
    %v1206 = vld [vmem:[#allocation3 + $0xd98] sm:$0xff]
    %v1207 = vld [vmem:[#allocation3 + $0xda0] sm:$0xff]
    %v1208 = vld [vmem:[#allocation3 + $0xda8] sm:$0xff]
    %v1209 = vld [vmem:[#allocation3 + $0xdb0] sm:$0xff]
    %v1210 = vld [vmem:[#allocation3 + $0xdb8] sm:$0xff]
    %v1211 = vld [vmem:[#allocation3 + $0xdc0] sm:$0xff]
    %v1212 = vld [vmem:[#allocation3 + $0xdc8] sm:$0xff]
    %v1213 = vld [vmem:[#allocation3 + $0xdd0] sm:$0xff]
    %v1214 = vld [vmem:[#allocation3 + $0xdd8] sm:$0xff]
    %v1215 = vld [vmem:[#allocation3 + $0xde0] sm:$0xff]
    %v1216 = vld [vmem:[#allocation3 + $0xde8] sm:$0xff]
    %v1217 = vld [vmem:[#allocation3 + $0xdf0] sm:$0xff]
    %v1218 = vld [vmem:[#allocation3 + $0xdf8] sm:$0xff]
    %v1219 = vld [vmem:[#allocation3 + $0xe00] sm:$0xff]
    %v1220 = vld [vmem:[#allocation3 + $0xe08] sm:$0xff]
    %v1221 = vld [vmem:[#allocation3 + $0xe10] sm:$0xff]
    %v1222 = vld [vmem:[#allocation3 + $0xe18] sm:$0xff]
    %v1223 = vld [vmem:[#allocation3 + $0xe20] sm:$0xff]
    %v1224 = vld [vmem:[#allocation3 + $0xe28] sm:$0xff]
    %v1225 = vld [vmem:[#allocation3 + $0xe30] sm:$0xff]
    %v1226 = vld [vmem:[#allocation3 + $0xe38] sm:$0xff]
    %v1227 = vld [vmem:[#allocation3 + $0xe40] sm:$0xff]
    %v1228 = vld [vmem:[#allocation3 + $0xe48] sm:$0xff]
    %v1229 = vld [vmem:[#allocation3 + $0xe50] sm:$0xff]
    %v1230 = vld [vmem:[#allocation3 + $0xe58] sm:$0xff]
    %v1231 = vld [vmem:[#allocation3 + $0xe60] sm:$0xff]
    %v1232 = vld [vmem:[#allocation3 + $0xe68] sm:$0xff]
    %v1233 = vld [vmem:[#allocation3 + $0xe70] sm:$0xff]
    %v1234 = vld [vmem:[#allocation3 + $0xe78] sm:$0xff]
    %v1235 = vld [vmem:[#allocation3 + $0xe80] sm:$0xff]
    %v1236 = vld [vmem:[#allocation3 + $0xe88] sm:$0xff]
    %v1237 = vld [vmem:[#allocation3 + $0xe90] sm:$0xff]
    %v1238 = vld [vmem:[#allocation3 + $0xe98] sm:$0xff]
    %v1239 = vld [vmem:[#allocation3 + $0xea0] sm:$0xff]
    %v1240 = vld [vmem:[#allocation3 + $0xea8] sm:$0xff]
    %v1241 = vld [vmem:[#allocation3 + $0xeb0] sm:$0xff]
    %v1242 = vld [vmem:[#allocation3 + $0xeb8] sm:$0xff]
    %v1243 = vld [vmem:[#allocation3 + $0xec0] sm:$0xff]
    %v1244 = vld [vmem:[#allocation3 + $0xec8] sm:$0xff]
    %v1245 = vld [vmem:[#allocation3 + $0xed0] sm:$0xff]
    %v1246 = vld [vmem:[#allocation3 + $0xed8] sm:$0xff]
    %v1247 = vld [vmem:[#allocation3 + $0xee0] sm:$0xff]
    %v1248 = vld [vmem:[#allocation3 + $0xee8] sm:$0xff]
    %v1249 = vld [vmem:[#allocation3 + $0xef0] sm:$0xff]
    %v1250 = vld [vmem:[#allocation3 + $0xef8] sm:$0xff]
    %v1251 = vld [vmem:[#allocation3 + $0xf00] sm:$0xff]
    %v1252 = vld [vmem:[#allocation3 + $0xf08] sm:$0xff]
    %v1253 = vld [vmem:[#allocation3 + $0xf10] sm:$0xff]
    %v1254 = vld [vmem:[#allocation3 + $0xf18] sm:$0xff]
    %v1255 = vld [vmem:[#allocation3 + $0xf20] sm:$0xff]
    %v1256 = vld [vmem:[#allocation3 + $0xf28] sm:$0xff]
    %v1257 = vld [vmem:[#allocation3 + $0xf30] sm:$0xff]
    %v1258 = vld [vmem:[#allocation3 + $0xf38] sm:$0xff]
    %v1259 = vld [vmem:[#allocation3 + $0xf40] sm:$0xff]
    %v1260 = vld [vmem:[#allocation3 + $0xf48] sm:$0xff]
    %v1261 = vld [vmem:[#allocation3 + $0xf50] sm:$0xff]
    %v1262 = vld [vmem:[#allocation3 + $0xf58] sm:$0xff]
    %v1263 = vld [vmem:[#allocation3 + $0xf60] sm:$0xff]
    %v1264 = vld [vmem:[#allocation3 + $0xf68] sm:$0xff]
    %v1265 = vld [vmem:[#allocation3 + $0xf70] sm:$0xff]
    %v1266 = vld [vmem:[#allocation3 + $0xf78] sm:$0xff]
    %v1267 = vld [vmem:[#allocation3 + $0xf80] sm:$0xff]
    %v1268 = vld [vmem:[#allocation3 + $0xf88] sm:$0xff]
    %v1269 = vld [vmem:[#allocation3 + $0xf90] sm:$0xff]
    %v1270 = vld [vmem:[#allocation3 + $0xf98] sm:$0xff]
    %v1271 = vld [vmem:[#allocation3 + $0xfa0] sm:$0xff]
    %v1272 = vld [vmem:[#allocation3 + $0xfa8] sm:$0xff]
    %v1273 = vld [vmem:[#allocation3 + $0xfb0] sm:$0xff]
    %v1274 = vld [vmem:[#allocation3 + $0xfb8] sm:$0xff]
    %v1275 = vld [vmem:[#allocation3 + $0xfc0] sm:$0xff]
    %v1276 = vld [vmem:[#allocation3 + $0xfc8] sm:$0xff]
    %v1277 = vld [vmem:[#allocation3 + $0xfd0] sm:$0xff]
    %v1278 = vld [vmem:[#allocation3 + $0xfd8] sm:$0xff]
    %v1279 = vld [vmem:[#allocation3 + $0xfe0] sm:$0xff]
    %v1280 = vld [vmem:[#allocation3 + $0xfe8] sm:$0xff]
    %v1281 = vld [vmem:[#allocation3 + $0xff0] sm:$0xff]
    %v1282 = vld [vmem:[#allocation3 + $0xff8] sm:$0xff]
    %v1283 = vld [vmem:[#allocation3 + $0x1000] sm:$0xff]
    %v1284 = vld [vmem:[#allocation3 + $0x1008] sm:$0xff]
    %v1285 = vld [vmem:[#allocation3 + $0x1010] sm:$0xff]
    %v1286 = vld [vmem:[#allocation3 + $0x1018] sm:$0xff]
    %v1287 = vld [vmem:[#allocation3 + $0x1020] sm:$0xff]
    %v1288 = vld [vmem:[#allocation3 + $0x1028] sm:$0xff]
    %v1289 = vld [vmem:[#allocation3 + $0x1030] sm:$0xff]
    %v1290 = vld [vmem:[#allocation3 + $0x1038] sm:$0xff]
    %v1291 = vld [vmem:[#allocation3 + $0x1040] sm:$0xff]
    %v1292 = vld [vmem:[#allocation3 + $0x1048] sm:$0xff]
    %v1293 = vld [vmem:[#allocation3 + $0x1050] sm:$0xff]
    %v1294 = vld [vmem:[#allocation3 + $0x1058] sm:$0xff]
    %v1295 = vld [vmem:[#allocation3 + $0x1060] sm:$0xff]
    %v1296 = vld [vmem:[#allocation3 + $0x1068] sm:$0xff]
    %v1297 = vld [vmem:[#allocation3 + $0x1070] sm:$0xff]
    %v1298 = vld [vmem:[#allocation3 + $0x1078] sm:$0xff]
    %v1299 = vld [vmem:[#allocation3 + $0x1080] sm:$0xff]
    %v1300 = vld [vmem:[#allocation3 + $0x1088] sm:$0xff]
    %v1301 = vld [vmem:[#allocation3 + $0x1090] sm:$0xff]
    %v1302 = vld [vmem:[#allocation3 + $0x1098] sm:$0xff]
    %v1303 = vld [vmem:[#allocation3 + $0x10a0] sm:$0xff]
    %v1304 = vld [vmem:[#allocation3 + $0x10a8] sm:$0xff]
    %v1305 = vld [vmem:[#allocation3 + $0x10b0] sm:$0xff]
    %v1306 = vld [vmem:[#allocation3 + $0x10b8] sm:$0xff]
    %v1307 = vld [vmem:[#allocation3 + $0x10c0] sm:$0xff]
    %v1308 = vld [vmem:[#allocation3 + $0x10c8] sm:$0xff]
    %v1309 = vld [vmem:[#allocation3 + $0x10d0] sm:$0xff]
    %v1310 = vld [vmem:[#allocation3 + $0x10d8] sm:$0xff]
    %v1311 = vld [vmem:[#allocation3 + $0x10e0] sm:$0xff]
    %v1312 = vld [vmem:[#allocation3 + $0x10e8] sm:$0xff]
    %v1313 = vld [vmem:[#allocation3 + $0x10f0] sm:$0xff]
    %v1314 = vld [vmem:[#allocation3 + $0x10f8] sm:$0xff]
    %v1315 = vld [vmem:[#allocation3 + $0x1100] sm:$0xff]
    %v1316 = vld [vmem:[#allocation3 + $0x1108] sm:$0xff]
    %v1317 = vld [vmem:[#allocation3 + $0x1110] sm:$0xff]
    %v1318 = vld [vmem:[#allocation3 + $0x1118] sm:$0xff]
    %v1319 = vld [vmem:[#allocation3 + $0x1120] sm:$0xff]
    %v1320 = vld [vmem:[#allocation3 + $0x1128] sm:$0xff]
    %v1321 = vld [vmem:[#allocation3 + $0x1130] sm:$0xff]
    %v1322 = vld [vmem:[#allocation3 + $0x1138] sm:$0xff]
    %v1323 = vld [vmem:[#allocation3 + $0x1140] sm:$0xff]
    %v1324 = vld [vmem:[#allocation3 + $0x1148] sm:$0xff]
    %v1325 = vld [vmem:[#allocation3 + $0x1150] sm:$0xff]
    %v1326 = vld [vmem:[#allocation3 + $0x1158] sm:$0xff]
    %v1327 = vld [vmem:[#allocation3 + $0x1160] sm:$0xff]
    %v1328 = vld [vmem:[#allocation3 + $0x1168] sm:$0xff]
    %v1329 = vld [vmem:[#allocation3 + $0x1170] sm:$0xff]
    %v1330 = vld [vmem:[#allocation3 + $0x1178] sm:$0xff]
    %v1331 = vld [vmem:[#allocation3 + $0x1180] sm:$0xff]
    %v1332 = vld [vmem:[#allocation3 + $0x1188] sm:$0xff]
    %v1333 = vld [vmem:[#allocation3 + $0x1190] sm:$0xff]
    %v1334 = vld [vmem:[#allocation3 + $0x1198] sm:$0xff]
    %v1335 = vld [vmem:[#allocation3 + $0x11a0] sm:$0xff]
    %v1336 = vld [vmem:[#allocation3 + $0x11a8] sm:$0xff]
    %v1337 = vld [vmem:[#allocation3 + $0x11b0] sm:$0xff]
    %v1338 = vld [vmem:[#allocation3 + $0x11b8] sm:$0xff]
    %v1339 = vld [vmem:[#allocation3 + $0x11c0] sm:$0xff]
    %v1340 = vld [vmem:[#allocation3 + $0x11c8] sm:$0xff]
    %v1341 = vld [vmem:[#allocation3 + $0x11d0] sm:$0xff]
    %v1342 = vld [vmem:[#allocation3 + $0x11d8] sm:$0xff]
    %v1343 = vld [vmem:[#allocation3 + $0x11e0] sm:$0xff]
    %v1344 = vld [vmem:[#allocation3 + $0x11e8] sm:$0xff]
    %v1345 = vld [vmem:[#allocation3 + $0x11f0] sm:$0xff]
    %v1346 = vld [vmem:[#allocation3 + $0x11f8] sm:$0xff]
    %v1347 = vld [vmem:[#allocation3 + $0x1200] sm:$0xff]
    %v1348 = vld [vmem:[#allocation3 + $0x1208] sm:$0xff]
    %v1349 = vld [vmem:[#allocation3 + $0x1210] sm:$0xff]
    %v1350 = vld [vmem:[#allocation3 + $0x1218] sm:$0xff]
    %v1351 = vld [vmem:[#allocation3 + $0x1220] sm:$0xff]
    %v1352 = vld [vmem:[#allocation3 + $0x1228] sm:$0xff]
    %v1353 = vld [vmem:[#allocation3 + $0x1230] sm:$0xff]
    %v1354 = vld [vmem:[#allocation3 + $0x1238] sm:$0xff]
    %v1355 = vld [vmem:[#allocation3 + $0x1240] sm:$0xff]
    %v1356 = vld [vmem:[#allocation3 + $0x1248] sm:$0xff]
    %v1357 = vld [vmem:[#allocation3 + $0x1250] sm:$0xff]
    %v1358 = vld [vmem:[#allocation3 + $0x1258] sm:$0xff]
    %v1359 = vld [vmem:[#allocation3 + $0x1260] sm:$0xff]
    %v1360 = vld [vmem:[#allocation3 + $0x1268] sm:$0xff]
    %v1361 = vld [vmem:[#allocation3 + $0x1270] sm:$0xff]
    %v1362 = vld [vmem:[#allocation3 + $0x1278] sm:$0xff]
    %v1363 = vld [vmem:[#allocation3 + $0x1280] sm:$0xff]
    %v1364 = vld [vmem:[#allocation3 + $0x1288] sm:$0xff]
    %v1365 = vld [vmem:[#allocation3 + $0x1290] sm:$0xff]
    %v1366 = vld [vmem:[#allocation3 + $0x1298] sm:$0xff]
    %v1367 = vld [vmem:[#allocation3 + $0x12a0] sm:$0xff]
    %v1368 = vld [vmem:[#allocation3 + $0x12a8] sm:$0xff]
    %v1369 = vld [vmem:[#allocation3 + $0x12b0] sm:$0xff]
    %v1370 = vld [vmem:[#allocation3 + $0x12b8] sm:$0xff]
    %v1371 = vld [vmem:[#allocation3 + $0x12c0] sm:$0xff]
    %v1372 = vld [vmem:[#allocation3 + $0x12c8] sm:$0xff]
    %v1373 = vld [vmem:[#allocation3 + $0x12d0] sm:$0xff]
    %v1374 = vld [vmem:[#allocation3 + $0x12d8] sm:$0xff]
    %v1375 = vld [vmem:[#allocation3 + $0x12e0] sm:$0xff]
    %v1376 = vld [vmem:[#allocation3 + $0x12e8] sm:$0xff]
    %v1377 = vld [vmem:[#allocation3 + $0x12f0] sm:$0xff]
    %v1378 = vld [vmem:[#allocation3 + $0x12f8] sm:$0xff]
    %v1379 = vld [vmem:[#allocation3 + $0x1300] sm:$0xff]
    %v1380 = vld [vmem:[#allocation3 + $0x1308] sm:$0xff]
    %v1381 = vld [vmem:[#allocation3 + $0x1310] sm:$0xff]
    %v1382 = vld [vmem:[#allocation3 + $0x1318] sm:$0xff]
    %v1383 = vld [vmem:[#allocation3 + $0x1320] sm:$0xff]
    %v1384 = vld [vmem:[#allocation3 + $0x1328] sm:$0xff]
    %v1385 = vld [vmem:[#allocation3 + $0x1330] sm:$0xff]
    %v1386 = vld [vmem:[#allocation3 + $0x1338] sm:$0xff]
    %v1387 = vld [vmem:[#allocation3 + $0x1340] sm:$0xff]
    %v1388 = vld [vmem:[#allocation3 + $0x1348] sm:$0xff]
    %v1389 = vld [vmem:[#allocation3 + $0x1350] sm:$0xff]
    %v1390 = vld [vmem:[#allocation3 + $0x1358] sm:$0xff]
    %v1391 = vld [vmem:[#allocation3 + $0x1360] sm:$0xff]
    %v1392 = vld [vmem:[#allocation3 + $0x1368] sm:$0xff]
    %v1393 = vld [vmem:[#allocation3 + $0x1370] sm:$0xff]
    %v1394 = vld [vmem:[#allocation3 + $0x1378] sm:$0xff]
    %v1395 = vld [vmem:[#allocation3 + $0x1380] sm:$0xff]
    %v1396 = vld [vmem:[#allocation3 + $0x1388] sm:$0xff]
    %v1397 = vld [vmem:[#allocation3 + $0x1390] sm:$0xff]
    %v1398 = vld [vmem:[#allocation3 + $0x1398] sm:$0xff]
    %v1399 = vld [vmem:[#allocation3 + $0x13a0] sm:$0xff]
    %v1400 = vld [vmem:[#allocation3 + $0x13a8] sm:$0xff]
    %v1401 = vld [vmem:[#allocation3 + $0x13b0] sm:$0xff]
    %v1402 = vld [vmem:[#allocation3 + $0x13b8] sm:$0xff]
    %v1403 = vld [vmem:[#allocation3 + $0x13c0] sm:$0xff]
    %v1404 = vld [vmem:[#allocation3 + $0x13c8] sm:$0xff]
    %v1405 = vld [vmem:[#allocation3 + $0x13d0] sm:$0xff]
    %v1406 = vld [vmem:[#allocation3 + $0x13d8] sm:$0xff]
    %v1407 = vld [vmem:[#allocation3 + $0x13e0] sm:$0xff]
    %v1408 = vld [vmem:[#allocation3 + $0x13e8] sm:$0xff]
    %v1409 = vld [vmem:[#allocation3 + $0x13f0] sm:$0xff]
    %v1410 = vld [vmem:[#allocation3 + $0x13f8] sm:$0xff]
    %v1411 = vld [vmem:[#allocation3 + $0x1400] sm:$0xff]
    %v1412 = vld [vmem:[#allocation3 + $0x1408] sm:$0xff]
    %v1413 = vld [vmem:[#allocation3 + $0x1410] sm:$0xff]
    %v1414 = vld [vmem:[#allocation3 + $0x1418] sm:$0xff]
    %v1415 = vld [vmem:[#allocation3 + $0x1420] sm:$0xff]
    %v1416 = vld [vmem:[#allocation3 + $0x1428] sm:$0xff]
    %v1417 = vld [vmem:[#allocation3 + $0x1430] sm:$0xff]
    %v1418 = vld [vmem:[#allocation3 + $0x1438] sm:$0xff]
    %v1419 = vld [vmem:[#allocation3 + $0x1440] sm:$0xff]
    %v1420 = vld [vmem:[#allocation3 + $0x1448] sm:$0xff]
    %v1421 = vld [vmem:[#allocation3 + $0x1450] sm:$0xff]
    %v1422 = vld [vmem:[#allocation3 + $0x1458] sm:$0xff]
    %v1423 = vld [vmem:[#allocation3 + $0x1460] sm:$0xff]
    %v1424 = vld [vmem:[#allocation3 + $0x1468] sm:$0xff]
    %v1425 = vld [vmem:[#allocation3 + $0x1470] sm:$0xff]
    %v1426 = vld [vmem:[#allocation3 + $0x1478] sm:$0xff]
    %v1427 = vld [vmem:[#allocation3 + $0x1480] sm:$0xff]
    %v1428 = vld [vmem:[#allocation3 + $0x1488] sm:$0xff]
    %v1429 = vld [vmem:[#allocation3 + $0x1490] sm:$0xff]
    %v1430 = vld [vmem:[#allocation3 + $0x1498] sm:$0xff]
    %v1431 = vld [vmem:[#allocation3 + $0x14a0] sm:$0xff]
    %v1432 = vld [vmem:[#allocation3 + $0x14a8] sm:$0xff]
    %v1433 = vld [vmem:[#allocation3 + $0x14b0] sm:$0xff]
    %v1434 = vld [vmem:[#allocation3 + $0x14b8] sm:$0xff]
    %v1435 = vld [vmem:[#allocation3 + $0x14c0] sm:$0xff]
    %v1436 = vld [vmem:[#allocation3 + $0x14c8] sm:$0xff]
    %v1437 = vld [vmem:[#allocation3 + $0x14d0] sm:$0xff]
    %v1438 = vld [vmem:[#allocation3 + $0x14d8] sm:$0xff]
    %v1439 = vld [vmem:[#allocation3 + $0x14e0] sm:$0xff]
    %v1440 = vld [vmem:[#allocation3 + $0x14e8] sm:$0xff]
    %v1441 = vld [vmem:[#allocation3 + $0x14f0] sm:$0xff]
    %v1442 = vld [vmem:[#allocation3 + $0x14f8] sm:$0xff]
    %v1443 = vld [vmem:[#allocation3 + $0x1500] sm:$0xff]
    %v1444 = vld [vmem:[#allocation3 + $0x1508] sm:$0xff]
    %v1445 = vld [vmem:[#allocation3 + $0x1510] sm:$0xff]
    %v1446 = vld [vmem:[#allocation3 + $0x1518] sm:$0xff]
    %v1447 = vld [vmem:[#allocation3 + $0x1520] sm:$0xff]
    %v1448 = vld [vmem:[#allocation3 + $0x1528] sm:$0xff]
    %v1449 = vld [vmem:[#allocation3 + $0x1530] sm:$0xff]
    %v1450 = vld [vmem:[#allocation3 + $0x1538] sm:$0xff]
    %v1451 = vld [vmem:[#allocation3 + $0x1540] sm:$0xff]
    %v1452 = vld [vmem:[#allocation3 + $0x1548] sm:$0xff]
    %v1453 = vld [vmem:[#allocation3 + $0x1550] sm:$0xff]
    %v1454 = vld [vmem:[#allocation3 + $0x1558] sm:$0xff]
    %v1455 = vld [vmem:[#allocation3 + $0x1560] sm:$0xff]
    %v1456 = vld [vmem:[#allocation3 + $0x1568] sm:$0xff]
    %v1457 = vld [vmem:[#allocation3 + $0x1570] sm:$0xff]
    %v1458 = vld [vmem:[#allocation3 + $0x1578] sm:$0xff]
    %v1459 = vld [vmem:[#allocation3 + $0x1580] sm:$0xff]
    %v1460 = vld [vmem:[#allocation3 + $0x1588] sm:$0xff]
    %v1461 = vld [vmem:[#allocation3 + $0x1590] sm:$0xff]
    %v1462 = vld [vmem:[#allocation3 + $0x1598] sm:$0xff]
    %v1463 = vld [vmem:[#allocation3 + $0x15a0] sm:$0xff]
    %v1464 = vld [vmem:[#allocation3 + $0x15a8] sm:$0xff]
    %v1465 = vld [vmem:[#allocation3 + $0x15b0] sm:$0xff]
    %v1466 = vld [vmem:[#allocation3 + $0x15b8] sm:$0xff]
    %v1467 = vld [vmem:[#allocation3 + $0x15c0] sm:$0xff]
    %v1468 = vld [vmem:[#allocation3 + $0x15c8] sm:$0xff]
    %v1469 = vld [vmem:[#allocation3 + $0x15d0] sm:$0xff]
    %v1470 = vld [vmem:[#allocation3 + $0x15d8] sm:$0xff]
    %v1471 = vld [vmem:[#allocation3 + $0x15e0] sm:$0xff]
    %v1472 = vld [vmem:[#allocation3 + $0x15e8] sm:$0xff]
    %v1473 = vld [vmem:[#allocation3 + $0x15f0] sm:$0xff]
    %v1474 = vld [vmem:[#allocation3 + $0x15f8] sm:$0xff]
    %v1475 = vld [vmem:[#allocation3 + $0x1600] sm:$0xff]
    %v1476 = vld [vmem:[#allocation3 + $0x1608] sm:$0xff]
    %v1477 = vld [vmem:[#allocation3 + $0x1610] sm:$0xff]
    %v1478 = vld [vmem:[#allocation3 + $0x1618] sm:$0xff]
    %v1479 = vld [vmem:[#allocation3 + $0x1620] sm:$0xff]
    %v1480 = vld [vmem:[#allocation3 + $0x1628] sm:$0xff]
    %v1481 = vld [vmem:[#allocation3 + $0x1630] sm:$0xff]
    %v1482 = vld [vmem:[#allocation3 + $0x1638] sm:$0xff]
    %v1483 = vld [vmem:[#allocation3 + $0x1640] sm:$0xff]
    %v1484 = vld [vmem:[#allocation3 + $0x1648] sm:$0xff]
    %v1485 = vld [vmem:[#allocation3 + $0x1650] sm:$0xff]
    %v1486 = vld [vmem:[#allocation3 + $0x1658] sm:$0xff]
    %v1487 = vld [vmem:[#allocation3 + $0x1660] sm:$0xff]
    %v1488 = vld [vmem:[#allocation3 + $0x1668] sm:$0xff]
    %v1489 = vld [vmem:[#allocation3 + $0x1670] sm:$0xff]
    %v1490 = vld [vmem:[#allocation3 + $0x1678] sm:$0xff]
    %v1491 = vld [vmem:[#allocation3 + $0x1680] sm:$0xff]
    %v1492 = vld [vmem:[#allocation3 + $0x1688] sm:$0xff]
    %v1493 = vld [vmem:[#allocation3 + $0x1690] sm:$0xff]
    %v1494 = vld [vmem:[#allocation3 + $0x1698] sm:$0xff]
    %v1495 = vld [vmem:[#allocation3 + $0x16a0] sm:$0xff]
    %v1496 = vld [vmem:[#allocation3 + $0x16a8] sm:$0xff]
    %v1497 = vld [vmem:[#allocation3 + $0x16b0] sm:$0xff]
    %v1498 = vld [vmem:[#allocation3 + $0x16b8] sm:$0xff]
    %v1499 = vld [vmem:[#allocation3 + $0x16c0] sm:$0xff]
    %v1500 = vld [vmem:[#allocation3 + $0x16c8] sm:$0xff]
    %v1501 = vld [vmem:[#allocation3 + $0x16d0] sm:$0xff]
    %v1502 = vld [vmem:[#allocation3 + $0x16d8] sm:$0xff]
    %v1503 = vld [vmem:[#allocation3 + $0x16e0] sm:$0xff]
    %v1504 = vld [vmem:[#allocation3 + $0x16e8] sm:$0xff]
    %v1505 = vld [vmem:[#allocation3 + $0x16f0] sm:$0xff]
    %v1506 = vld [vmem:[#allocation3 + $0x16f8] sm:$0xff]
    %v1507 = vld [vmem:[#allocation3 + $0x1700] sm:$0xff]
    %v1508 = vld [vmem:[#allocation3 + $0x1708] sm:$0xff]
    %v1509 = vld [vmem:[#allocation3 + $0x1710] sm:$0xff]
    %v1510 = vld [vmem:[#allocation3 + $0x1718] sm:$0xff]
    %v1511 = vld [vmem:[#allocation3 + $0x1720] sm:$0xff]
    %v1512 = vld [vmem:[#allocation3 + $0x1728] sm:$0xff]
    %v1513 = vld [vmem:[#allocation3 + $0x1730] sm:$0xff]
    %v1514 = vld [vmem:[#allocation3 + $0x1738] sm:$0xff]
    %v1515 = vld [vmem:[#allocation3 + $0x1740] sm:$0xff]
    %v1516 = vld [vmem:[#allocation3 + $0x1748] sm:$0xff]
    %v1517 = vld [vmem:[#allocation3 + $0x1750] sm:$0xff]
    %v1518 = vld [vmem:[#allocation3 + $0x1758] sm:$0xff]
    %v1519 = vld [vmem:[#allocation3 + $0x1760] sm:$0xff]
    %v1520 = vld [vmem:[#allocation3 + $0x1768] sm:$0xff]
    %v1521 = vld [vmem:[#allocation3 + $0x1770] sm:$0xff]
    %v1522 = vld [vmem:[#allocation3 + $0x1778] sm:$0xff]
    %v1523 = vld [vmem:[#allocation3 + $0x1780] sm:$0xff]
    %v1524 = vld [vmem:[#allocation3 + $0x1788] sm:$0xff]
    %v1525 = vld [vmem:[#allocation3 + $0x1790] sm:$0xff]
    %v1526 = vld [vmem:[#allocation3 + $0x1798] sm:$0xff]
    %v1527 = vld [vmem:[#allocation3 + $0x17a0] sm:$0xff]
    %v1528 = vld [vmem:[#allocation3 + $0x17a8] sm:$0xff]
    %v1529 = vld [vmem:[#allocation3 + $0x17b0] sm:$0xff]
    %v1530 = vld [vmem:[#allocation3 + $0x17b8] sm:$0xff]
    %v1531 = vld [vmem:[#allocation3 + $0x17c0] sm:$0xff]
    %v1532 = vld [vmem:[#allocation3 + $0x17c8] sm:$0xff]
    %v1533 = vld [vmem:[#allocation3 + $0x17d0] sm:$0xff]
    %v1534 = vld [vmem:[#allocation3 + $0x17d8] sm:$0xff]
    %v1535 = vld [vmem:[#allocation3 + $0x17e0] sm:$0xff]
    %v1536 = vld [vmem:[#allocation3 + $0x17e8] sm:$0xff]
    %v1537 = vld [vmem:[#allocation3 + $0x17f0] sm:$0xff]
    %v1538 = vld [vmem:[#allocation3 + $0x17f8] sm:$0xff]
    %v1539 = vld [vmem:[#allocation13] sm:$0xff]
    %v1541 = vlaneseq
    %v1542 = vshrl.u32 %v1541, 7
    %v1543 = vsub.s32 0, %v1542
    %v1544 = vrot.slane %v1539, %v1543
    %v1545 = vlaneseq
    %v1546 = vshrl.u32 %v1545, 7
    %v1547 = vsub.s32 1, %v1546
    %v1548 = vrot.slane %v1539, %v1547
    %v1549 = vlaneseq
    %v1550 = vshrl.u32 %v1549, 7
    %v1551 = vsub.s32 2, %v1550
    %v1552 = vrot.slane %v1539, %v1551
    %v1553 = vlaneseq
    %v1554 = vshrl.u32 %v1553, 7
    %v1555 = vsub.s32 3, %v1554
    %v1556 = vrot.slane %v1539, %v1555
    %v1557 = vlaneseq
    %v1558 = vshrl.u32 %v1557, 7
    %v1559 = vsub.s32 4, %v1558
    %v1560 = vrot.slane %v1539, %v1559
    %v1561 = vlaneseq
    %v1562 = vshrl.u32 %v1561, 7
    %v1563 = vsub.s32 5, %v1562
    %v1564 = vrot.slane %v1539, %v1563
    %v1565 = vlaneseq
    %v1566 = vshrl.u32 %v1565, 7
    %v1567 = vsub.s32 6, %v1566
    %v1568 = vrot.slane %v1539, %v1567
    %v1569 = vlaneseq
    %v1570 = vshrl.u32 %v1569, 7
    %v1571 = vsub.s32 7, %v1570
    %v1572 = vrot.slane %v1539, %v1571
    %1581 = vmatprep.subr.bf16.mxu0 %v772
    %1582 = vmatpush1.bf16.msra.mxu0 %v771
    %1583 = vmatprep.subr.bf16.mxu0 %v780
    %1584 = vmatpush1.bf16.msra.mxu0 %v779
    %1585 = vmatprep.subr.bf16.mxu0 %v788
    %1586 = vmatpush1.bf16.msra.mxu0 %v787
    %1587 = vmatprep.subr.bf16.mxu0 %v796
    %1588 = vmatpush1.bf16.msra.mxu0 %v795
    %1589 = vmatprep.subr.bf16.mxu0 %v804
    %1590 = vmatpush1.bf16.msra.mxu0 %v803
    %1591 = vmatprep.subr.bf16.mxu0 %v812
    %1592 = vmatpush1.bf16.msra.mxu0 %v811
    %1593 = vmatprep.subr.bf16.mxu0 %v820
    %1594 = vmatpush1.bf16.msra.mxu0 %v819
    %1595 = vmatprep.subr.bf16.mxu0 %v828
    %1596 = vmatpush1.bf16.msra.mxu0 %v827
    %1597 = vmatprep.subr.bf16.mxu0 %v836
    %1598 = vmatpush1.bf16.msra.mxu0 %v835
    %1599 = vmatprep.subr.bf16.mxu0 %v844
    %1600 = vmatpush1.bf16.msra.mxu0 %v843
    %1601 = vmatprep.subr.bf16.mxu0 %v852
    %1602 = vmatpush1.bf16.msra.mxu0 %v851
    %1603 = vmatprep.subr.bf16.mxu0 %v860
    %1604 = vmatpush1.bf16.msra.mxu0 %v859
    %1605 = vmatprep.subr.bf16.mxu0 %v868
    %1606 = vmatpush1.bf16.msra.mxu0 %v867
    %1607 = vmatprep.subr.bf16.mxu0 %v876
    %1608 = vmatpush1.bf16.msra.mxu0 %v875
    %1609 = vmatprep.subr.bf16.mxu0 %v884
    %1610 = vmatpush1.bf16.msra.mxu0 %v883
    %1611 = vmatprep.subr.bf16.mxu0 %v892
    %1612 = vmatpush1.bf16.msra.mxu0 %v891
    %1613 = vmatprep.mubr.bf16.mxu0 %v756
    %1614 = vmatmul.mubr.bf16.gmra.mrb[0].mxu0 %v755
    %v1615 = vpop.f32.mrb[0].mxu0
    %v1616 = vadd.f32 %v1544, %v1615
    %v1617 = vpop.f32.mrb[0].mxu0
    %v1618 = vadd.f32 %v1548, %v1617
    %v1619 = vpop.f32.mrb[0].mxu0
    %v1620 = vpop.f32.mrb[0].mxu0
    %1621 = vdwg.mxu0
    %1622 = vmatprep.subr.bf16.mxu0 %v900
    %1623 = vmatpush1.bf16.msra.mxu0 %v899
    %1624 = vmatprep.subr.bf16.mxu0 %v908
    %1625 = vmatpush1.bf16.msra.mxu0 %v907
    %1626 = vmatprep.subr.bf16.mxu0 %v916
    %1627 = vmatpush1.bf16.msra.mxu0 %v915
    %1628 = vmatprep.subr.bf16.mxu0 %v924
    %1629 = vmatpush1.bf16.msra.mxu0 %v923
    %1630 = vmatprep.subr.bf16.mxu0 %v932
    %1631 = vmatpush1.bf16.msra.mxu0 %v931
    %1632 = vmatprep.subr.bf16.mxu0 %v940
    %1633 = vmatpush1.bf16.msra.mxu0 %v939
    %1634 = vmatprep.subr.bf16.mxu0 %v948
    %1635 = vmatpush1.bf16.msra.mxu0 %v947
    %1636 = vmatprep.subr.bf16.mxu0 %v956
    %1637 = vmatpush1.bf16.msra.mxu0 %v955
    %1638 = vmatprep.subr.bf16.mxu0 %v964
    %1639 = vmatpush1.bf16.msra.mxu0 %v963
    %1640 = vmatprep.subr.bf16.mxu0 %v972
    %1641 = vmatpush1.bf16.msra.mxu0 %v971
    %1642 = vmatprep.subr.bf16.mxu0 %v980
    %1643 = vmatpush1.bf16.msra.mxu0 %v979
    %1644 = vmatprep.subr.bf16.mxu0 %v988
    %1645 = vmatpush1.bf16.msra.mxu0 %v987
    %1646 = vmatprep.subr.bf16.mxu0 %v996
    %1647 = vmatpush1.bf16.msra.mxu0 %v995
    %1648 = vmatprep.subr.bf16.mxu0 %v1004
    %1649 = vmatpush1.bf16.msra.mxu0 %v1003
    %1650 = vmatprep.subr.bf16.mxu0 %v1012
    %1651 = vmatpush1.bf16.msra.mxu0 %v1011
    %1652 = vmatprep.subr.bf16.mxu0 %v1020
    %1653 = vmatpush1.bf16.msra.mxu0 %v1019
    %1654 = vmatprep.mubr.bf16.mxu0 %v758
    %1655 = vmatmul.mubr.bf16.gmra.mrb[0].mxu0 %v757
    %v1656 = vpop.f32.mrb[0].mxu0
    %v1657 = vadd.f32 %v1616, %v1656
    %v1658 = vpop.f32.mrb[0].mxu0
    %v1659 = vadd.f32 %v1618, %v1658
    %v1660 = vpop.f32.mrb[0].mxu0
    %v1661 = vpop.f32.mrb[0].mxu0
    %1662 = vdwg.mxu0
    %1663 = vmatprep.subr.bf16.mxu0 %v1028
    %1664 = vmatpush1.bf16.msra.mxu0 %v1027
    %1665 = vmatprep.subr.bf16.mxu0 %v1036
    %1666 = vmatpush1.bf16.msra.mxu0 %v1035
    %1667 = vmatprep.subr.bf16.mxu0 %v1044
    %1668 = vmatpush1.bf16.msra.mxu0 %v1043
    %1669 = vmatprep.subr.bf16.mxu0 %v1052
    %1670 = vmatpush1.bf16.msra.mxu0 %v1051
    %1671 = vmatprep.subr.bf16.mxu0 %v1060
    %1672 = vmatpush1.bf16.msra.mxu0 %v1059
    %1673 = vmatprep.subr.bf16.mxu0 %v1068
    %1674 = vmatpush1.bf16.msra.mxu0 %v1067
    %1675 = vmatprep.subr.bf16.mxu0 %v1076
    %1676 = vmatpush1.bf16.msra.mxu0 %v1075
    %1677 = vmatprep.subr.bf16.mxu0 %v1084
    %1678 = vmatpush1.bf16.msra.mxu0 %v1083
    %1679 = vmatprep.subr.bf16.mxu0 %v1092
    %1680 = vmatpush1.bf16.msra.mxu0 %v1091
    %1681 = vmatprep.subr.bf16.mxu0 %v1100
    %1682 = vmatpush1.bf16.msra.mxu0 %v1099
    %1683 = vmatprep.subr.bf16.mxu0 %v1108
    %1684 = vmatpush1.bf16.msra.mxu0 %v1107
    %1685 = vmatprep.subr.bf16.mxu0 %v1116
    %1686 = vmatpush1.bf16.msra.mxu0 %v1115
    %1687 = vmatprep.subr.bf16.mxu0 %v1124
    %1688 = vmatpush1.bf16.msra.mxu0 %v1123
    %1689 = vmatprep.subr.bf16.mxu0 %v1132
    %1690 = vmatpush1.bf16.msra.mxu0 %v1131
    %1691 = vmatprep.subr.bf16.mxu0 %v1140
    %1692 = vmatpush1.bf16.msra.mxu0 %v1139
    %1693 = vmatprep.subr.bf16.mxu0 %v1148
    %1694 = vmatpush1.bf16.msra.mxu0 %v1147
    %1695 = vmatprep.mubr.bf16.mxu0 %v760
    %1696 = vmatmul.mubr.bf16.gmra.mrb[0].mxu0 %v759
    %v1697 = vpop.f32.mrb[0].mxu0
    %v1698 = vadd.f32 %v1657, %v1697
    %v1699 = vpop.f32.mrb[0].mxu0
    %v1700 = vadd.f32 %v1659, %v1699
    %v1701 = vpop.f32.mrb[0].mxu0
    %v1702 = vpop.f32.mrb[0].mxu0
    %1703 = vdwg.mxu0
    %1704 = vmatprep.subr.bf16.mxu0 %v1156
    %1705 = vmatpush1.bf16.msra.mxu0 %v1155
    %1706 = vmatprep.subr.bf16.mxu0 %v1164
    %1707 = vmatpush1.bf16.msra.mxu0 %v1163
    %1708 = vmatprep.subr.bf16.mxu0 %v1172
    %1709 = vmatpush1.bf16.msra.mxu0 %v1171
    %1710 = vmatprep.subr.bf16.mxu0 %v1180
    %1711 = vmatpush1.bf16.msra.mxu0 %v1179
    %1712 = vmatprep.subr.bf16.mxu0 %v1188
    %1713 = vmatpush1.bf16.msra.mxu0 %v1187
    %1714 = vmatprep.subr.bf16.mxu0 %v1196
    %1715 = vmatpush1.bf16.msra.mxu0 %v1195
    %1716 = vmatprep.subr.bf16.mxu0 %v1204
    %1717 = vmatpush1.bf16.msra.mxu0 %v1203
    %1718 = vmatprep.subr.bf16.mxu0 %v1212
    %1719 = vmatpush1.bf16.msra.mxu0 %v1211
    %1720 = vmatprep.subr.bf16.mxu0 %v1220
    %1721 = vmatpush1.bf16.msra.mxu0 %v1219
    %1722 = vmatprep.subr.bf16.mxu0 %v1228
    %1723 = vmatpush1.bf16.msra.mxu0 %v1227
    %1724 = vmatprep.subr.bf16.mxu0 %v1236
    %1725 = vmatpush1.bf16.msra.mxu0 %v1235
    %1726 = vmatprep.subr.bf16.mxu0 %v1244
    %1727 = vmatpush1.bf16.msra.mxu0 %v1243
    %1728 = vmatprep.subr.bf16.mxu0 %v1252
    %1729 = vmatpush1.bf16.msra.mxu0 %v1251
    %1730 = vmatprep.subr.bf16.mxu0 %v1260
    %1731 = vmatpush1.bf16.msra.mxu0 %v1259
    %1732 = vmatprep.subr.bf16.mxu0 %v1268
    %1733 = vmatpush1.bf16.msra.mxu0 %v1267
    %1734 = vmatprep.subr.bf16.mxu0 %v1276
    %1735 = vmatpush1.bf16.msra.mxu0 %v1275
    %1736 = vmatprep.mubr.bf16.mxu0 %v762
    %1737 = vmatmul.mubr.bf16.gmra.mrb[0].mxu0 %v761
    %v1738 = vpop.f32.mrb[0].mxu0
    %v1739 = vadd.f32 %v1698, %v1738
    %v1740 = vpop.f32.mrb[0].mxu0
    %v1741 = vadd.f32 %v1700, %v1740
    %v1742 = vpop.f32.mrb[0].mxu0
    %v1743 = vpop.f32.mrb[0].mxu0
    %1744 = vdwg.mxu0
    %1745 = vmatprep.subr.bf16.mxu0 %v1284
    %1746 = vmatpush1.bf16.msra.mxu0 %v1283
    %1747 = vmatprep.subr.bf16.mxu0 %v1292
    %1748 = vmatpush1.bf16.msra.mxu0 %v1291
    %1749 = vmatprep.subr.bf16.mxu0 %v1300
    %1750 = vmatpush1.bf16.msra.mxu0 %v1299
    %1751 = vmatprep.subr.bf16.mxu0 %v1308
    %1752 = vmatpush1.bf16.msra.mxu0 %v1307
    %1753 = vmatprep.subr.bf16.mxu0 %v1316
    %1754 = vmatpush1.bf16.msra.mxu0 %v1315
    %1755 = vmatprep.subr.bf16.mxu0 %v1324
    %1756 = vmatpush1.bf16.msra.mxu0 %v1323
    %1757 = vmatprep.subr.bf16.mxu0 %v1332
    %1758 = vmatpush1.bf16.msra.mxu0 %v1331
    %1759 = vmatprep.subr.bf16.mxu0 %v1340
    %1760 = vmatpush1.bf16.msra.mxu0 %v1339
    %1761 = vmatprep.subr.bf16.mxu0 %v1348
    %1762 = vmatpush1.bf16.msra.mxu0 %v1347
    %1763 = vmatprep.subr.bf16.mxu0 %v1356
    %1764 = vmatpush1.bf16.msra.mxu0 %v1355
    %1765 = vmatprep.subr.bf16.mxu0 %v1364
    %1766 = vmatpush1.bf16.msra.mxu0 %v1363
    %1767 = vmatprep.subr.bf16.mxu0 %v1372
    %1768 = vmatpush1.bf16.msra.mxu0 %v1371
    %1769 = vmatprep.subr.bf16.mxu0 %v1380
    %1770 = vmatpush1.bf16.msra.mxu0 %v1379
    %1771 = vmatprep.subr.bf16.mxu0 %v1388
    %1772 = vmatpush1.bf16.msra.mxu0 %v1387
    %1773 = vmatprep.subr.bf16.mxu0 %v1396
    %1774 = vmatpush1.bf16.msra.mxu0 %v1395
    %1775 = vmatprep.subr.bf16.mxu0 %v1404
    %1776 = vmatpush1.bf16.msra.mxu0 %v1403
    %1777 = vmatprep.mubr.bf16.mxu0 %v764
    %1778 = vmatmul.mubr.bf16.gmra.mrb[0].mxu0 %v763
    %v1779 = vpop.f32.mrb[0].mxu0
    %v1780 = vadd.f32 %v1739, %v1779
    %v1781 = vpop.f32.mrb[0].mxu0
    %v1782 = vadd.f32 %v1741, %v1781
    %v1783 = vpop.f32.mrb[0].mxu0
    %v1784 = vpop.f32.mrb[0].mxu0
    %1785 = vdwg.mxu0
    %1786 = vmatprep.subr.bf16.mxu0 %v1412
    %1787 = vmatpush1.bf16.msra.mxu0 %v1411
    %1788 = vmatprep.subr.bf16.mxu0 %v1420
    %1789 = vmatpush1.bf16.msra.mxu0 %v1419
    %1790 = vmatprep.subr.bf16.mxu0 %v1428
    %1791 = vmatpush1.bf16.msra.mxu0 %v1427
    %1792 = vmatprep.subr.bf16.mxu0 %v1436
    %1793 = vmatpush1.bf16.msra.mxu0 %v1435
    %1794 = vmatprep.subr.bf16.mxu0 %v1444
    %1795 = vmatpush1.bf16.msra.mxu0 %v1443
    %1796 = vmatprep.subr.bf16.mxu0 %v1452
    %1797 = vmatpush1.bf16.msra.mxu0 %v1451
    %1798 = vmatprep.subr.bf16.mxu0 %v1460
    %1799 = vmatpush1.bf16.msra.mxu0 %v1459
    %1800 = vmatprep.subr.bf16.mxu0 %v1468
    %1801 = vmatpush1.bf16.msra.mxu0 %v1467
    %1802 = vmatprep.subr.bf16.mxu0 %v1476
    %1803 = vmatpush1.bf16.msra.mxu0 %v1475
    %1804 = vmatprep.subr.bf16.mxu0 %v1484
    %1805 = vmatpush1.bf16.msra.mxu0 %v1483
    %1806 = vmatprep.subr.bf16.mxu0 %v1492
    %1807 = vmatpush1.bf16.msra.mxu0 %v1491
    %1808 = vmatprep.subr.bf16.mxu0 %v1500
    %1809 = vmatpush1.bf16.msra.mxu0 %v1499
    %1810 = vmatprep.subr.bf16.mxu0 %v1508
    %1811 = vmatpush1.bf16.msra.mxu0 %v1507
    %1812 = vmatprep.subr.bf16.mxu0 %v1516
    %1813 = vmatpush1.bf16.msra.mxu0 %v1515
    %1814 = vmatprep.subr.bf16.mxu0 %v1524
    %1815 = vmatpush1.bf16.msra.mxu0 %v1523
    %1816 = vmatprep.subr.bf16.mxu0 %v1532
    %1817 = vmatpush1.bf16.msra.mxu0 %v1531
    %1818 = vmatprep.mubr.bf16.mxu0 %v766
    %1819 = vmatmul.mubr.bf16.gmra.mrb[0].mxu0 %v765
    %v1820 = vpop.f32.mrb[0].mxu0
    %v1821 = vadd.f32 %v1780, %v1820
    %v1822 = vpop.f32.mrb[0].mxu0
    %v1823 = vadd.f32 %v1782, %v1822
    %v1824 = vpop.f32.mrb[0].mxu0
    %v1825 = vpop.f32.mrb[0].mxu0
    %1826 = vdwg.mxu0
    %1827 = vmatprep.subr.bf16.mxu0 %v774
    %1828 = vmatpush1.bf16.msra.mxu0 %v773
    %1829 = vmatprep.subr.bf16.mxu0 %v782
    %1830 = vmatpush1.bf16.msra.mxu0 %v781
    %1831 = vmatprep.subr.bf16.mxu0 %v790
    %1832 = vmatpush1.bf16.msra.mxu0 %v789
    %1833 = vmatprep.subr.bf16.mxu0 %v798
    %1834 = vmatpush1.bf16.msra.mxu0 %v797
    %1835 = vmatprep.subr.bf16.mxu0 %v806
    %1836 = vmatpush1.bf16.msra.mxu0 %v805
    %1837 = vmatprep.subr.bf16.mxu0 %v814
    %1838 = vmatpush1.bf16.msra.mxu0 %v813
    %1839 = vmatprep.subr.bf16.mxu0 %v822
    %1840 = vmatpush1.bf16.msra.mxu0 %v821
    %1841 = vmatprep.subr.bf16.mxu0 %v830
    %1842 = vmatpush1.bf16.msra.mxu0 %v829
    %1843 = vmatprep.subr.bf16.mxu0 %v838
    %1844 = vmatpush1.bf16.msra.mxu0 %v837
    %1845 = vmatprep.subr.bf16.mxu0 %v846
    %1846 = vmatpush1.bf16.msra.mxu0 %v845
    %1847 = vmatprep.subr.bf16.mxu0 %v854
    %1848 = vmatpush1.bf16.msra.mxu0 %v853
    %1849 = vmatprep.subr.bf16.mxu0 %v862
    %1850 = vmatpush1.bf16.msra.mxu0 %v861
    %1851 = vmatprep.subr.bf16.mxu0 %v870
    %1852 = vmatpush1.bf16.msra.mxu0 %v869
    %1853 = vmatprep.subr.bf16.mxu0 %v878
    %1854 = vmatpush1.bf16.msra.mxu0 %v877
    %1855 = vmatprep.subr.bf16.mxu0 %v886
    %1856 = vmatpush1.bf16.msra.mxu0 %v885
    %1857 = vmatprep.subr.bf16.mxu0 %v894
    %1858 = vmatpush1.bf16.msra.mxu0 %v893
    %1859 = vmatprep.mubr.bf16.mxu0 %v756
    %1860 = vmatmul.mubr.bf16.gmra.mrb[0].mxu0 %v755
    %v1861 = vpop.f32.mrb[0].mxu0
    %v1862 = vadd.f32 %v1552, %v1861
    %v1863 = vpop.f32.mrb[0].mxu0
    %v1864 = vadd.f32 %v1556, %v1863
    %v1865 = vpop.f32.mrb[0].mxu0
    %v1866 = vpop.f32.mrb[0].mxu0
    %1867 = vdwg.mxu0
    %1868 = vmatprep.subr.bf16.mxu0 %v902
    %1869 = vmatpush1.bf16.msra.mxu0 %v901
    %1870 = vmatprep.subr.bf16.mxu0 %v910
    %1871 = vmatpush1.bf16.msra.mxu0 %v909
    %1872 = vmatprep.subr.bf16.mxu0 %v918
    %1873 = vmatpush1.bf16.msra.mxu0 %v917
    %1874 = vmatprep.subr.bf16.mxu0 %v926
    %1875 = vmatpush1.bf16.msra.mxu0 %v925
    %1876 = vmatprep.subr.bf16.mxu0 %v934
    %1877 = vmatpush1.bf16.msra.mxu0 %v933
    %1878 = vmatprep.subr.bf16.mxu0 %v942
    %1879 = vmatpush1.bf16.msra.mxu0 %v941
    %1880 = vmatprep.subr.bf16.mxu0 %v950
    %1881 = vmatpush1.bf16.msra.mxu0 %v949
    %1882 = vmatprep.subr.bf16.mxu0 %v958
    %1883 = vmatpush1.bf16.msra.mxu0 %v957
    %1884 = vmatprep.subr.bf16.mxu0 %v966
    %1885 = vmatpush1.bf16.msra.mxu0 %v965
    %1886 = vmatprep.subr.bf16.mxu0 %v974
    %1887 = vmatpush1.bf16.msra.mxu0 %v973
    %1888 = vmatprep.subr.bf16.mxu0 %v982
    %1889 = vmatpush1.bf16.msra.mxu0 %v981
    %1890 = vmatprep.subr.bf16.mxu0 %v990
    %1891 = vmatpush1.bf16.msra.mxu0 %v989
    %1892 = vmatprep.subr.bf16.mxu0 %v998
    %1893 = vmatpush1.bf16.msra.mxu0 %v997
    %1894 = vmatprep.subr.bf16.mxu0 %v1006
    %1895 = vmatpush1.bf16.msra.mxu0 %v1005
    %1896 = vmatprep.subr.bf16.mxu0 %v1014
    %1897 = vmatpush1.bf16.msra.mxu0 %v1013
    %1898 = vmatprep.subr.bf16.mxu0 %v1022
    %1899 = vmatpush1.bf16.msra.mxu0 %v1021
    %1900 = vmatprep.mubr.bf16.mxu0 %v758
    %1901 = vmatmul.mubr.bf16.gmra.mrb[0].mxu0 %v757
    %v1902 = vpop.f32.mrb[0].mxu0
    %v1903 = vadd.f32 %v1862, %v1902
    %v1904 = vpop.f32.mrb[0].mxu0
    %v1905 = vadd.f32 %v1864, %v1904
    %v1906 = vpop.f32.mrb[0].mxu0
    %v1907 = vpop.f32.mrb[0].mxu0
    %1908 = vdwg.mxu0
    %1909 = vmatprep.subr.bf16.mxu0 %v1030
    %1910 = vmatpush1.bf16.msra.mxu0 %v1029
    %1911 = vmatprep.subr.bf16.mxu0 %v1038
    %1912 = vmatpush1.bf16.msra.mxu0 %v1037
    %1913 = vmatprep.subr.bf16.mxu0 %v1046
    %1914 = vmatpush1.bf16.msra.mxu0 %v1045
    %1915 = vmatprep.subr.bf16.mxu0 %v1054
    %1916 = vmatpush1.bf16.msra.mxu0 %v1053
    %1917 = vmatprep.subr.bf16.mxu0 %v1062
    %1918 = vmatpush1.bf16.msra.mxu0 %v1061
    %1919 = vmatprep.subr.bf16.mxu0 %v1070
    %1920 = vmatpush1.bf16.msra.mxu0 %v1069
    %1921 = vmatprep.subr.bf16.mxu0 %v1078
    %1922 = vmatpush1.bf16.msra.mxu0 %v1077
    %1923 = vmatprep.subr.bf16.mxu0 %v1086
    %1924 = vmatpush1.bf16.msra.mxu0 %v1085
    %1925 = vmatprep.subr.bf16.mxu0 %v1094
    %1926 = vmatpush1.bf16.msra.mxu0 %v1093
    %1927 = vmatprep.subr.bf16.mxu0 %v1102
    %1928 = vmatpush1.bf16.msra.mxu0 %v1101
    %1929 = vmatprep.subr.bf16.mxu0 %v1110
    %1930 = vmatpush1.bf16.msra.mxu0 %v1109
    %1931 = vmatprep.subr.bf16.mxu0 %v1118
    %1932 = vmatpush1.bf16.msra.mxu0 %v1117
    %1933 = vmatprep.subr.bf16.mxu0 %v1126
    %1934 = vmatpush1.bf16.msra.mxu0 %v1125
    %1935 = vmatprep.subr.bf16.mxu0 %v1134
    %1936 = vmatpush1.bf16.msra.mxu0 %v1133
    %1937 = vmatprep.subr.bf16.mxu0 %v1142
    %1938 = vmatpush1.bf16.msra.mxu0 %v1141
    %1939 = vmatprep.subr.bf16.mxu0 %v1150
    %1940 = vmatpush1.bf16.msra.mxu0 %v1149
    %1941 = vmatprep.mubr.bf16.mxu0 %v760
    %1942 = vmatmul.mubr.bf16.gmra.mrb[0].mxu0 %v759
    %v1943 = vpop.f32.mrb[0].mxu0
    %v1944 = vadd.f32 %v1903, %v1943
    %v1945 = vpop.f32.mrb[0].mxu0
    %v1946 = vadd.f32 %v1905, %v1945
    %v1947 = vpop.f32.mrb[0].mxu0
    %v1948 = vpop.f32.mrb[0].mxu0
    %1949 = vdwg.mxu0
    %1950 = vmatprep.subr.bf16.mxu0 %v1158
    %1951 = vmatpush1.bf16.msra.mxu0 %v1157
    %1952 = vmatprep.subr.bf16.mxu0 %v1166
    %1953 = vmatpush1.bf16.msra.mxu0 %v1165
    %1954 = vmatprep.subr.bf16.mxu0 %v1174
    %1955 = vmatpush1.bf16.msra.mxu0 %v1173
    %1956 = vmatprep.subr.bf16.mxu0 %v1182
    %1957 = vmatpush1.bf16.msra.mxu0 %v1181
    %1958 = vmatprep.subr.bf16.mxu0 %v1190
    %1959 = vmatpush1.bf16.msra.mxu0 %v1189
    %1960 = vmatprep.subr.bf16.mxu0 %v1198
    %1961 = vmatpush1.bf16.msra.mxu0 %v1197
    %1962 = vmatprep.subr.bf16.mxu0 %v1206
    %1963 = vmatpush1.bf16.msra.mxu0 %v1205
    %1964 = vmatprep.subr.bf16.mxu0 %v1214
    %1965 = vmatpush1.bf16.msra.mxu0 %v1213
    %1966 = vmatprep.subr.bf16.mxu0 %v1222
    %1967 = vmatpush1.bf16.msra.mxu0 %v1221
    %1968 = vmatprep.subr.bf16.mxu0 %v1230
    %1969 = vmatpush1.bf16.msra.mxu0 %v1229
    %1970 = vmatprep.subr.bf16.mxu0 %v1238
    %1971 = vmatpush1.bf16.msra.mxu0 %v1237
    %1972 = vmatprep.subr.bf16.mxu0 %v1246
    %1973 = vmatpush1.bf16.msra.mxu0 %v1245
    %1974 = vmatprep.subr.bf16.mxu0 %v1254
    %1975 = vmatpush1.bf16.msra.mxu0 %v1253
    %1976 = vmatprep.subr.bf16.mxu0 %v1262
    %1977 = vmatpush1.bf16.msra.mxu0 %v1261
    %1978 = vmatprep.subr.bf16.mxu0 %v1270
    %1979 = vmatpush1.bf16.msra.mxu0 %v1269
    %1980 = vmatprep.subr.bf16.mxu0 %v1278
    %1981 = vmatpush1.bf16.msra.mxu0 %v1277
    %1982 = vmatprep.mubr.bf16.mxu0 %v762
    %1983 = vmatmul.mubr.bf16.gmra.mrb[0].mxu0 %v761
    %v1984 = vpop.f32.mrb[0].mxu0
    %v1985 = vadd.f32 %v1944, %v1984
    %v1986 = vpop.f32.mrb[0].mxu0
    %v1987 = vadd.f32 %v1946, %v1986
    %v1988 = vpop.f32.mrb[0].mxu0
    %v1989 = vpop.f32.mrb[0].mxu0
    %1990 = vdwg.mxu0
    %1991 = vmatprep.subr.bf16.mxu0 %v1286
    %1992 = vmatpush1.bf16.msra.mxu0 %v1285
    %1993 = vmatprep.subr.bf16.mxu0 %v1294
    %1994 = vmatpush1.bf16.msra.mxu0 %v1293
    %1995 = vmatprep.subr.bf16.mxu0 %v1302
    %1996 = vmatpush1.bf16.msra.mxu0 %v1301
    %1997 = vmatprep.subr.bf16.mxu0 %v1310
    %1998 = vmatpush1.bf16.msra.mxu0 %v1309
    %1999 = vmatprep.subr.bf16.mxu0 %v1318
    %2000 = vmatpush1.bf16.msra.mxu0 %v1317
    %2001 = vmatprep.subr.bf16.mxu0 %v1326
    %2002 = vmatpush1.bf16.msra.mxu0 %v1325
    %2003 = vmatprep.subr.bf16.mxu0 %v1334
    %2004 = vmatpush1.bf16.msra.mxu0 %v1333
    %2005 = vmatprep.subr.bf16.mxu0 %v1342
    %2006 = vmatpush1.bf16.msra.mxu0 %v1341
    %2007 = vmatprep.subr.bf16.mxu0 %v1350
    %2008 = vmatpush1.bf16.msra.mxu0 %v1349
    %2009 = vmatprep.subr.bf16.mxu0 %v1358
    %2010 = vmatpush1.bf16.msra.mxu0 %v1357
    %2011 = vmatprep.subr.bf16.mxu0 %v1366
    %2012 = vmatpush1.bf16.msra.mxu0 %v1365
    %2013 = vmatprep.subr.bf16.mxu0 %v1374
    %2014 = vmatpush1.bf16.msra.mxu0 %v1373
    %2015 = vmatprep.subr.bf16.mxu0 %v1382
    %2016 = vmatpush1.bf16.msra.mxu0 %v1381
    %2017 = vmatprep.subr.bf16.mxu0 %v1390
    %2018 = vmatpush1.bf16.msra.mxu0 %v1389
    %2019 = vmatprep.subr.bf16.mxu0 %v1398
    %2020 = vmatpush1.bf16.msra.mxu0 %v1397
    %2021 = vmatprep.subr.bf16.mxu0 %v1406
    %2022 = vmatpush1.bf16.msra.mxu0 %v1405
    %2023 = vmatprep.mubr.bf16.mxu0 %v764
    %2024 = vmatmul.mubr.bf16.gmra.mrb[0].mxu0 %v763
    %v2025 = vpop.f32.mrb[0].mxu0
    %v2026 = vadd.f32 %v1985, %v2025
    %v2027 = vpop.f32.mrb[0].mxu0
    %v2028 = vadd.f32 %v1987, %v2027
    %v2029 = vpop.f32.mrb[0].mxu0
    %v2030 = vpop.f32.mrb[0].mxu0
    %2031 = vdwg.mxu0
    %2032 = vmatprep.subr.bf16.mxu0 %v1414
    %2033 = vmatpush1.bf16.msra.mxu0 %v1413
    %2034 = vmatprep.subr.bf16.mxu0 %v1422
    %2035 = vmatpush1.bf16.msra.mxu0 %v1421
    %2036 = vmatprep.subr.bf16.mxu0 %v1430
    %2037 = vmatpush1.bf16.msra.mxu0 %v1429
    %2038 = vmatprep.subr.bf16.mxu0 %v1438
    %2039 = vmatpush1.bf16.msra.mxu0 %v1437
    %2040 = vmatprep.subr.bf16.mxu0 %v1446
    %2041 = vmatpush1.bf16.msra.mxu0 %v1445
    %2042 = vmatprep.subr.bf16.mxu0 %v1454
    %2043 = vmatpush1.bf16.msra.mxu0 %v1453
    %2044 = vmatprep.subr.bf16.mxu0 %v1462
    %2045 = vmatpush1.bf16.msra.mxu0 %v1461
    %2046 = vmatprep.subr.bf16.mxu0 %v1470
    %2047 = vmatpush1.bf16.msra.mxu0 %v1469
    %2048 = vmatprep.subr.bf16.mxu0 %v1478
    %2049 = vmatpush1.bf16.msra.mxu0 %v1477
    %2050 = vmatprep.subr.bf16.mxu0 %v1486
    %2051 = vmatpush1.bf16.msra.mxu0 %v1485
    %2052 = vmatprep.subr.bf16.mxu0 %v1494
    %2053 = vmatpush1.bf16.msra.mxu0 %v1493
    %2054 = vmatprep.subr.bf16.mxu0 %v1502
    %2055 = vmatpush1.bf16.msra.mxu0 %v1501
    %2056 = vmatprep.subr.bf16.mxu0 %v1510
    %2057 = vmatpush1.bf16.msra.mxu0 %v1509
    %2058 = vmatprep.subr.bf16.mxu0 %v1518
    %2059 = vmatpush1.bf16.msra.mxu0 %v1517
    %2060 = vmatprep.subr.bf16.mxu0 %v1526
    %2061 = vmatpush1.bf16.msra.mxu0 %v1525
    %2062 = vmatprep.subr.bf16.mxu0 %v1534
    %2063 = vmatpush1.bf16.msra.mxu0 %v1533
    %2064 = vmatprep.mubr.bf16.mxu0 %v766
    %2065 = vmatmul.mubr.bf16.gmra.mrb[0].mxu0 %v765
    %v2066 = vpop.f32.mrb[0].mxu0
    %v2067 = vadd.f32 %v2026, %v2066
    %v2068 = vpop.f32.mrb[0].mxu0
    %v2069 = vadd.f32 %v2028, %v2068
    %v2070 = vpop.f32.mrb[0].mxu0
    %v2071 = vpop.f32.mrb[0].mxu0
    %2072 = vdwg.mxu0
    %2073 = vmatprep.subr.bf16.mxu0 %v776
    %2074 = vmatpush1.bf16.msra.mxu0 %v775
    %2075 = vmatprep.subr.bf16.mxu0 %v784
    %2076 = vmatpush1.bf16.msra.mxu0 %v783
    %2077 = vmatprep.subr.bf16.mxu0 %v792
    %2078 = vmatpush1.bf16.msra.mxu0 %v791
    %2079 = vmatprep.subr.bf16.mxu0 %v800
    %2080 = vmatpush1.bf16.msra.mxu0 %v799
    %2081 = vmatprep.subr.bf16.mxu0 %v808
    %2082 = vmatpush1.bf16.msra.mxu0 %v807
    %2083 = vmatprep.subr.bf16.mxu0 %v816
    %2084 = vmatpush1.bf16.msra.mxu0 %v815
    %2085 = vmatprep.subr.bf16.mxu0 %v824
    %2086 = vmatpush1.bf16.msra.mxu0 %v823
    %2087 = vmatprep.subr.bf16.mxu0 %v832
    %2088 = vmatpush1.bf16.msra.mxu0 %v831
    %2089 = vmatprep.subr.bf16.mxu0 %v840
    %2090 = vmatpush1.bf16.msra.mxu0 %v839
    %2091 = vmatprep.subr.bf16.mxu0 %v848
    %2092 = vmatpush1.bf16.msra.mxu0 %v847
    %2093 = vmatprep.subr.bf16.mxu0 %v856
    %2094 = vmatpush1.bf16.msra.mxu0 %v855
    %2095 = vmatprep.subr.bf16.mxu0 %v864
    %2096 = vmatpush1.bf16.msra.mxu0 %v863
    %2097 = vmatprep.subr.bf16.mxu0 %v872
    %2098 = vmatpush1.bf16.msra.mxu0 %v871
    %2099 = vmatprep.subr.bf16.mxu0 %v880
    %2100 = vmatpush1.bf16.msra.mxu0 %v879
    %2101 = vmatprep.subr.bf16.mxu0 %v888
    %2102 = vmatpush1.bf16.msra.mxu0 %v887
    %2103 = vmatprep.subr.bf16.mxu0 %v896
    %2104 = vmatpush1.bf16.msra.mxu0 %v895
    %2105 = vmatprep.mubr.bf16.mxu0 %v756
    %2106 = vmatmul.mubr.bf16.gmra.mrb[0].mxu0 %v755
    %v2107 = vpop.f32.mrb[0].mxu0
    %v2108 = vadd.f32 %v1560, %v2107
    %v2109 = vpop.f32.mrb[0].mxu0
    %v2110 = vadd.f32 %v1564, %v2109
    %v2111 = vpop.f32.mrb[0].mxu0
    %v2112 = vpop.f32.mrb[0].mxu0
    %2113 = vdwg.mxu0
    %2114 = vmatprep.subr.bf16.mxu0 %v904
    %2115 = vmatpush1.bf16.msra.mxu0 %v903
    %2116 = vmatprep.subr.bf16.mxu0 %v912
    %2117 = vmatpush1.bf16.msra.mxu0 %v911
    %2118 = vmatprep.subr.bf16.mxu0 %v920
    %2119 = vmatpush1.bf16.msra.mxu0 %v919
    %2120 = vmatprep.subr.bf16.mxu0 %v928
    %2121 = vmatpush1.bf16.msra.mxu0 %v927
    %2122 = vmatprep.subr.bf16.mxu0 %v936
    %2123 = vmatpush1.bf16.msra.mxu0 %v935
    %2124 = vmatprep.subr.bf16.mxu0 %v944
    %2125 = vmatpush1.bf16.msra.mxu0 %v943
    %2126 = vmatprep.subr.bf16.mxu0 %v952
    %2127 = vmatpush1.bf16.msra.mxu0 %v951
    %2128 = vmatprep.subr.bf16.mxu0 %v960
    %2129 = vmatpush1.bf16.msra.mxu0 %v959
    %2130 = vmatprep.subr.bf16.mxu0 %v968
    %2131 = vmatpush1.bf16.msra.mxu0 %v967
    %2132 = vmatprep.subr.bf16.mxu0 %v976
    %2133 = vmatpush1.bf16.msra.mxu0 %v975
    %2134 = vmatprep.subr.bf16.mxu0 %v984
    %2135 = vmatpush1.bf16.msra.mxu0 %v983
    %2136 = vmatprep.subr.bf16.mxu0 %v992
    %2137 = vmatpush1.bf16.msra.mxu0 %v991
    %2138 = vmatprep.subr.bf16.mxu0 %v1000
    %2139 = vmatpush1.bf16.msra.mxu0 %v999
    %2140 = vmatprep.subr.bf16.mxu0 %v1008
    %2141 = vmatpush1.bf16.msra.mxu0 %v1007
    %2142 = vmatprep.subr.bf16.mxu0 %v1016
    %2143 = vmatpush1.bf16.msra.mxu0 %v1015
    %2144 = vmatprep.subr.bf16.mxu0 %v1024
    %2145 = vmatpush1.bf16.msra.mxu0 %v1023
    %2146 = vmatprep.mubr.bf16.mxu0 %v758
    %2147 = vmatmul.mubr.bf16.gmra.mrb[0].mxu0 %v757
    %v2148 = vpop.f32.mrb[0].mxu0
    %v2149 = vadd.f32 %v2108, %v2148
    %v2150 = vpop.f32.mrb[0].mxu0
    %v2151 = vadd.f32 %v2110, %v2150
    %v2152 = vpop.f32.mrb[0].mxu0
    %v2153 = vpop.f32.mrb[0].mxu0
    %2154 = vdwg.mxu0
    %2155 = vmatprep.subr.bf16.mxu0 %v1032
    %2156 = vmatpush1.bf16.msra.mxu0 %v1031
    %2157 = vmatprep.subr.bf16.mxu0 %v1040
    %2158 = vmatpush1.bf16.msra.mxu0 %v1039
    %2159 = vmatprep.subr.bf16.mxu0 %v1048
    %2160 = vmatpush1.bf16.msra.mxu0 %v1047
    %2161 = vmatprep.subr.bf16.mxu0 %v1056
    %2162 = vmatpush1.bf16.msra.mxu0 %v1055
    %2163 = vmatprep.subr.bf16.mxu0 %v1064
    %2164 = vmatpush1.bf16.msra.mxu0 %v1063
    %2165 = vmatprep.subr.bf16.mxu0 %v1072
    %2166 = vmatpush1.bf16.msra.mxu0 %v1071
    %2167 = vmatprep.subr.bf16.mxu0 %v1080
    %2168 = vmatpush1.bf16.msra.mxu0 %v1079
    %2169 = vmatprep.subr.bf16.mxu0 %v1088
    %2170 = vmatpush1.bf16.msra.mxu0 %v1087
    %2171 = vmatprep.subr.bf16.mxu0 %v1096
    %2172 = vmatpush1.bf16.msra.mxu0 %v1095
    %2173 = vmatprep.subr.bf16.mxu0 %v1104
    %2174 = vmatpush1.bf16.msra.mxu0 %v1103
    %2175 = vmatprep.subr.bf16.mxu0 %v1112
    %2176 = vmatpush1.bf16.msra.mxu0 %v1111
    %2177 = vmatprep.subr.bf16.mxu0 %v1120
    %2178 = vmatpush1.bf16.msra.mxu0 %v1119
    %2179 = vmatprep.subr.bf16.mxu0 %v1128
    %2180 = vmatpush1.bf16.msra.mxu0 %v1127
    %2181 = vmatprep.subr.bf16.mxu0 %v1136
    %2182 = vmatpush1.bf16.msra.mxu0 %v1135
    %2183 = vmatprep.subr.bf16.mxu0 %v1144
    %2184 = vmatpush1.bf16.msra.mxu0 %v1143
    %2185 = vmatprep.subr.bf16.mxu0 %v1152
    %2186 = vmatpush1.bf16.msra.mxu0 %v1151
    %2187 = vmatprep.mubr.bf16.mxu0 %v760
    %2188 = vmatmul.mubr.bf16.gmra.mrb[0].mxu0 %v759
    %v2189 = vpop.f32.mrb[0].mxu0
    %v2190 = vadd.f32 %v2149, %v2189
    %v2191 = vpop.f32.mrb[0].mxu0
    %v2192 = vadd.f32 %v2151, %v2191
    %v2193 = vpop.f32.mrb[0].mxu0
    %v2194 = vpop.f32.mrb[0].mxu0
    %2195 = vdwg.mxu0
    %2196 = vmatprep.subr.bf16.mxu0 %v1160
    %2197 = vmatpush1.bf16.msra.mxu0 %v1159
    %2198 = vmatprep.subr.bf16.mxu0 %v1168
    %2199 = vmatpush1.bf16.msra.mxu0 %v1167
    %2200 = vmatprep.subr.bf16.mxu0 %v1176
    %2201 = vmatpush1.bf16.msra.mxu0 %v1175
    %2202 = vmatprep.subr.bf16.mxu0 %v1184
    %2203 = vmatpush1.bf16.msra.mxu0 %v1183
    %2204 = vmatprep.subr.bf16.mxu0 %v1192
    %2205 = vmatpush1.bf16.msra.mxu0 %v1191
    %2206 = vmatprep.subr.bf16.mxu0 %v1200
    %2207 = vmatpush1.bf16.msra.mxu0 %v1199
    %2208 = vmatprep.subr.bf16.mxu0 %v1208
    %2209 = vmatpush1.bf16.msra.mxu0 %v1207
    %2210 = vmatprep.subr.bf16.mxu0 %v1216
    %2211 = vmatpush1.bf16.msra.mxu0 %v1215
    %2212 = vmatprep.subr.bf16.mxu0 %v1224
    %2213 = vmatpush1.bf16.msra.mxu0 %v1223
    %2214 = vmatprep.subr.bf16.mxu0 %v1232
    %2215 = vmatpush1.bf16.msra.mxu0 %v1231
    %2216 = vmatprep.subr.bf16.mxu0 %v1240
    %2217 = vmatpush1.bf16.msra.mxu0 %v1239
    %2218 = vmatprep.subr.bf16.mxu0 %v1248
    %2219 = vmatpush1.bf16.msra.mxu0 %v1247
    %2220 = vmatprep.subr.bf16.mxu0 %v1256
    %2221 = vmatpush1.bf16.msra.mxu0 %v1255
    %2222 = vmatprep.subr.bf16.mxu0 %v1264
    %2223 = vmatpush1.bf16.msra.mxu0 %v1263
    %2224 = vmatprep.subr.bf16.mxu0 %v1272
    %2225 = vmatpush1.bf16.msra.mxu0 %v1271
    %2226 = vmatprep.subr.bf16.mxu0 %v1280
    %2227 = vmatpush1.bf16.msra.mxu0 %v1279
    %2228 = vmatprep.mubr.bf16.mxu0 %v762
    %2229 = vmatmul.mubr.bf16.gmra.mrb[0].mxu0 %v761
    %v2230 = vpop.f32.mrb[0].mxu0
    %v2231 = vadd.f32 %v2190, %v2230
    %v2232 = vpop.f32.mrb[0].mxu0
    %v2233 = vadd.f32 %v2192, %v2232
    %v2234 = vpop.f32.mrb[0].mxu0
    %v2235 = vpop.f32.mrb[0].mxu0
    %2236 = vdwg.mxu0
    %2237 = vmatprep.subr.bf16.mxu0 %v1288
    %2238 = vmatpush1.bf16.msra.mxu0 %v1287
    %2239 = vmatprep.subr.bf16.mxu0 %v1296
    %2240 = vmatpush1.bf16.msra.mxu0 %v1295
    %2241 = vmatprep.subr.bf16.mxu0 %v1304
    %2242 = vmatpush1.bf16.msra.mxu0 %v1303
    %2243 = vmatprep.subr.bf16.mxu0 %v1312
    %2244 = vmatpush1.bf16.msra.mxu0 %v1311
    %2245 = vmatprep.subr.bf16.mxu0 %v1320
    %2246 = vmatpush1.bf16.msra.mxu0 %v1319
    %2247 = vmatprep.subr.bf16.mxu0 %v1328
    %2248 = vmatpush1.bf16.msra.mxu0 %v1327
    %2249 = vmatprep.subr.bf16.mxu0 %v1336
    %2250 = vmatpush1.bf16.msra.mxu0 %v1335
    %2251 = vmatprep.subr.bf16.mxu0 %v1344
    %2252 = vmatpush1.bf16.msra.mxu0 %v1343
    %2253 = vmatprep.subr.bf16.mxu0 %v1352
    %2254 = vmatpush1.bf16.msra.mxu0 %v1351
    %2255 = vmatprep.subr.bf16.mxu0 %v1360
    %2256 = vmatpush1.bf16.msra.mxu0 %v1359
    %2257 = vmatprep.subr.bf16.mxu0 %v1368
    %2258 = vmatpush1.bf16.msra.mxu0 %v1367
    %2259 = vmatprep.subr.bf16.mxu0 %v1376
    %2260 = vmatpush1.bf16.msra.mxu0 %v1375
    %2261 = vmatprep.subr.bf16.mxu0 %v1384
    %2262 = vmatpush1.bf16.msra.mxu0 %v1383
    %2263 = vmatprep.subr.bf16.mxu0 %v1392
    %2264 = vmatpush1.bf16.msra.mxu0 %v1391
    %2265 = vmatprep.subr.bf16.mxu0 %v1400
    %2266 = vmatpush1.bf16.msra.mxu0 %v1399
    %2267 = vmatprep.subr.bf16.mxu0 %v1408
    %2268 = vmatpush1.bf16.msra.mxu0 %v1407
    %2269 = vmatprep.mubr.bf16.mxu0 %v764
    %2270 = vmatmul.mubr.bf16.gmra.mrb[0].mxu0 %v763
    %v2271 = vpop.f32.mrb[0].mxu0
    %v2272 = vadd.f32 %v2231, %v2271
    %v2273 = vpop.f32.mrb[0].mxu0
    %v2274 = vadd.f32 %v2233, %v2273
    %v2275 = vpop.f32.mrb[0].mxu0
    %v2276 = vpop.f32.mrb[0].mxu0
    %2277 = vdwg.mxu0
    %2278 = vmatprep.subr.bf16.mxu0 %v1416
    %2279 = vmatpush1.bf16.msra.mxu0 %v1415
    %2280 = vmatprep.subr.bf16.mxu0 %v1424
    %2281 = vmatpush1.bf16.msra.mxu0 %v1423
    %2282 = vmatprep.subr.bf16.mxu0 %v1432
    %2283 = vmatpush1.bf16.msra.mxu0 %v1431
    %2284 = vmatprep.subr.bf16.mxu0 %v1440
    %2285 = vmatpush1.bf16.msra.mxu0 %v1439
    %2286 = vmatprep.subr.bf16.mxu0 %v1448
    %2287 = vmatpush1.bf16.msra.mxu0 %v1447
    %2288 = vmatprep.subr.bf16.mxu0 %v1456
    %2289 = vmatpush1.bf16.msra.mxu0 %v1455
    %2290 = vmatprep.subr.bf16.mxu0 %v1464
    %2291 = vmatpush1.bf16.msra.mxu0 %v1463
    %2292 = vmatprep.subr.bf16.mxu0 %v1472
    %2293 = vmatpush1.bf16.msra.mxu0 %v1471
    %2294 = vmatprep.subr.bf16.mxu0 %v1480
    %2295 = vmatpush1.bf16.msra.mxu0 %v1479
    %2296 = vmatprep.subr.bf16.mxu0 %v1488
    %2297 = vmatpush1.bf16.msra.mxu0 %v1487
    %2298 = vmatprep.subr.bf16.mxu0 %v1496
    %2299 = vmatpush1.bf16.msra.mxu0 %v1495
    %2300 = vmatprep.subr.bf16.mxu0 %v1504
    %2301 = vmatpush1.bf16.msra.mxu0 %v1503
    %2302 = vmatprep.subr.bf16.mxu0 %v1512
    %2303 = vmatpush1.bf16.msra.mxu0 %v1511
    %2304 = vmatprep.subr.bf16.mxu0 %v1520
    %2305 = vmatpush1.bf16.msra.mxu0 %v1519
    %2306 = vmatprep.subr.bf16.mxu0 %v1528
    %2307 = vmatpush1.bf16.msra.mxu0 %v1527
    %2308 = vmatprep.subr.bf16.mxu0 %v1536
    %2309 = vmatpush1.bf16.msra.mxu0 %v1535
    %2310 = vmatprep.mubr.bf16.mxu0 %v766
    %2311 = vmatmul.mubr.bf16.gmra.mrb[0].mxu0 %v765
    %v2312 = vpop.f32.mrb[0].mxu0
    %v2313 = vadd.f32 %v2272, %v2312
    %v2314 = vpop.f32.mrb[0].mxu0
    %v2315 = vadd.f32 %v2274, %v2314
    %v2316 = vpop.f32.mrb[0].mxu0
    %v2317 = vpop.f32.mrb[0].mxu0
    %2318 = vdwg.mxu0
    %2319 = vmatprep.subr.bf16.mxu0 %v778
    %2320 = vmatpush1.bf16.msra.mxu0 %v777
    %2321 = vmatprep.subr.bf16.mxu0 %v786
    %2322 = vmatpush1.bf16.msra.mxu0 %v785
    %2323 = vmatprep.subr.bf16.mxu0 %v794
    %2324 = vmatpush1.bf16.msra.mxu0 %v793
    %2325 = vmatprep.subr.bf16.mxu0 %v802
    %2326 = vmatpush1.bf16.msra.mxu0 %v801
    %2327 = vmatprep.subr.bf16.mxu0 %v810
    %2328 = vmatpush1.bf16.msra.mxu0 %v809
    %2329 = vmatprep.subr.bf16.mxu0 %v818
    %2330 = vmatpush1.bf16.msra.mxu0 %v817
    %2331 = vmatprep.subr.bf16.mxu0 %v826
    %2332 = vmatpush1.bf16.msra.mxu0 %v825
    %2333 = vmatprep.subr.bf16.mxu0 %v834
    %2334 = vmatpush1.bf16.msra.mxu0 %v833
    %2335 = vmatprep.subr.bf16.mxu0 %v842
    %2336 = vmatpush1.bf16.msra.mxu0 %v841
    %2337 = vmatprep.subr.bf16.mxu0 %v850
    %2338 = vmatpush1.bf16.msra.mxu0 %v849
    %2339 = vmatprep.subr.bf16.mxu0 %v858
    %2340 = vmatpush1.bf16.msra.mxu0 %v857
    %2341 = vmatprep.subr.bf16.mxu0 %v866
    %2342 = vmatpush1.bf16.msra.mxu0 %v865
    %2343 = vmatprep.subr.bf16.mxu0 %v874
    %2344 = vmatpush1.bf16.msra.mxu0 %v873
    %2345 = vmatprep.subr.bf16.mxu0 %v882
    %2346 = vmatpush1.bf16.msra.mxu0 %v881
    %2347 = vmatprep.subr.bf16.mxu0 %v890
    %2348 = vmatpush1.bf16.msra.mxu0 %v889
    %2349 = vmatprep.subr.bf16.mxu0 %v898
    %2350 = vmatpush1.bf16.msra.mxu0 %v897
    %2351 = vmatprep.mubr.bf16.mxu0 %v756
    %2352 = vmatmul.mubr.bf16.gmra.mrb[0].mxu0 %v755
    %v2353 = vpop.f32.mrb[0].mxu0
    %v2354 = vadd.f32 %v1568, %v2353
    %v2355 = vpop.f32.mrb[0].mxu0
    %v2356 = vadd.f32 %v1572, %v2355
    %v2357 = vpop.f32.mrb[0].mxu0
    %v2358 = vpop.f32.mrb[0].mxu0
    %2359 = vdwg.mxu0
    %2360 = vmatprep.subr.bf16.mxu0 %v906
    %2361 = vmatpush1.bf16.msra.mxu0 %v905
    %2362 = vmatprep.subr.bf16.mxu0 %v914
    %2363 = vmatpush1.bf16.msra.mxu0 %v913
    %2364 = vmatprep.subr.bf16.mxu0 %v922
    %2365 = vmatpush1.bf16.msra.mxu0 %v921
    %2366 = vmatprep.subr.bf16.mxu0 %v930
    %2367 = vmatpush1.bf16.msra.mxu0 %v929
    %2368 = vmatprep.subr.bf16.mxu0 %v938
    %2369 = vmatpush1.bf16.msra.mxu0 %v937
    %2370 = vmatprep.subr.bf16.mxu0 %v946
    %2371 = vmatpush1.bf16.msra.mxu0 %v945
    %2372 = vmatprep.subr.bf16.mxu0 %v954
    %2373 = vmatpush1.bf16.msra.mxu0 %v953
    %2374 = vmatprep.subr.bf16.mxu0 %v962
    %2375 = vmatpush1.bf16.msra.mxu0 %v961
    %2376 = vmatprep.subr.bf16.mxu0 %v970
    %2377 = vmatpush1.bf16.msra.mxu0 %v969
    %2378 = vmatprep.subr.bf16.mxu0 %v978
    %2379 = vmatpush1.bf16.msra.mxu0 %v977
    %2380 = vmatprep.subr.bf16.mxu0 %v986
    %2381 = vmatpush1.bf16.msra.mxu0 %v985
    %2382 = vmatprep.subr.bf16.mxu0 %v994
    %2383 = vmatpush1.bf16.msra.mxu0 %v993
    %2384 = vmatprep.subr.bf16.mxu0 %v1002
    %2385 = vmatpush1.bf16.msra.mxu0 %v1001
    %2386 = vmatprep.subr.bf16.mxu0 %v1010
    %2387 = vmatpush1.bf16.msra.mxu0 %v1009
    %2388 = vmatprep.subr.bf16.mxu0 %v1018
    %2389 = vmatpush1.bf16.msra.mxu0 %v1017
    %2390 = vmatprep.subr.bf16.mxu0 %v1026
    %2391 = vmatpush1.bf16.msra.mxu0 %v1025
    %2392 = vmatprep.mubr.bf16.mxu0 %v758
    %2393 = vmatmul.mubr.bf16.gmra.mrb[0].mxu0 %v757
    %v2394 = vpop.f32.mrb[0].mxu0
    %v2395 = vadd.f32 %v2354, %v2394
    %v2396 = vpop.f32.mrb[0].mxu0
    %v2397 = vadd.f32 %v2356, %v2396
    %v2398 = vpop.f32.mrb[0].mxu0
    %v2399 = vpop.f32.mrb[0].mxu0
    %2400 = vdwg.mxu0
    %2401 = vmatprep.subr.bf16.mxu0 %v1034
    %2402 = vmatpush1.bf16.msra.mxu0 %v1033
    %2403 = vmatprep.subr.bf16.mxu0 %v1042
    %2404 = vmatpush1.bf16.msra.mxu0 %v1041
    %2405 = vmatprep.subr.bf16.mxu0 %v1050
    %2406 = vmatpush1.bf16.msra.mxu0 %v1049
    %2407 = vmatprep.subr.bf16.mxu0 %v1058
    %2408 = vmatpush1.bf16.msra.mxu0 %v1057
    %2409 = vmatprep.subr.bf16.mxu0 %v1066
    %2410 = vmatpush1.bf16.msra.mxu0 %v1065
    %2411 = vmatprep.subr.bf16.mxu0 %v1074
    %2412 = vmatpush1.bf16.msra.mxu0 %v1073
    %2413 = vmatprep.subr.bf16.mxu0 %v1082
    %2414 = vmatpush1.bf16.msra.mxu0 %v1081
    %2415 = vmatprep.subr.bf16.mxu0 %v1090
    %2416 = vmatpush1.bf16.msra.mxu0 %v1089
    %2417 = vmatprep.subr.bf16.mxu0 %v1098
    %2418 = vmatpush1.bf16.msra.mxu0 %v1097
    %2419 = vmatprep.subr.bf16.mxu0 %v1106
    %2420 = vmatpush1.bf16.msra.mxu0 %v1105
    %2421 = vmatprep.subr.bf16.mxu0 %v1114
    %2422 = vmatpush1.bf16.msra.mxu0 %v1113
    %2423 = vmatprep.subr.bf16.mxu0 %v1122
    %2424 = vmatpush1.bf16.msra.mxu0 %v1121
    %2425 = vmatprep.subr.bf16.mxu0 %v1130
    %2426 = vmatpush1.bf16.msra.mxu0 %v1129
    %2427 = vmatprep.subr.bf16.mxu0 %v1138
    %2428 = vmatpush1.bf16.msra.mxu0 %v1137
    %2429 = vmatprep.subr.bf16.mxu0 %v1146
    %2430 = vmatpush1.bf16.msra.mxu0 %v1145
    %2431 = vmatprep.subr.bf16.mxu0 %v1154
    %2432 = vmatpush1.bf16.msra.mxu0 %v1153
    %2433 = vmatprep.mubr.bf16.mxu0 %v760
    %2434 = vmatmul.mubr.bf16.gmra.mrb[0].mxu0 %v759
    %v2435 = vpop.f32.mrb[0].mxu0
    %v2436 = vadd.f32 %v2395, %v2435
    %v2437 = vpop.f32.mrb[0].mxu0
    %v2438 = vadd.f32 %v2397, %v2437
    %v2439 = vpop.f32.mrb[0].mxu0
    %v2440 = vpop.f32.mrb[0].mxu0
    %2441 = vdwg.mxu0
    %2442 = vmatprep.subr.bf16.mxu0 %v1162
    %2443 = vmatpush1.bf16.msra.mxu0 %v1161
    %2444 = vmatprep.subr.bf16.mxu0 %v1170
    %2445 = vmatpush1.bf16.msra.mxu0 %v1169
    %2446 = vmatprep.subr.bf16.mxu0 %v1178
    %2447 = vmatpush1.bf16.msra.mxu0 %v1177
    %2448 = vmatprep.subr.bf16.mxu0 %v1186
    %2449 = vmatpush1.bf16.msra.mxu0 %v1185
    %2450 = vmatprep.subr.bf16.mxu0 %v1194
    %2451 = vmatpush1.bf16.msra.mxu0 %v1193
    %2452 = vmatprep.subr.bf16.mxu0 %v1202
    %2453 = vmatpush1.bf16.msra.mxu0 %v1201
    %2454 = vmatprep.subr.bf16.mxu0 %v1210
    %2455 = vmatpush1.bf16.msra.mxu0 %v1209
    %2456 = vmatprep.subr.bf16.mxu0 %v1218
    %2457 = vmatpush1.bf16.msra.mxu0 %v1217
    %2458 = vmatprep.subr.bf16.mxu0 %v1226
    %2459 = vmatpush1.bf16.msra.mxu0 %v1225
    %2460 = vmatprep.subr.bf16.mxu0 %v1234
    %2461 = vmatpush1.bf16.msra.mxu0 %v1233
    %2462 = vmatprep.subr.bf16.mxu0 %v1242
    %2463 = vmatpush1.bf16.msra.mxu0 %v1241
    %2464 = vmatprep.subr.bf16.mxu0 %v1250
    %2465 = vmatpush1.bf16.msra.mxu0 %v1249
    %2466 = vmatprep.subr.bf16.mxu0 %v1258
    %2467 = vmatpush1.bf16.msra.mxu0 %v1257
    %2468 = vmatprep.subr.bf16.mxu0 %v1266
    %2469 = vmatpush1.bf16.msra.mxu0 %v1265
    %2470 = vmatprep.subr.bf16.mxu0 %v1274
    %2471 = vmatpush1.bf16.msra.mxu0 %v1273
    %2472 = vmatprep.subr.bf16.mxu0 %v1282
    %2473 = vmatpush1.bf16.msra.mxu0 %v1281
    %2474 = vmatprep.mubr.bf16.mxu0 %v762
    %2475 = vmatmul.mubr.bf16.gmra.mrb[0].mxu0 %v761
    %v2476 = vpop.f32.mrb[0].mxu0
    %v2477 = vadd.f32 %v2436, %v2476
    %v2478 = vpop.f32.mrb[0].mxu0
    %v2479 = vadd.f32 %v2438, %v2478
    %v2480 = vpop.f32.mrb[0].mxu0
    %v2481 = vpop.f32.mrb[0].mxu0
    %2482 = vdwg.mxu0
    %2483 = vmatprep.subr.bf16.mxu0 %v1290
    %2484 = vmatpush1.bf16.msra.mxu0 %v1289
    %2485 = vmatprep.subr.bf16.mxu0 %v1298
    %2486 = vmatpush1.bf16.msra.mxu0 %v1297
    %2487 = vmatprep.subr.bf16.mxu0 %v1306
    %2488 = vmatpush1.bf16.msra.mxu0 %v1305
    %2489 = vmatprep.subr.bf16.mxu0 %v1314
    %2490 = vmatpush1.bf16.msra.mxu0 %v1313
    %2491 = vmatprep.subr.bf16.mxu0 %v1322
    %2492 = vmatpush1.bf16.msra.mxu0 %v1321
    %2493 = vmatprep.subr.bf16.mxu0 %v1330
    %2494 = vmatpush1.bf16.msra.mxu0 %v1329
    %2495 = vmatprep.subr.bf16.mxu0 %v1338
    %2496 = vmatpush1.bf16.msra.mxu0 %v1337
    %2497 = vmatprep.subr.bf16.mxu0 %v1346
    %2498 = vmatpush1.bf16.msra.mxu0 %v1345
    %2499 = vmatprep.subr.bf16.mxu0 %v1354
    %2500 = vmatpush1.bf16.msra.mxu0 %v1353
    %2501 = vmatprep.subr.bf16.mxu0 %v1362
    %2502 = vmatpush1.bf16.msra.mxu0 %v1361
    %2503 = vmatprep.subr.bf16.mxu0 %v1370
    %2504 = vmatpush1.bf16.msra.mxu0 %v1369
    %2505 = vmatprep.subr.bf16.mxu0 %v1378
    %2506 = vmatpush1.bf16.msra.mxu0 %v1377
    %2507 = vmatprep.subr.bf16.mxu0 %v1386
    %2508 = vmatpush1.bf16.msra.mxu0 %v1385
    %2509 = vmatprep.subr.bf16.mxu0 %v1394
    %2510 = vmatpush1.bf16.msra.mxu0 %v1393
    %2511 = vmatprep.subr.bf16.mxu0 %v1402
    %2512 = vmatpush1.bf16.msra.mxu0 %v1401
    %2513 = vmatprep.subr.bf16.mxu0 %v1410
    %2514 = vmatpush1.bf16.msra.mxu0 %v1409
    %2515 = vmatprep.mubr.bf16.mxu0 %v764
    %2516 = vmatmul.mubr.bf16.gmra.mrb[0].mxu0 %v763
    %v2517 = vpop.f32.mrb[0].mxu0
    %v2518 = vadd.f32 %v2477, %v2517
    %v2519 = vpop.f32.mrb[0].mxu0
    %v2520 = vadd.f32 %v2479, %v2519
    %v2521 = vpop.f32.mrb[0].mxu0
    %v2522 = vpop.f32.mrb[0].mxu0
    %2523 = vdwg.mxu0
    %2524 = vmatprep.subr.bf16.mxu0 %v1418
    %2525 = vmatpush1.bf16.msra.mxu0 %v1417
    %2526 = vmatprep.subr.bf16.mxu0 %v1426
    %2527 = vmatpush1.bf16.msra.mxu0 %v1425
    %2528 = vmatprep.subr.bf16.mxu0 %v1434
    %2529 = vmatpush1.bf16.msra.mxu0 %v1433
    %2530 = vmatprep.subr.bf16.mxu0 %v1442
    %2531 = vmatpush1.bf16.msra.mxu0 %v1441
    %2532 = vmatprep.subr.bf16.mxu0 %v1450
    %2533 = vmatpush1.bf16.msra.mxu0 %v1449
    %2534 = vmatprep.subr.bf16.mxu0 %v1458
    %2535 = vmatpush1.bf16.msra.mxu0 %v1457
    %2536 = vmatprep.subr.bf16.mxu0 %v1466
    %2537 = vmatpush1.bf16.msra.mxu0 %v1465
    %2538 = vmatprep.subr.bf16.mxu0 %v1474
    %2539 = vmatpush1.bf16.msra.mxu0 %v1473
    %2540 = vmatprep.subr.bf16.mxu0 %v1482
    %2541 = vmatpush1.bf16.msra.mxu0 %v1481
    %2542 = vmatprep.subr.bf16.mxu0 %v1490
    %2543 = vmatpush1.bf16.msra.mxu0 %v1489
    %2544 = vmatprep.subr.bf16.mxu0 %v1498
    %2545 = vmatpush1.bf16.msra.mxu0 %v1497
    %2546 = vmatprep.subr.bf16.mxu0 %v1506
    %2547 = vmatpush1.bf16.msra.mxu0 %v1505
    %2548 = vmatprep.subr.bf16.mxu0 %v1514
    %2549 = vmatpush1.bf16.msra.mxu0 %v1513
    %2550 = vmatprep.subr.bf16.mxu0 %v1522
    %2551 = vmatpush1.bf16.msra.mxu0 %v1521
    %2552 = vmatprep.subr.bf16.mxu0 %v1530
    %2553 = vmatpush1.bf16.msra.mxu0 %v1529
    %2554 = vmatprep.subr.bf16.mxu0 %v1538
    %2555 = vmatpush1.bf16.msra.mxu0 %v1537
    %2556 = vmatprep.mubr.bf16.mxu0 %v766
    %2557 = vmatmul.mubr.bf16.gmra.mrb[0].mxu0 %v765
    %v2558 = vpop.f32.mrb[0].mxu0
    %v2559 = vadd.f32 %v2518, %v2558
    %v2560 = vpop.f32.mrb[0].mxu0
    %v2561 = vadd.f32 %v2520, %v2560
    %v2562 = vpop.f32.mrb[0].mxu0
    %v2563 = vpop.f32.mrb[0].mxu0
    %2564 = vdwg.mxu0
    %v2565 = vmax.f32 %v1821, 0.0
    %v2566 = vmax.f32 %v1823, 0.0
    %v2567 = vmax.f32 %v2067, 0.0
    %v2568 = vmax.f32 %v2069, 0.0
    %v2569 = vmax.f32 %v2313, 0.0
    %v2570 = vmax.f32 %v2315, 0.0
    %v2571 = vmax.f32 %v2559, 0.0
    %v2572 = vmax.f32 %v2561, 0.0
    %v2573 = vpack.c.bf16 %v2565, %v2565
    %v2574 = vpack.c.bf16 %v2566, %v2566
    %v2575 = vpack.c.bf16 %v2567, %v2567
    %v2576 = vpack.c.bf16 %v2568, %v2568
    %v2577 = vpack.c.bf16 %v2569, %v2569
    %v2578 = vpack.c.bf16 %v2570, %v2570
    %v2579 = vpack.c.bf16 %v2571, %v2571
    %v2580 = vpack.c.bf16 %v2572, %v2572
    %s2581 = smul.u32 4, 128
    %s2582 = smul.u32 %s2581, 2
    %s2583 = sshll.u32 %s2582, 4
    %2584 = dma.done %s170, %s2583
    %v2585 = vld [vmem:[#allocation4] sm:$0xff]
    %v2586 = vld [vmem:[#allocation4 + $0x8] sm:$0xff]
    %v2587 = vld [vmem:[#allocation4 + $0x10] sm:$0xff]
    %v2588 = vld [vmem:[#allocation4 + $0x18] sm:$0xff]
    %v2589 = vld [vmem:[#allocation4 + $0x20] sm:$0xff]
    %v2590 = vld [vmem:[#allocation4 + $0x28] sm:$0xff]
    %v2591 = vld [vmem:[#allocation4 + $0x30] sm:$0xff]
    %v2592 = vld [vmem:[#allocation4 + $0x38] sm:$0xff]
    %v2593 = vld [vmem:[#allocation4 + $0x40] sm:$0xff]
    %v2594 = vld [vmem:[#allocation4 + $0x48] sm:$0xff]
    %v2595 = vld [vmem:[#allocation4 + $0x50] sm:$0xff]
    %v2596 = vld [vmem:[#allocation4 + $0x58] sm:$0xff]
    %v2597 = vld [vmem:[#allocation4 + $0x60] sm:$0xff]
    %v2598 = vld [vmem:[#allocation4 + $0x68] sm:$0xff]
    %v2599 = vld [vmem:[#allocation4 + $0x70] sm:$0xff]
    %v2600 = vld [vmem:[#allocation4 + $0x78] sm:$0xff]
    %v2601 = vld [vmem:[#allocation4 + $0x80] sm:$0xff]
    %v2602 = vld [vmem:[#allocation4 + $0x88] sm:$0xff]
    %v2603 = vld [vmem:[#allocation4 + $0x90] sm:$0xff]
    %v2604 = vld [vmem:[#allocation4 + $0x98] sm:$0xff]
    %v2605 = vld [vmem:[#allocation4 + $0xa0] sm:$0xff]
    %v2606 = vld [vmem:[#allocation4 + $0xa8] sm:$0xff]
    %v2607 = vld [vmem:[#allocation4 + $0xb0] sm:$0xff]
    %v2608 = vld [vmem:[#allocation4 + $0xb8] sm:$0xff]
    %v2609 = vld [vmem:[#allocation4 + $0xc0] sm:$0xff]
    %v2610 = vld [vmem:[#allocation4 + $0xc8] sm:$0xff]
    %v2611 = vld [vmem:[#allocation4 + $0xd0] sm:$0xff]
    %v2612 = vld [vmem:[#allocation4 + $0xd8] sm:$0xff]
    %v2613 = vld [vmem:[#allocation4 + $0xe0] sm:$0xff]
    %v2614 = vld [vmem:[#allocation4 + $0xe8] sm:$0xff]
    %v2615 = vld [vmem:[#allocation4 + $0xf0] sm:$0xff]
    %v2616 = vld [vmem:[#allocation4 + $0xf8] sm:$0xff]
    %v2617 = vld [vmem:[#allocation4 + $0x100] sm:$0xff]
    %v2618 = vld [vmem:[#allocation4 + $0x108] sm:$0xff]
    %v2619 = vld [vmem:[#allocation4 + $0x110] sm:$0xff]
    %v2620 = vld [vmem:[#allocation4 + $0x118] sm:$0xff]
    %v2621 = vld [vmem:[#allocation4 + $0x120] sm:$0xff]
    %v2622 = vld [vmem:[#allocation4 + $0x128] sm:$0xff]
    %v2623 = vld [vmem:[#allocation4 + $0x130] sm:$0xff]
    %v2624 = vld [vmem:[#allocation4 + $0x138] sm:$0xff]
    %v2625 = vld [vmem:[#allocation4 + $0x140] sm:$0xff]
    %v2626 = vld [vmem:[#allocation4 + $0x148] sm:$0xff]
    %v2627 = vld [vmem:[#allocation4 + $0x150] sm:$0xff]
    %v2628 = vld [vmem:[#allocation4 + $0x158] sm:$0xff]
    %v2629 = vld [vmem:[#allocation4 + $0x160] sm:$0xff]
    %v2630 = vld [vmem:[#allocation4 + $0x168] sm:$0xff]
    %v2631 = vld [vmem:[#allocation4 + $0x170] sm:$0xff]
    %v2632 = vld [vmem:[#allocation4 + $0x178] sm:$0xff]
    %v2633 = vld [vmem:[#allocation4 + $0x180] sm:$0xff]
    %v2634 = vld [vmem:[#allocation4 + $0x188] sm:$0xff]
    %v2635 = vld [vmem:[#allocation4 + $0x190] sm:$0xff]
    %v2636 = vld [vmem:[#allocation4 + $0x198] sm:$0xff]
    %v2637 = vld [vmem:[#allocation4 + $0x1a0] sm:$0xff]
    %v2638 = vld [vmem:[#allocation4 + $0x1a8] sm:$0xff]
    %v2639 = vld [vmem:[#allocation4 + $0x1b0] sm:$0xff]
    %v2640 = vld [vmem:[#allocation4 + $0x1b8] sm:$0xff]
    %v2641 = vld [vmem:[#allocation4 + $0x1c0] sm:$0xff]
    %v2642 = vld [vmem:[#allocation4 + $0x1c8] sm:$0xff]
    %v2643 = vld [vmem:[#allocation4 + $0x1d0] sm:$0xff]
    %v2644 = vld [vmem:[#allocation4 + $0x1d8] sm:$0xff]
    %v2645 = vld [vmem:[#allocation4 + $0x1e0] sm:$0xff]
    %v2646 = vld [vmem:[#allocation4 + $0x1e8] sm:$0xff]
    %v2647 = vld [vmem:[#allocation4 + $0x1f0] sm:$0xff]
    %v2648 = vld [vmem:[#allocation4 + $0x1f8] sm:$0xff]
    %v2649 = vld [vmem:[#allocation4 + $0x200] sm:$0xff]
    %v2650 = vld [vmem:[#allocation4 + $0x208] sm:$0xff]
    %v2651 = vld [vmem:[#allocation4 + $0x210] sm:$0xff]
    %v2652 = vld [vmem:[#allocation4 + $0x218] sm:$0xff]
    %v2653 = vld [vmem:[#allocation4 + $0x220] sm:$0xff]
    %v2654 = vld [vmem:[#allocation4 + $0x228] sm:$0xff]
    %v2655 = vld [vmem:[#allocation4 + $0x230] sm:$0xff]
    %v2656 = vld [vmem:[#allocation4 + $0x238] sm:$0xff]
    %v2657 = vld [vmem:[#allocation4 + $0x240] sm:$0xff]
    %v2658 = vld [vmem:[#allocation4 + $0x248] sm:$0xff]
    %v2659 = vld [vmem:[#allocation4 + $0x250] sm:$0xff]
    %v2660 = vld [vmem:[#allocation4 + $0x258] sm:$0xff]
    %v2661 = vld [vmem:[#allocation4 + $0x260] sm:$0xff]
    %v2662 = vld [vmem:[#allocation4 + $0x268] sm:$0xff]
    %v2663 = vld [vmem:[#allocation4 + $0x270] sm:$0xff]
    %v2664 = vld [vmem:[#allocation4 + $0x278] sm:$0xff]
    %v2665 = vld [vmem:[#allocation4 + $0x280] sm:$0xff]
    %v2666 = vld [vmem:[#allocation4 + $0x288] sm:$0xff]
    %v2667 = vld [vmem:[#allocation4 + $0x290] sm:$0xff]
    %v2668 = vld [vmem:[#allocation4 + $0x298] sm:$0xff]
    %v2669 = vld [vmem:[#allocation4 + $0x2a0] sm:$0xff]
    %v2670 = vld [vmem:[#allocation4 + $0x2a8] sm:$0xff]
    %v2671 = vld [vmem:[#allocation4 + $0x2b0] sm:$0xff]
    %v2672 = vld [vmem:[#allocation4 + $0x2b8] sm:$0xff]
    %v2673 = vld [vmem:[#allocation4 + $0x2c0] sm:$0xff]
    %v2674 = vld [vmem:[#allocation4 + $0x2c8] sm:$0xff]
    %v2675 = vld [vmem:[#allocation4 + $0x2d0] sm:$0xff]
    %v2676 = vld [vmem:[#allocation4 + $0x2d8] sm:$0xff]
    %v2677 = vld [vmem:[#allocation4 + $0x2e0] sm:$0xff]
    %v2678 = vld [vmem:[#allocation4 + $0x2e8] sm:$0xff]
    %v2679 = vld [vmem:[#allocation4 + $0x2f0] sm:$0xff]
    %v2680 = vld [vmem:[#allocation4 + $0x2f8] sm:$0xff]
    %v2681 = vld [vmem:[#allocation4 + $0x300] sm:$0xff]
    %v2682 = vld [vmem:[#allocation4 + $0x308] sm:$0xff]
    %v2683 = vld [vmem:[#allocation4 + $0x310] sm:$0xff]
    %v2684 = vld [vmem:[#allocation4 + $0x318] sm:$0xff]
    %v2685 = vld [vmem:[#allocation4 + $0x320] sm:$0xff]
    %v2686 = vld [vmem:[#allocation4 + $0x328] sm:$0xff]
    %v2687 = vld [vmem:[#allocation4 + $0x330] sm:$0xff]
    %v2688 = vld [vmem:[#allocation4 + $0x338] sm:$0xff]
    %v2689 = vld [vmem:[#allocation4 + $0x340] sm:$0xff]
    %v2690 = vld [vmem:[#allocation4 + $0x348] sm:$0xff]
    %v2691 = vld [vmem:[#allocation4 + $0x350] sm:$0xff]
    %v2692 = vld [vmem:[#allocation4 + $0x358] sm:$0xff]
    %v2693 = vld [vmem:[#allocation4 + $0x360] sm:$0xff]
    %v2694 = vld [vmem:[#allocation4 + $0x368] sm:$0xff]
    %v2695 = vld [vmem:[#allocation4 + $0x370] sm:$0xff]
    %v2696 = vld [vmem:[#allocation4 + $0x378] sm:$0xff]
    %v2697 = vld [vmem:[#allocation4 + $0x380] sm:$0xff]
    %v2698 = vld [vmem:[#allocation4 + $0x388] sm:$0xff]
    %v2699 = vld [vmem:[#allocation4 + $0x390] sm:$0xff]
    %v2700 = vld [vmem:[#allocation4 + $0x398] sm:$0xff]
    %v2701 = vld [vmem:[#allocation4 + $0x3a0] sm:$0xff]
    %v2702 = vld [vmem:[#allocation4 + $0x3a8] sm:$0xff]
    %v2703 = vld [vmem:[#allocation4 + $0x3b0] sm:$0xff]
    %v2704 = vld [vmem:[#allocation4 + $0x3b8] sm:$0xff]
    %v2705 = vld [vmem:[#allocation4 + $0x3c0] sm:$0xff]
    %v2706 = vld [vmem:[#allocation4 + $0x3c8] sm:$0xff]
    %v2707 = vld [vmem:[#allocation4 + $0x3d0] sm:$0xff]
    %v2708 = vld [vmem:[#allocation4 + $0x3d8] sm:$0xff]
    %v2709 = vld [vmem:[#allocation4 + $0x3e0] sm:$0xff]
    %v2710 = vld [vmem:[#allocation4 + $0x3e8] sm:$0xff]
    %v2711 = vld [vmem:[#allocation4 + $0x3f0] sm:$0xff]
    %v2712 = vld [vmem:[#allocation4 + $0x3f8] sm:$0xff]
    %v2713 = vld [vmem:[#allocation14] sm:$0x3]
    %v2715 = vlaneseq
    %v2716 = vshrl.u32 %v2715, 7
    %v2717 = vsub.s32 0, %v2716
    %v2718 = vrot.slane %v2713, %v2717
    %v2719 = vlaneseq
    %v2720 = vshrl.u32 %v2719, 7
    %v2721 = vsub.s32 1, %v2720
    %v2722 = vrot.slane %v2713, %v2721
    %2725 = vmatprep.subr.bf16.mxu0 %v2586
    %2726 = vmatpush1.bf16.msra.mxu0 %v2585
    %2727 = vmatprep.subr.bf16.mxu0 %v2588
    %2728 = vmatpush1.bf16.msra.mxu0 %v2587
    %2729 = vmatprep.subr.bf16.mxu0 %v2590
    %2730 = vmatpush1.bf16.msra.mxu0 %v2589
    %2731 = vmatprep.subr.bf16.mxu0 %v2592
    %2732 = vmatpush1.bf16.msra.mxu0 %v2591
    %2733 = vmatprep.subr.bf16.mxu0 %v2594
    %2734 = vmatpush1.bf16.msra.mxu0 %v2593
    %2735 = vmatprep.subr.bf16.mxu0 %v2596
    %2736 = vmatpush1.bf16.msra.mxu0 %v2595
    %2737 = vmatprep.subr.bf16.mxu0 %v2598
    %2738 = vmatpush1.bf16.msra.mxu0 %v2597
    %2739 = vmatprep.subr.bf16.mxu0 %v2600
    %2740 = vmatpush1.bf16.msra.mxu0 %v2599
    %2741 = vmatprep.subr.bf16.mxu0 %v2602
    %2742 = vmatpush1.bf16.msra.mxu0 %v2601
    %2743 = vmatprep.subr.bf16.mxu0 %v2604
    %2744 = vmatpush1.bf16.msra.mxu0 %v2603
    %2745 = vmatprep.subr.bf16.mxu0 %v2606
    %2746 = vmatpush1.bf16.msra.mxu0 %v2605
    %2747 = vmatprep.subr.bf16.mxu0 %v2608
    %2748 = vmatpush1.bf16.msra.mxu0 %v2607
    %2749 = vmatprep.subr.bf16.mxu0 %v2610
    %2750 = vmatpush1.bf16.msra.mxu0 %v2609
    %2751 = vmatprep.subr.bf16.mxu0 %v2612
    %2752 = vmatpush1.bf16.msra.mxu0 %v2611
    %2753 = vmatprep.subr.bf16.mxu0 %v2614
    %2754 = vmatpush1.bf16.msra.mxu0 %v2613
    %2755 = vmatprep.subr.bf16.mxu0 %v2616
    %2756 = vmatpush1.bf16.msra.mxu0 %v2615
    %2757 = vmatprep.mubr.bf16.mxu0 %v2574
    %2758 = vmatmul.mubr.bf16.gmra.mrb[0].mxu0 %v2573
    %v2759 = vpop.f32.mrb[0].mxu0
    %v2760 = vadd.f32 %v2718, %v2759
    %v2761 = vpop.f32.mrb[0].mxu0
    %v2762 = vadd.f32 %v2722, %v2761
    %v2763 = vpop.f32.mrb[0].mxu0
    %v2764 = vpop.f32.mrb[0].mxu0
    %2765 = vdwg.mxu0
    %2766 = vmatprep.subr.bf16.mxu0 %v2618
    %2767 = vmatpush1.bf16.msra.mxu0 %v2617
    %2768 = vmatprep.subr.bf16.mxu0 %v2620
    %2769 = vmatpush1.bf16.msra.mxu0 %v2619
    %2770 = vmatprep.subr.bf16.mxu0 %v2622
    %2771 = vmatpush1.bf16.msra.mxu0 %v2621
    %2772 = vmatprep.subr.bf16.mxu0 %v2624
    %2773 = vmatpush1.bf16.msra.mxu0 %v2623
    %2774 = vmatprep.subr.bf16.mxu0 %v2626
    %2775 = vmatpush1.bf16.msra.mxu0 %v2625
    %2776 = vmatprep.subr.bf16.mxu0 %v2628
    %2777 = vmatpush1.bf16.msra.mxu0 %v2627
    %2778 = vmatprep.subr.bf16.mxu0 %v2630
    %2779 = vmatpush1.bf16.msra.mxu0 %v2629
    %2780 = vmatprep.subr.bf16.mxu0 %v2632
    %2781 = vmatpush1.bf16.msra.mxu0 %v2631
    %2782 = vmatprep.subr.bf16.mxu0 %v2634
    %2783 = vmatpush1.bf16.msra.mxu0 %v2633
    %2784 = vmatprep.subr.bf16.mxu0 %v2636
    %2785 = vmatpush1.bf16.msra.mxu0 %v2635
    %2786 = vmatprep.subr.bf16.mxu0 %v2638
    %2787 = vmatpush1.bf16.msra.mxu0 %v2637
    %2788 = vmatprep.subr.bf16.mxu0 %v2640
    %2789 = vmatpush1.bf16.msra.mxu0 %v2639
    %2790 = vmatprep.subr.bf16.mxu0 %v2642
    %2791 = vmatpush1.bf16.msra.mxu0 %v2641
    %2792 = vmatprep.subr.bf16.mxu0 %v2644
    %2793 = vmatpush1.bf16.msra.mxu0 %v2643
    %2794 = vmatprep.subr.bf16.mxu0 %v2646
    %2795 = vmatpush1.bf16.msra.mxu0 %v2645
    %2796 = vmatprep.subr.bf16.mxu0 %v2648
    %2797 = vmatpush1.bf16.msra.mxu0 %v2647
    %2798 = vmatprep.mubr.bf16.mxu0 %v2576
    %2799 = vmatmul.mubr.bf16.gmra.mrb[0].mxu0 %v2575
    %v2800 = vpop.f32.mrb[0].mxu0
    %v2801 = vadd.f32 %v2760, %v2800
    %v2802 = vpop.f32.mrb[0].mxu0
    %v2803 = vadd.f32 %v2762, %v2802
    %v2804 = vpop.f32.mrb[0].mxu0
    %v2805 = vpop.f32.mrb[0].mxu0
    %2806 = vdwg.mxu0
    %2807 = vmatprep.subr.bf16.mxu0 %v2650
    %2808 = vmatpush1.bf16.msra.mxu0 %v2649
    %2809 = vmatprep.subr.bf16.mxu0 %v2652
    %2810 = vmatpush1.bf16.msra.mxu0 %v2651
    %2811 = vmatprep.subr.bf16.mxu0 %v2654
    %2812 = vmatpush1.bf16.msra.mxu0 %v2653
    %2813 = vmatprep.subr.bf16.mxu0 %v2656
    %2814 = vmatpush1.bf16.msra.mxu0 %v2655
    %2815 = vmatprep.subr.bf16.mxu0 %v2658
    %2816 = vmatpush1.bf16.msra.mxu0 %v2657
    %2817 = vmatprep.subr.bf16.mxu0 %v2660
    %2818 = vmatpush1.bf16.msra.mxu0 %v2659
    %2819 = vmatprep.subr.bf16.mxu0 %v2662
    %2820 = vmatpush1.bf16.msra.mxu0 %v2661
    %2821 = vmatprep.subr.bf16.mxu0 %v2664
    %2822 = vmatpush1.bf16.msra.mxu0 %v2663
    %2823 = vmatprep.subr.bf16.mxu0 %v2666
    %2824 = vmatpush1.bf16.msra.mxu0 %v2665
    %2825 = vmatprep.subr.bf16.mxu0 %v2668
    %2826 = vmatpush1.bf16.msra.mxu0 %v2667
    %2827 = vmatprep.subr.bf16.mxu0 %v2670
    %2828 = vmatpush1.bf16.msra.mxu0 %v2669
    %2829 = vmatprep.subr.bf16.mxu0 %v2672
    %2830 = vmatpush1.bf16.msra.mxu0 %v2671
    %2831 = vmatprep.subr.bf16.mxu0 %v2674
    %2832 = vmatpush1.bf16.msra.mxu0 %v2673
    %2833 = vmatprep.subr.bf16.mxu0 %v2676
    %2834 = vmatpush1.bf16.msra.mxu0 %v2675
    %2835 = vmatprep.subr.bf16.mxu0 %v2678
    %2836 = vmatpush1.bf16.msra.mxu0 %v2677
    %2837 = vmatprep.subr.bf16.mxu0 %v2680
    %2838 = vmatpush1.bf16.msra.mxu0 %v2679
    %2839 = vmatprep.mubr.bf16.mxu0 %v2578
    %2840 = vmatmul.mubr.bf16.gmra.mrb[0].mxu0 %v2577
    %v2841 = vpop.f32.mrb[0].mxu0
    %v2842 = vadd.f32 %v2801, %v2841
    %v2843 = vpop.f32.mrb[0].mxu0
    %v2844 = vadd.f32 %v2803, %v2843
    %v2845 = vpop.f32.mrb[0].mxu0
    %v2846 = vpop.f32.mrb[0].mxu0
    %2847 = vdwg.mxu0
    %2848 = vmatprep.subr.bf16.mxu0 %v2682
    %2849 = vmatpush1.bf16.msra.mxu0 %v2681
    %2850 = vmatprep.subr.bf16.mxu0 %v2684
    %2851 = vmatpush1.bf16.msra.mxu0 %v2683
    %2852 = vmatprep.subr.bf16.mxu0 %v2686
    %2853 = vmatpush1.bf16.msra.mxu0 %v2685
    %2854 = vmatprep.subr.bf16.mxu0 %v2688
    %2855 = vmatpush1.bf16.msra.mxu0 %v2687
    %2856 = vmatprep.subr.bf16.mxu0 %v2690
    %2857 = vmatpush1.bf16.msra.mxu0 %v2689
    %2858 = vmatprep.subr.bf16.mxu0 %v2692
    %2859 = vmatpush1.bf16.msra.mxu0 %v2691
    %2860 = vmatprep.subr.bf16.mxu0 %v2694
    %2861 = vmatpush1.bf16.msra.mxu0 %v2693
    %2862 = vmatprep.subr.bf16.mxu0 %v2696
    %2863 = vmatpush1.bf16.msra.mxu0 %v2695
    %2864 = vmatprep.subr.bf16.mxu0 %v2698
    %2865 = vmatpush1.bf16.msra.mxu0 %v2697
    %2866 = vmatprep.subr.bf16.mxu0 %v2700
    %2867 = vmatpush1.bf16.msra.mxu0 %v2699
    %2868 = vmatprep.subr.bf16.mxu0 %v2702
    %2869 = vmatpush1.bf16.msra.mxu0 %v2701
    %2870 = vmatprep.subr.bf16.mxu0 %v2704
    %2871 = vmatpush1.bf16.msra.mxu0 %v2703
    %2872 = vmatprep.subr.bf16.mxu0 %v2706
    %2873 = vmatpush1.bf16.msra.mxu0 %v2705
    %2874 = vmatprep.subr.bf16.mxu0 %v2708
    %2875 = vmatpush1.bf16.msra.mxu0 %v2707
    %2876 = vmatprep.subr.bf16.mxu0 %v2710
    %2877 = vmatpush1.bf16.msra.mxu0 %v2709
    %2878 = vmatprep.subr.bf16.mxu0 %v2712
    %2879 = vmatpush1.bf16.msra.mxu0 %v2711
    %2880 = vmatprep.mubr.bf16.mxu0 %v2580
    %2881 = vmatmul.mubr.bf16.gmra.mrb[0].mxu0 %v2579
    %v2882 = vpop.f32.mrb[0].mxu0
    %v2883 = vadd.f32 %v2842, %v2882
    %v2884 = vpop.f32.mrb[0].mxu0
    %v2885 = vadd.f32 %v2844, %v2884
    %v2886 = vpop.f32.mrb[0].mxu0
    %v2887 = vpop.f32.mrb[0].mxu0
    %2888 = vdwg.mxu0
    %v2889 = vmax.f32 %v2883, 0.0
    %v2890 = vmax.f32 %v2885, 0.0
    %v2891 = vpack.c.bf16 %v2889, %v2889
    %v2892 = vpack.c.bf16 %v2890, %v2890
    %s2893 = smul.u32 %s230, 1
    %s2894 = sshll.u32 %s2893, 4
    %2895 = dma.done %s205, %s2894
    %v2896 = vld [vmem:[#allocation5] sm:$0xff]
    %v2897 = vld [vmem:[#allocation5 + $0x8] sm:$0xff]
    %v2898 = vld [vmem:[#allocation5 + $0x10] sm:$0xff]
    %v2899 = vld [vmem:[#allocation5 + $0x18] sm:$0xff]
    %v2900 = vld [vmem:[#allocation5 + $0x20] sm:$0xff]
    %v2901 = vld [vmem:[#allocation5 + $0x28] sm:$0xff]
    %v2902 = vld [vmem:[#allocation5 + $0x30] sm:$0xff]
    %v2903 = vld [vmem:[#allocation5 + $0x38] sm:$0xff]
    %v2904 = vld [vmem:[#allocation5 + $0x40] sm:$0xff]
    %v2905 = vld [vmem:[#allocation5 + $0x48] sm:$0xff]
    %v2906 = vld [vmem:[#allocation5 + $0x50] sm:$0xff]
    %v2907 = vld [vmem:[#allocation5 + $0x58] sm:$0xff]
    %v2908 = vld [vmem:[#allocation5 + $0x60] sm:$0xff]
    %v2909 = vld [vmem:[#allocation5 + $0x68] sm:$0xff]
    %v2910 = vld [vmem:[#allocation5 + $0x70] sm:$0xff]
    %v2911 = vld [vmem:[#allocation5 + $0x78] sm:$0xff]
    %v2912 = vld [vmem:[#allocation16] sm:$0x1]
    %v2914 = vlaneseq
    %v2915 = vshrl.u32 %v2914, 7
    %v2916 = vsub.s32 0, %v2915
    %v2917 = vrot.slane %v2912, %v2916
    %2919 = vmatprep.subr.bf16.mxu0 0
    %2920 = vmatpush1.bf16.msra.mxu0 %v2896
    %2921 = vmatprep.subr.bf16.mxu0 0
    %2922 = vmatpush1.bf16.msra.mxu0 %v2897
    %2923 = vmatprep.subr.bf16.mxu0 0
    %2924 = vmatpush1.bf16.msra.mxu0 %v2898
    %2925 = vmatprep.subr.bf16.mxu0 0
    %2926 = vmatpush1.bf16.msra.mxu0 %v2899
    %2927 = vmatprep.subr.bf16.mxu0 0
    %2928 = vmatpush1.bf16.msra.mxu0 %v2900
    %2929 = vmatprep.subr.bf16.mxu0 0
    %2930 = vmatpush1.bf16.msra.mxu0 %v2901
    %2931 = vmatprep.subr.bf16.mxu0 0
    %2932 = vmatpush1.bf16.msra.mxu0 %v2902
    %2933 = vmatprep.subr.bf16.mxu0 0
    %2934 = vmatpush1.bf16.msra.mxu0 %v2903
    %2935 = vmatprep.subr.bf16.mxu0 0
    %2936 = vmatpush1.bf16.msra.mxu0 %v2904
    %2937 = vmatprep.subr.bf16.mxu0 0
    %2938 = vmatpush1.bf16.msra.mxu0 %v2905
    %2939 = vmatprep.subr.bf16.mxu0 0
    %2940 = vmatpush1.bf16.msra.mxu0 %v2906
    %2941 = vmatprep.subr.bf16.mxu0 0
    %2942 = vmatpush1.bf16.msra.mxu0 %v2907
    %2943 = vmatprep.subr.bf16.mxu0 0
    %2944 = vmatpush1.bf16.msra.mxu0 %v2908
    %2945 = vmatprep.subr.bf16.mxu0 0
    %2946 = vmatpush1.bf16.msra.mxu0 %v2909
    %2947 = vmatprep.subr.bf16.mxu0 0
    %2948 = vmatpush1.bf16.msra.mxu0 %v2910
    %2949 = vmatprep.subr.bf16.mxu0 0
    %2950 = vmatpush1.bf16.msra.mxu0 %v2911
    %2951 = vmatprep.mubr.bf16.mxu0 %v2892
    %2952 = vmatmul.mubr.bf16.gmra.mrb[0].mxu0 %v2891
    %v2953 = vpop.f32.mrb[0].mxu0
    %v2954 = vadd.f32 %v2917, %v2953
    %v2955 = vpop.f32.mrb[0].mxu0
    %v2956 = vpop.f32.mrb[0].mxu0
    %v2957 = vpop.f32.mrb[0].mxu0
    %2958 = vdwg.mxu0
    %v2959 = vmax.f32 %v2954, 0.0
    %v2960 = vpack.c.bf16 %v2959, %v2959
    %s2961 = smul.u32 4, 16
    %s2962 = smul.u32 %s2961, 1
    %s2963 = sshll.u32 %s2962, 4
    %2964 = dma.done %s217, %s2963
    %v2965 = vld [vmem:[#allocation6] sm:$0xff]
    %v2966 = vld [vmem:[#allocation6 + $0x8] sm:$0xff]
    %v2967 = vld [vmem:[#allocation6 + $0x10] sm:$0xff]
    %v2968 = vld [vmem:[#allocation6 + $0x18] sm:$0xff]
    %v2969 = vld [vmem:[#allocation6 + $0x20] sm:$0xff]
    %v2970 = vld [vmem:[#allocation6 + $0x28] sm:$0xff]
    %v2971 = vld [vmem:[#allocation6 + $0x30] sm:$0xff]
    %v2972 = vld [vmem:[#allocation6 + $0x38] sm:$0xff]
    %v2973 = vld [vmem:[#allocation17] sm:$0x1]
    %v2975 = vlaneseq
    %v2976 = vshrl.u32 %v2975, 7
    %v2977 = vsub.s32 0, %v2976
    %v2978 = vrot.slane %v2973, %v2977
    %2980 = vmatprep.subr.bf16.mxu0 0
    %2981 = vmatpush1.bf16.msra.mxu0 %v2965
    %2982 = vmatprep.subr.bf16.mxu0 0
    %2983 = vmatpush1.bf16.msra.mxu0 %v2966
    %2984 = vmatprep.subr.bf16.mxu0 0
    %2985 = vmatpush1.bf16.msra.mxu0 %v2967
    %2986 = vmatprep.subr.bf16.mxu0 0
    %2987 = vmatpush1.bf16.msra.mxu0 %v2968
    %2988 = vmatprep.subr.bf16.mxu0 0
    %2989 = vmatpush1.bf16.msra.mxu0 %v2969
    %2990 = vmatprep.subr.bf16.mxu0 0
    %2991 = vmatpush1.bf16.msra.mxu0 %v2970
    %2992 = vmatprep.subr.bf16.mxu0 0
    %2993 = vmatpush1.bf16.msra.mxu0 %v2971
    %2994 = vmatprep.subr.bf16.mxu0 0
    %2995 = vmatpush1.bf16.msra.mxu0 %v2972
    %2996 = vmatprep.subr.bf16.mxu0 0
    %2997 = vmatpush1.bf16.msra.mxu0 0
    %2998 = vmatprep.subr.bf16.mxu0 0
    %2999 = vmatpush1.bf16.msra.mxu0 0
    %3000 = vmatprep.subr.bf16.mxu0 0
    %3001 = vmatpush1.bf16.msra.mxu0 0
    %3002 = vmatprep.subr.bf16.mxu0 0
    %3003 = vmatpush1.bf16.msra.mxu0 0
    %3004 = vmatprep.subr.bf16.mxu0 0
    %3005 = vmatpush1.bf16.msra.mxu0 0
    %3006 = vmatprep.subr.bf16.mxu0 0
    %3007 = vmatpush1.bf16.msra.mxu0 0
    %3008 = vmatprep.subr.bf16.mxu0 0
    %3009 = vmatpush1.bf16.msra.mxu0 0
    %3010 = vmatprep.subr.bf16.mxu0 0
    %3011 = vmatpush1.bf16.msra.mxu0 0
    %3012 = vmatprep.mubr.bf16.mxu0 0
    %3013 = vmatmul.mubr.bf16.gmra.mrb[0].mxu0 %v2960
    %v3014 = vpop.f32.mrb[0].mxu0
    %v3015 = vadd.f32 %v2978, %v3014
    %v3016 = vpop.f32.mrb[0].mxu0
    %v3017 = vpop.f32.mrb[0].mxu0
    %v3018 = vpop.f32.mrb[0].mxu0
    %3019 = vdwg.mxu0
    %3020 = vst [vmem:[#allocation19] sm:$0xff] %v3015
    // Predicated region
    $region58: #{tpu_custom_call.1} parent=1 // pred_check
      _
    $region59: #{tpu_custom_call.1} parent=1 // pred_check_branch
      %3022 = sbr.rel (0) target = $region61
    $region60: #{tpu_custom_call.1} parent=1 // pred_region
      %s3024 = ssub.s32 128, 128
      %3025 = vsyncadd [#allocation10], %s3024
      %s3027 = sshll.u32 [#allocation19], 4
      %s3028 = int_to_ptr.vmem [resolvable:$true] %s3027
      %3030 = dma.vmem_to_hbm [thread:$0]  %s3028, 128, %s11, [#allocation10]
    $region61: #{tpu_custom_call.1} parent=1 // pred_fallthru
      _
    // Predicated region
    $region62: #{tpu_custom_call.1} parent=1 // pred_check
      _
    $region63: #{tpu_custom_call.1} parent=1 // pred_check_branch
      %3032 = sbr.rel (0) target = $region65
    $region64: #{tpu_custom_call.1} parent=1 // pred_region
      %3033 = dma.done [#allocation10], 128
    $region65: #{tpu_custom_call.1} parent=1 // pred_fallthru
      _
    %3034 = vsyncpa [#allocation9], 1
    %3035 = vsyncpa [#allocation12], 1
    %3036 = vsyncpa [#allocation15], 1
    %3037 = vsyncpa [#allocation18], 1
    %3038 = vsyncpa [#allocation10], 1
  %3039 = vsyncmov [#allocation7]
  %s3040 = vpop.sfrf %3039
  %p3041 = scmp.eq.s32.totalorder %s3040, 0
  %p3042 = pneg %p3041
  %3044 = shalt.err (%p3042)
  %s3045 = scalar_lea.sflag [#allocation7], 1
  %3046 = vsyncmov %s3045
  %s3047 = vpop.sfrf %3046
  %p3048 = scmp.eq.s32.totalorder %s3047, 0
  %p3049 = pneg %p3048
  %3051 = shalt.err (%p3049)
  %s3052 = scalar_lea.sflag [#allocation7], 2
  %3053 = vsyncmov %s3052
  %s3054 = vpop.sfrf %3053
  %p3055 = scmp.eq.s32.totalorder %s3054, 0
  %p3056 = pneg %p3055
  %3058 = shalt.err (%p3056)
  %s3059 = scalar_lea.sflag [#allocation7], 3
  %3060 = vsyncmov %s3059
  %s3061 = vpop.sfrf %3060
  %p3062 = scmp.eq.s32.totalorder %s3061, 0
  %p3063 = pneg %p3062
  %3065 = shalt.err (%p3063)
  %s3066 = scalar_lea.sflag [#allocation7], 4
  %3067 = vsyncmov %s3066
  %s3068 = vpop.sfrf %3067
  %p3069 = scmp.eq.s32.totalorder %s3068, 0
  %p3070 = pneg %p3069
  %3072 = shalt.err (%p3070)

</llo_original>
